<compile_context>
chip_gen: v5e
topology: v5e:2x2
jax: 0.10.0
libtpu: 0.0.40
codegen_flags: <defaults>
</compile_context>

<pallas_src>
import functools

import jax
import jax.numpy as jnp
from jax.experimental import pallas as pl
from jax.experimental.pallas import tpu as pltpu


LN_EPS = 1e-12                 # DistilBERT LayerNorm eps
_SQRT1_2 = 0.7071067811865476  # 1/sqrt(2) for exact (erf) GELU


def _full_spec(shape):
    """Whole-array BlockSpec for a grid=(1,) call."""
    n = len(shape)
    return pl.BlockSpec(shape, lambda i, _n=n: (0,) * _n)


def _ln(x, g, b, eps):
    """LayerNorm over the last axis; g/b are [1, D] and broadcast."""
    mu = jnp.mean(x, axis=-1, keepdims=True)
    var = jnp.mean(jnp.square(x - mu), axis=-1, keepdims=True)
    return (x - mu) * jax.lax.rsqrt(var + eps) * g + b


# --------------------------- fused Pallas kernels ---------------------------

def _encoder_kernel(we_ref, pe_ref, eg_ref, eb_ref,
                    wqkv_ref, bqkv_ref, wo_ref, bo_ref,
                    ln1g_ref, ln1b_ref, w1_ref, b1_ref, w2_ref, b2_ref,
                    ln2g_ref, ln2b_ref, o_ref, ctx_sc, *, n_heads, eps):
    """Embedding-LN (at layer 0) + one DistilBERT encoder layer per grid step.

    grid = (batch_tiles, n_layers); the activation lives in o_ref (resident
    across the layer axis), layer weights are selected by the layer index.
    """
    layer = pl.program_id(1)
    tb, s, d = o_ref.shape
    dh = d // n_heads
    m = tb * s
    scale = jnp.float32(1.0 / (dh ** 0.5))

    # ---- embeddings: (word + pos) -> LayerNorm, only on the first layer ----
    @pl.when(layer == 0)
    def _():
        o_ref[...] = _ln(we_ref[...] + pe_ref[...], eg_ref[...], eb_ref[...], eps)

    x = o_ref[...]                                      # [tb, s, d] f32 (resident)
    x2 = x.reshape(m, d)

    # ---- fused Q/K/V projection: one bf16 MXU pass with N = 3*D ----
    qkv = (jnp.dot(x2.astype(jnp.bfloat16), wqkv_ref[...],
                   preferred_element_type=jnp.float32) + bqkv_ref[...])
    qkv = qkv.reshape(tb, s, 3 * d)
    q = qkv[:, :, :d]
    k = qkv[:, :, d:2 * d]
    v = qkv[:, :, 2 * d:]

    # ---- multi-head attention ----
    # Each head's context is written into a bf16 VMEM scratch at its lane
    # offset; the output projection is then a single K=D matmul with Wo
    # (== concat_h(ctx_h) @ Wo), instead of n_heads small-K matmuls.
    for hh in range(n_heads):                           # static unroll (small H)
        lo = hh * dh
        qh = q[:, :, lo:lo + dh].astype(jnp.bfloat16)   # [tb, s, dh]
        kh = k[:, :, lo:lo + dh].astype(jnp.bfloat16)
        vh = v[:, :, lo:lo + dh].astype(jnp.bfloat16)
        # contract last axes directly (no explicit transpose of K)
        sc = jnp.einsum('bqd,bkd->bqk', qh, kh,
                        preferred_element_type=jnp.float32) * scale
        sc = sc - jnp.max(sc, axis=-1, keepdims=True)
        p = jnp.exp(sc)
        p = p * pl.reciprocal(jnp.sum(p, axis=-1, keepdims=True), approx=True)
        ctx_h = jnp.einsum('bqk,bkd->bqd', p.astype(jnp.bfloat16), vh,
                           preferred_element_type=jnp.float32)   # [tb, s, dh]
        ctx_sc[:, :, lo:lo + dh] = ctx_h.astype(jnp.bfloat16)

    attn = (jnp.dot(ctx_sc[...].reshape(m, d), wo_ref[...],
                    preferred_element_type=jnp.float32) + bo_ref[...])

    # ---- residual + LayerNorm (post-LN, DistilBERT) ----
    h1 = _ln(attn + x2, ln1g_ref[...], ln1b_ref[...], eps)

    # ---- feed-forward: Linear -> exact GELU -> Linear (bf16 MXU, f32 acc) ----
    ff = jnp.dot(h1.astype(jnp.bfloat16), w1_ref[...],
                 preferred_element_type=jnp.float32) + b1_ref[...]
    ff = 0.5 * ff * (1.0 + jax.lax.erf(ff * jnp.float32(_SQRT1_2)))
    ff = jnp.dot(ff.astype(jnp.bfloat16), w2_ref[...],
                 preferred_element_type=jnp.float32) + b2_ref[...]

    # ---- residual + LayerNorm; carry the result in the resident output ----
    h2 = _ln(ff + h1, ln2g_ref[...], ln2b_ref[...], eps)
    o_ref[...] = h2.reshape(tb, s, d)


def _pool_classifier_kernel(h_ref, wp_ref, bp_ref, wc_ref, bc_ref, o_ref):
    """mean-pool over seq, abs-diff, 'concat', Linear->Tanh->(Dropout=id)->Linear.

    h_ref is [2, B, S, D]: index 0 = sentence-1 batch, index 1 = sentence-2
    batch.  concat([p1, p2, |p1-p2|]) @ Wp is computed as three row-sliced
    matmuls so no lane concatenation is materialized.
    """
    d = h_ref.shape[-1]
    pooled = jnp.mean(h_ref[...], axis=2)               # [2, B, D] f32
    p1 = pooled[0]
    p2 = pooled[1]
    diff = jnp.abs(p1 - p2)
    wp = wp_ref[...]                                    # [3D, Dc] bf16
    y = (jnp.dot(p1.astype(jnp.bfloat16), wp[:d, :],
                 preferred_element_type=jnp.float32)
         + jnp.dot(p2.astype(jnp.bfloat16), wp[d:2 * d, :],
                   preferred_element_type=jnp.float32)
         + jnp.dot(diff.astype(jnp.bfloat16), wp[2 * d:, :],
                   preferred_element_type=jnp.float32)
         + bp_ref[...])
    y = jnp.tanh(y)                                     # Dropout(p=0.2) = id (eval)
    o_ref[...] = (jnp.dot(y.astype(jnp.bfloat16), wc_ref[...],
                          preferred_element_type=jnp.float32) + bc_ref[...])


# ------------------------------ wrappers ------------------------------------

def encode(we, pe, emb_g, emb_b, layers, *, n_heads, tile_b=None):
    """Run embedding-LN + all encoder layers in one pallas_call."""
    bt, s, d = we.shape
    n_layers = layers["wqkv"].shape[0]
    f = layers["w1"].shape[-1]

    if tile_b is None:
        tile_b = max(1, min(bt, 256 // max(s, 1)))      # ~256 rows per tile
        while bt % tile_b:
            tile_b -= 1
    grid = (bt // tile_b, n_layers)

    bmap = lambda i, l: (i, 0, 0)       # per-batch-tile blocks (constant in l)
    cmap3 = lambda i, l: (0, 0, 0)      # shared 3-D constants
    cmap2 = lambda i, l: (0, 0)         # shared 2-D constants
    lmap = lambda i, l: (l, 0, 0)       # per-layer stacked weights

    in_specs = [
        pl.BlockSpec((tile_b, s, d), bmap),             # word embeddings
        pl.BlockSpec((1, s, d), cmap3),                 # pos embeddings
        pl.BlockSpec((1, d), cmap2),                    # emb LN gamma
        pl.BlockSpec((1, d), cmap2),                    # emb LN beta
        pl.BlockSpec((None, d, 3 * d), lmap),           # wqkv  (bf16)
        pl.BlockSpec((None, 1, 3 * d), lmap),           # bqkv
        pl.BlockSpec((None, d, d), lmap),               # wo    (bf16)
        pl.BlockSpec((None, 1, d), lmap),               # bo
        pl.BlockSpec((None, 1, d), lmap),               # ln1 gamma
        pl.BlockSpec((None, 1, d), lmap),               # ln1 beta
        pl.BlockSpec((None, d, f), lmap),               # w1    (bf16)
        pl.BlockSpec((None, 1, f), lmap),               # b1
        pl.BlockSpec((None, f, d), lmap),               # w2    (bf16)
        pl.BlockSpec((None, 1, d), lmap),               # b2
        pl.BlockSpec((None, 1, d), lmap),               # ln2 gamma
        pl.BlockSpec((None, 1, d), lmap),               # ln2 beta
    ]
    return pl.pallas_call(
        functools.partial(_encoder_kernel, n_heads=n_heads, eps=LN_EPS),
        out_shape=jax.ShapeDtypeStruct((bt, s, d), jnp.float32),
        grid=grid,
        in_specs=in_specs,
        out_specs=pl.BlockSpec((tile_b, s, d), bmap),
        scratch_shapes=[pltpu.VMEM((tile_b, s, d), jnp.bfloat16)],   # ctx scratch
        compiler_params=pltpu.CompilerParams(
            dimension_semantics=("parallel", "arbitrary"),
            vmem_limit_bytes=64 * 1024 * 1024),
    )(we, pe, emb_g, emb_b,
      layers["wqkv"], layers["bqkv"], layers["wo"], layers["bo"],
      layers["ln1_g"], layers["ln1_b"], layers["w1"], layers["b1"],
      layers["w2"], layers["b2"], layers["ln2_g"], layers["ln2_b"])


def pool_classify(h_pair, params, num_class):
    two, b, s, d = h_pair.shape
    dc = params["w_pre"].shape[1]
    return pl.pallas_call(
        _pool_classifier_kernel,
        out_shape=jax.ShapeDtypeStruct((b, num_class), jnp.float32),
        grid=(1,),
        in_specs=[
            _full_spec((two, b, s, d)),
            _full_spec((3 * d, dc)), _full_spec((1, dc)),
            _full_spec((dc, num_class)), _full_spec((1, num_class)),
        ],
        out_specs=_full_spec((b, num_class)),
        compiler_params=pltpu.CompilerParams(
            vmem_limit_bytes=64 * 1024 * 1024),
    )(h_pair, params["w_pre"], params["b_pre"], params["w_cls"], params["b_cls"])


# ------------------------------ model (glue) --------------------------------

def model_forward(params, w1, w2, n_heads, num_class):
    b, s = w1.shape
    d = params["word_emb"].shape[1]

    # Encode both sentences in one batched pass (encoder is batch-independent).
    ids = jnp.concatenate([w1, w2], axis=0)                          # [2B, S]
    # TODO(synk): the data-dependent embedding gather stays as an XLA gather
    # feeding the fused encoder kernel (fusing it would need per-row manual DMA).
    we = jnp.take(params["word_emb"], ids, axis=0).astype(jnp.float32)  # [2B,S,D]
    pe = params["pos_emb"][:s][None, :, :].astype(jnp.float32)       # [1, S, D]

    h = encode(we, pe, params["emb_ln_g"], params["emb_ln_b"],
               params["layers"], n_heads=n_heads)                    # [2B, S, D]

    h_pair = h.reshape(2, b, s, d)                                   # free reshape
    return pool_classify(h_pair, params, num_class)


# ------------------------------ init params ---------------------------------

def init_params(key, *, vocab, max_pos, d_model, n_layers, d_ff, num_class):
    def nrm(k, shape, scale=0.02):
        return (scale * jax.random.normal(k, shape)).astype(jnp.float32)

    keys = iter(jax.random.split(key, 2 + 12 * n_layers + 4))
    p = {
        "word_emb": nrm(next(keys), (vocab, d_model)),
        "pos_emb": nrm(next(keys), (max_pos, d_model)),
        "emb_ln_g": jnp.ones((1, d_model), jnp.float32),
        "emb_ln_b": jnp.zeros((1, d_model), jnp.float32),
    }

    names = ("wqkv", "bqkv", "wo", "bo", "ln1_g", "ln1_b",
             "w1", "b1", "w2", "b2", "ln2_g", "ln2_b")
    per_layer = {n: [] for n in names}
    for _ in range(n_layers):
        wq, bq = nrm(next(keys), (d_model, d_model)), nrm(next(keys), (1, d_model))
        wk, bk = nrm(next(keys), (d_model, d_model)), nrm(next(keys), (1, d_model))
        wv, bv = nrm(next(keys), (d_model, d_model)), nrm(next(keys), (1, d_model))
        per_layer["wqkv"].append(jnp.concatenate([wq, wk, wv], axis=1))  # [D, 3D]
        per_layer["bqkv"].append(jnp.concatenate([bq, bk, bv], axis=1))  # [1, 3D]
        per_layer["wo"].append(nrm(next(keys), (d_model, d_model)))
        per_layer["bo"].append(nrm(next(keys), (1, d_model)))
        per_layer["ln1_g"].append(jnp.ones((1, d_model), jnp.float32))
        per_layer["ln1_b"].append(jnp.zeros((1, d_model), jnp.float32))
        per_layer["w1"].append(nrm(next(keys), (d_model, d_ff)))
        per_layer["b1"].append(nrm(next(keys), (1, d_ff)))
        per_layer["w2"].append(nrm(next(keys), (d_ff, d_model)))
        per_layer["b2"].append(nrm(next(keys), (1, d_model)))
        per_layer["ln2_g"].append(jnp.ones((1, d_model), jnp.float32))
        per_layer["ln2_b"].append(jnp.zeros((1, d_model), jnp.float32))

    mxu_weights = {"wqkv", "wo", "w1", "w2"}   # bf16 MXU operands
    p["layers"] = {
        n: jnp.stack(v).astype(jnp.bfloat16 if n in mxu_weights else jnp.float32)
        for n, v in per_layer.items()
    }

    d_cls = 3 * d_model   # d_classifier = d_model * 3 in the PyTorch module
    p["w_pre"] = nrm(next(keys), (3 * d_model, d_cls)).astype(jnp.bfloat16)
    p["b_pre"] = nrm(next(keys), (1, d_cls))
    p["w_cls"] = nrm(next(keys), (d_cls, num_class)).astype(jnp.bfloat16)
    p["b_cls"] = nrm(next(keys), (1, num_class))
    return p


# ---------------------------------- main -------------------------------------

if __name__ == "__main__":
    # scaled-down DistilBERT config (real model: 768 / 12 heads / 6 layers)
    VOCAB, MAX_POS = 100, 32
    D_MODEL, N_HEADS, N_LAYERS, D_FF = 64, 4, 2, 128
    NUM_CLASS = 3
    B, S = 2, 8

    key = jax.random.PRNGKey(0)
    kp, k1, k2 = jax.random.split(key, 3)
    params = init_params(kp, vocab=VOCAB, max_pos=MAX_POS, d_model=D_MODEL,
                         n_layers=N_LAYERS, d_ff=D_FF, num_class=NUM_CLASS)
    w1 = jax.random.randint(k1, (B, S), 0, VOCAB, dtype=jnp.int32)
    w2 = jax.random.randint(k2, (B, S), 0, VOCAB, dtype=jnp.int32)

    out = model_forward(params, w1, w2, N_HEADS, NUM_CLASS)
    out = jax.block_until_ready(out)
    assert out.shape == (B, NUM_CLASS) and out.dtype == jnp.float32
    assert bool(jnp.all(jnp.isfinite(out)))
    print("KERNEL_OK")
</pallas_src>

<mosaic_0001>
module attributes {stable_mosaic.version = 11 : i64} {
  func.func @_encoder_kernel(%arg0: i32, %arg1: i32, %arg2: memref<4x8x64xf32, #tpu.memory_space<vmem>>, %arg3: memref<1x8x64xf32, #tpu.memory_space<vmem>>, %arg4: memref<1x64xf32, #tpu.memory_space<vmem>>, %arg5: memref<1x64xf32, #tpu.memory_space<vmem>>, %arg6: memref<1x64x192xbf16, #tpu.memory_space<vmem>>, %arg7: memref<1x1x192xf32, #tpu.memory_space<vmem>>, %arg8: memref<1x64x64xbf16, #tpu.memory_space<vmem>>, %arg9: memref<1x1x64xf32, #tpu.memory_space<vmem>>, %arg10: memref<1x1x64xf32, #tpu.memory_space<vmem>>, %arg11: memref<1x1x64xf32, #tpu.memory_space<vmem>>, %arg12: memref<1x64x128xbf16, #tpu.memory_space<vmem>>, %arg13: memref<1x1x128xf32, #tpu.memory_space<vmem>>, %arg14: memref<1x128x64xbf16, #tpu.memory_space<vmem>>, %arg15: memref<1x1x64xf32, #tpu.memory_space<vmem>>, %arg16: memref<1x1x64xf32, #tpu.memory_space<vmem>>, %arg17: memref<1x1x64xf32, #tpu.memory_space<vmem>>, %arg18: memref<4x8x64xf32, #tpu.memory_space<vmem>>, %arg19: memref<4x8x64xbf16, #tpu.memory_space<vmem>>) attributes {dimension_semantics = [#tpu.dimension_semantics<parallel>, #tpu.dimension_semantics<arbitrary>], iteration_bounds = array<i64: 1, 2>, scalar_prefetch = 0 : i64, scratch_operands = 1 : i64, tpu.core_type = #tpu.core_type<tc>, window_params = [{transform_indices = @transform_0, window_bounds = array<i64: 4, 8, 64>}, {pipeline_mode = #tpu.pipeline_mode<synchronous>, transform_indices = @transform_1, window_bounds = array<i64: 1, 8, 64>}, {pipeline_mode = #tpu.pipeline_mode<synchronous>, transform_indices = @transform_2, window_bounds = array<i64: 1, 64>}, {pipeline_mode = #tpu.pipeline_mode<synchronous>, transform_indices = @transform_3, window_bounds = array<i64: 1, 64>}, {transform_indices = @transform_4, window_bounds = array<i64: 1, 64, 192>}, {transform_indices = @transform_5, window_bounds = array<i64: 1, 1, 192>}, {transform_indices = @transform_6, window_bounds = array<i64: 1, 64, 64>}, {transform_indices = @transform_7, window_bounds = array<i64: 1, 1, 64>}, {transform_indices = @transform_8, window_bounds = array<i64: 1, 1, 64>}, {transform_indices = @transform_9, window_bounds = array<i64: 1, 1, 64>}, {transform_indices = @transform_10, window_bounds = array<i64: 1, 64, 128>}, {transform_indices = @transform_11, window_bounds = array<i64: 1, 1, 128>}, {transform_indices = @transform_12, window_bounds = array<i64: 1, 128, 64>}, {transform_indices = @transform_13, window_bounds = array<i64: 1, 1, 64>}, {transform_indices = @transform_14, window_bounds = array<i64: 1, 1, 64>}, {transform_indices = @transform_15, window_bounds = array<i64: 1, 1, 64>}, {transform_indices = @transform_16, window_bounds = array<i64: 4, 8, 64>}]} {
    %c0_i32 = arith.constant 0 : i32
    %0 = arith.cmpi eq, %arg1, %c0_i32 : i32
    %1 = arith.extui %0 : i1 to i32
    %c0_i32_0 = arith.constant 0 : i32
    %2 = arith.cmpi ne, %1, %c0_i32_0 : i32
    scf.if %2 {
      %c0_90 = arith.constant 0 : index
      %c0_91 = arith.constant 0 : index
      %c0_92 = arith.constant 0 : index
      %198 = vector.load %arg2[%c0_90, %c0_91, %c0_92] : memref<4x8x64xf32, #tpu.memory_space<vmem>>, vector<4x8x64xf32>
      %c0_93 = arith.constant 0 : index
      %c0_94 = arith.constant 0 : index
      %c0_95 = arith.constant 0 : index
      %199 = vector.load %arg3[%c0_93, %c0_94, %c0_95] : memref<1x8x64xf32, #tpu.memory_space<vmem>>, vector<1x8x64xf32>
      %200 = vector.broadcast %199 : vector<1x8x64xf32> to vector<4x8x64xf32>
      %201 = arith.addf %198, %200 : vector<4x8x64xf32>
      %c0_96 = arith.constant 0 : index
      %c0_97 = arith.constant 0 : index
      %202 = vector.load %arg4[%c0_96, %c0_97] : memref<1x64xf32, #tpu.memory_space<vmem>>, vector<1x64xf32>
      %c0_98 = arith.constant 0 : index
      %c0_99 = arith.constant 0 : index
      %203 = vector.load %arg5[%c0_98, %c0_99] : memref<1x64xf32, #tpu.memory_space<vmem>>, vector<1x64xf32>
      %cst_100 = arith.constant dense<0.000000e+00> : vector<4x8xf32>
      %204 = vector.multi_reduction <add>, %201, %cst_100 [2] : vector<4x8x64xf32> to vector<4x8xf32>
      %205 = vector.shape_cast %204 : vector<4x8xf32> to vector<4x8x1xf32>
      %cst_101 = arith.constant 6.400000e+01 : f32
      %206 = vector.broadcast %cst_101 : f32 to vector<4x8x1xf32>
      %207 = arith.divf %205, %206 : vector<4x8x1xf32>
      %208 = vector.broadcast %207 : vector<4x8x1xf32> to vector<4x8x64xf32>
      %209 = arith.subf %201, %208 : vector<4x8x64xf32>
      %210 = arith.mulf %209, %209 : vector<4x8x64xf32>
      %cst_102 = arith.constant dense<0.000000e+00> : vector<4x8xf32>
      %211 = vector.multi_reduction <add>, %210, %cst_102 [2] : vector<4x8x64xf32> to vector<4x8xf32>
      %212 = vector.shape_cast %211 : vector<4x8xf32> to vector<4x8x1xf32>
      %cst_103 = arith.constant 6.400000e+01 : f32
      %213 = vector.broadcast %cst_103 : f32 to vector<4x8x1xf32>
      %214 = arith.divf %212, %213 : vector<4x8x1xf32>
      %215 = vector.broadcast %207 : vector<4x8x1xf32> to vector<4x8x64xf32>
      %216 = arith.subf %201, %215 : vector<4x8x64xf32>
      %cst_104 = arith.constant 9.99999996E-13 : f32
      %217 = vector.broadcast %cst_104 : f32 to vector<4x8x1xf32>
      %218 = arith.addf %214, %217 : vector<4x8x1xf32>
      %219 = math.rsqrt %218 : vector<4x8x1xf32>
      %220 = vector.broadcast %219 : vector<4x8x1xf32> to vector<4x8x64xf32>
      %221 = arith.mulf %216, %220 : vector<4x8x64xf32>
      %222 = vector.shape_cast %202 : vector<1x64xf32> to vector<1x1x64xf32>
      %223 = vector.broadcast %222 : vector<1x1x64xf32> to vector<4x8x64xf32>
      %224 = arith.mulf %221, %223 : vector<4x8x64xf32>
      %225 = vector.shape_cast %203 : vector<1x64xf32> to vector<1x1x64xf32>
      %226 = vector.broadcast %225 : vector<1x1x64xf32> to vector<4x8x64xf32>
      %227 = arith.addf %224, %226 : vector<4x8x64xf32>
      %c0_105 = arith.constant 0 : index
      %c0_106 = arith.constant 0 : index
      %c0_107 = arith.constant 0 : index
      %228 = vector.load %arg18[%c0_105, %c0_106, %c0_107] : memref<4x8x64xf32, #tpu.memory_space<vmem>>, vector<4x8x64xf32>
      tpu.vector_store %arg18[%c0_105, %c0_106, %c0_107], %227 {strides = array<i32>} : memref<4x8x64xf32, #tpu.memory_space<vmem>>, vector<4x8x64xf32>,
    } else {
    }
    %c0 = arith.constant 0 : index
    %c0_1 = arith.constant 0 : index
    %c0_2 = arith.constant 0 : index
    %3 = vector.load %arg18[%c0, %c0_1, %c0_2] : memref<4x8x64xf32, #tpu.memory_space<vmem>>, vector<4x8x64xf32>
    %4 = vector.shape_cast %3 : vector<4x8x64xf32> to vector<32x64xf32>
    %5 = arith.truncf %4 : vector<32x64xf32> to vector<32x64xbf16>
    %c0_3 = arith.constant 0 : index
    %c0_4 = arith.constant 0 : index
    %c0_5 = arith.constant 0 : index
    %6 = vector.load %arg6[%c0_3, %c0_4, %c0_5] : memref<1x64x192xbf16, #tpu.memory_space<vmem>>, vector<1x64x192xbf16>
    %7 = vector.shape_cast %6 : vector<1x64x192xbf16> to vector<64x192xbf16>
    %cst = arith.constant dense<0.000000e+00> : vector<32x192xf32>
    %8 = tpu.matmul %5, %7, %cst {dimension_numbers = #tpu.dot_dimension_numbers<[1], [0], [0], [1], [0, 0, 1, 1], [], []>} : vector<32x64xbf16>, vector<64x192xbf16>, vector<32x192xf32> -> vector<32x192xf32>
    %c0_6 = arith.constant 0 : index
    %c0_7 = arith.constant 0 : index
    %c0_8 = arith.constant 0 : index
    %9 = vector.load %arg7[%c0_6, %c0_7, %c0_8] : memref<1x1x192xf32, #tpu.memory_space<vmem>>, vector<1x1x192xf32>
    %10 = vector.shape_cast %9 : vector<1x1x192xf32> to vector<1x192xf32>
    %11 = vector.broadcast %10 : vector<1x192xf32> to vector<32x192xf32>
    %12 = arith.addf %8, %11 : vector<32x192xf32>
    %13 = vector.shape_cast %12 : vector<32x192xf32> to vector<4x8x192xf32>
    %14 = vector.extract_strided_slice %13 {offsets = [0, 0, 0], sizes = [4, 8, 64], strides = [1, 1, 1]} : vector<4x8x192xf32> to vector<4x8x64xf32>
    %15 = vector.extract_strided_slice %13 {offsets = [0, 0, 64], sizes = [4, 8, 64], strides = [1, 1, 1]} : vector<4x8x192xf32> to vector<4x8x64xf32>
    %16 = vector.extract_strided_slice %13 {offsets = [0, 0, 128], sizes = [4, 8, 64], strides = [1, 1, 1]} : vector<4x8x192xf32> to vector<4x8x64xf32>
    %17 = vector.extract_strided_slice %14 {offsets = [0, 0, 0], sizes = [4, 8, 16], strides = [1, 1, 1]} : vector<4x8x64xf32> to vector<4x8x16xf32>
    %18 = arith.truncf %17 : vector<4x8x16xf32> to vector<4x8x16xbf16>
    %19 = vector.extract_strided_slice %15 {offsets = [0, 0, 0], sizes = [4, 8, 16], strides = [1, 1, 1]} : vector<4x8x64xf32> to vector<4x8x16xf32>
    %20 = arith.truncf %19 : vector<4x8x16xf32> to vector<4x8x16xbf16>
    %21 = vector.extract_strided_slice %16 {offsets = [0, 0, 0], sizes = [4, 8, 16], strides = [1, 1, 1]} : vector<4x8x64xf32> to vector<4x8x16xf32>
    %22 = arith.truncf %21 : vector<4x8x16xf32> to vector<4x8x16xbf16>
    "tpu.trace_start"() <{level = 10 : i32, message = "bqd,bkd->bqk"}> : () -> ()
    %cst_9 = arith.constant dense<0.000000e+00> : vector<4x8x8xf32>
    %23 = tpu.matmul %18, %20, %cst_9 {dimension_numbers = #tpu.dot_dimension_numbers<[2], [2], [1], [1], [0, 0, 0, 1, 1, 1], [0], [0]>} : vector<4x8x16xbf16>, vector<4x8x16xbf16>, vector<4x8x8xf32> -> vector<4x8x8xf32>
    "tpu.trace_stop"() : () -> ()
    %cst_10 = arith.constant 2.500000e-01 : f32
    %24 = vector.broadcast %cst_10 : f32 to vector<4x8x8xf32>
    %25 = arith.mulf %23, %24 : vector<4x8x8xf32>
    %cst_11 = arith.constant dense<0xFF800000> : vector<4x8xf32>
    %26 = vector.multi_reduction <maximumf>, %25, %cst_11 [2] : vector<4x8x8xf32> to vector<4x8xf32>
    %27 = vector.shape_cast %26 : vector<4x8xf32> to vector<4x8x1xf32>
    %28 = vector.broadcast %27 : vector<4x8x1xf32> to vector<4x8x8xf32>
    %29 = arith.subf %25, %28 : vector<4x8x8xf32>
    %30 = math.exp %29 : vector<4x8x8xf32>
    %cst_12 = arith.constant dense<0.000000e+00> : vector<4x8xf32>
    %31 = vector.multi_reduction <add>, %30, %cst_12 [2] : vector<4x8x8xf32> to vector<4x8xf32>
    %32 = vector.shape_cast %31 : vector<4x8xf32> to vector<4x8x1xf32>
    %33 = tpu.reciprocal %32 {approx = true} : vector<4x8x1xf32> -> vector<4x8x1xf32>
    %34 = vector.broadcast %33 : vector<4x8x1xf32> to vector<4x8x8xf32>
    %35 = arith.mulf %30, %34 : vector<4x8x8xf32>
    %36 = arith.truncf %35 : vector<4x8x8xf32> to vector<4x8x8xbf16>
    "tpu.trace_start"() <{level = 10 : i32, message = "bqk,bkd->bqd"}> : () -> ()
    %cst_13 = arith.constant dense<0.000000e+00> : vector<4x8x16xf32>
    %37 = tpu.matmul %36, %22, %cst_13 {dimension_numbers = #tpu.dot_dimension_numbers<[2], [1], [1], [2], [0, 0, 0, 1, 1, 2], [0], [0]>} : vector<4x8x8xbf16>, vector<4x8x16xbf16>, vector<4x8x16xf32> -> vector<4x8x16xf32>
    "tpu.trace_stop"() : () -> ()
    %38 = arith.truncf %37 : vector<4x8x16xf32> to vector<4x8x16xbf16>
    %c0_14 = arith.constant 0 : index
    %c0_15 = arith.constant 0 : index
    %c0_16 = arith.constant 0 : index
    %39 = vector.load %arg19[%c0_14, %c0_15, %c0_16] : memref<4x8x64xbf16, #tpu.memory_space<vmem>>, vector<4x8x16xbf16>
    tpu.vector_store %arg19[%c0_14, %c0_15, %c0_16], %38 {strides = array<i32>} : memref<4x8x64xbf16, #tpu.memory_space<vmem>>, vector<4x8x16xbf16>,
    %40 = vector.extract_strided_slice %14 {offsets = [0, 0, 16], sizes = [4, 8, 16], strides = [1, 1, 1]} : vector<4x8x64xf32> to vector<4x8x16xf32>
    %41 = arith.truncf %40 : vector<4x8x16xf32> to vector<4x8x16xbf16>
    %42 = vector.extract_strided_slice %15 {offsets = [0, 0, 16], sizes = [4, 8, 16], strides = [1, 1, 1]} : vector<4x8x64xf32> to vector<4x8x16xf32>
    %43 = arith.truncf %42 : vector<4x8x16xf32> to vector<4x8x16xbf16>
    %44 = vector.extract_strided_slice %16 {offsets = [0, 0, 16], sizes = [4, 8, 16], strides = [1, 1, 1]} : vector<4x8x64xf32> to vector<4x8x16xf32>
    %45 = arith.truncf %44 : vector<4x8x16xf32> to vector<4x8x16xbf16>
    "tpu.trace_start"() <{level = 10 : i32, message = "bqd,bkd->bqk"}> : () -> ()
    %cst_17 = arith.constant dense<0.000000e+00> : vector<4x8x8xf32>
    %46 = tpu.matmul %41, %43, %cst_17 {dimension_numbers = #tpu.dot_dimension_numbers<[2], [2], [1], [1], [0, 0, 0, 1, 1, 1], [0], [0]>} : vector<4x8x16xbf16>, vector<4x8x16xbf16>, vector<4x8x8xf32> -> vector<4x8x8xf32>
    "tpu.trace_stop"() : () -> ()
    %cst_18 = arith.constant 2.500000e-01 : f32
    %47 = vector.broadcast %cst_18 : f32 to vector<4x8x8xf32>
    %48 = arith.mulf %46, %47 : vector<4x8x8xf32>
    %cst_19 = arith.constant dense<0xFF800000> : vector<4x8xf32>
    %49 = vector.multi_reduction <maximumf>, %48, %cst_19 [2] : vector<4x8x8xf32> to vector<4x8xf32>
    %50 = vector.shape_cast %49 : vector<4x8xf32> to vector<4x8x1xf32>
    %51 = vector.broadcast %50 : vector<4x8x1xf32> to vector<4x8x8xf32>
    %52 = arith.subf %48, %51 : vector<4x8x8xf32>
    %53 = math.exp %52 : vector<4x8x8xf32>
    %cst_20 = arith.constant dense<0.000000e+00> : vector<4x8xf32>
    %54 = vector.multi_reduction <add>, %53, %cst_20 [2] : vector<4x8x8xf32> to vector<4x8xf32>
    %55 = vector.shape_cast %54 : vector<4x8xf32> to vector<4x8x1xf32>
    %56 = tpu.reciprocal %55 {approx = true} : vector<4x8x1xf32> -> vector<4x8x1xf32>
    %57 = vector.broadcast %56 : vector<4x8x1xf32> to vector<4x8x8xf32>
    %58 = arith.mulf %53, %57 : vector<4x8x8xf32>
    %59 = arith.truncf %58 : vector<4x8x8xf32> to vector<4x8x8xbf16>
    "tpu.trace_start"() <{level = 10 : i32, message = "bqk,bkd->bqd"}> : () -> ()
    %cst_21 = arith.constant dense<0.000000e+00> : vector<4x8x16xf32>
    %60 = tpu.matmul %59, %45, %cst_21 {dimension_numbers = #tpu.dot_dimension_numbers<[2], [1], [1], [2], [0, 0, 0, 1, 1, 2], [0], [0]>} : vector<4x8x8xbf16>, vector<4x8x16xbf16>, vector<4x8x16xf32> -> vector<4x8x16xf32>
    "tpu.trace_stop"() : () -> ()
    %61 = arith.truncf %60 : vector<4x8x16xf32> to vector<4x8x16xbf16>
    %c0_22 = arith.constant 0 : index
    %c0_23 = arith.constant 0 : index
    %c16 = arith.constant 16 : index
    %62 = vector.load %arg19[%c0_22, %c0_23, %c16] : memref<4x8x64xbf16, #tpu.memory_space<vmem>>, vector<4x8x16xbf16>
    tpu.vector_store %arg19[%c0_22, %c0_23, %c16], %61 {strides = array<i32>} : memref<4x8x64xbf16, #tpu.memory_space<vmem>>, vector<4x8x16xbf16>,
    %63 = vector.extract_strided_slice %14 {offsets = [0, 0, 32], sizes = [4, 8, 16], strides = [1, 1, 1]} : vector<4x8x64xf32> to vector<4x8x16xf32>
    %64 = arith.truncf %63 : vector<4x8x16xf32> to vector<4x8x16xbf16>
    %65 = vector.extract_strided_slice %15 {offsets = [0, 0, 32], sizes = [4, 8, 16], strides = [1, 1, 1]} : vector<4x8x64xf32> to vector<4x8x16xf32>
    %66 = arith.truncf %65 : vector<4x8x16xf32> to vector<4x8x16xbf16>
    %67 = vector.extract_strided_slice %16 {offsets = [0, 0, 32], sizes = [4, 8, 16], strides = [1, 1, 1]} : vector<4x8x64xf32> to vector<4x8x16xf32>
    %68 = arith.truncf %67 : vector<4x8x16xf32> to vector<4x8x16xbf16>
    "tpu.trace_start"() <{level = 10 : i32, message = "bqd,bkd->bqk"}> : () -> ()
    %cst_24 = arith.constant dense<0.000000e+00> : vector<4x8x8xf32>
    %69 = tpu.matmul %64, %66, %cst_24 {dimension_numbers = #tpu.dot_dimension_numbers<[2], [2], [1], [1], [0, 0, 0, 1, 1, 1], [0], [0]>} : vector<4x8x16xbf16>, vector<4x8x16xbf16>, vector<4x8x8xf32> -> vector<4x8x8xf32>
    "tpu.trace_stop"() : () -> ()
    %cst_25 = arith.constant 2.500000e-01 : f32
    %70 = vector.broadcast %cst_25 : f32 to vector<4x8x8xf32>
    %71 = arith.mulf %69, %70 : vector<4x8x8xf32>
    %cst_26 = arith.constant dense<0xFF800000> : vector<4x8xf32>
    %72 = vector.multi_reduction <maximumf>, %71, %cst_26 [2] : vector<4x8x8xf32> to vector<4x8xf32>
    %73 = vector.shape_cast %72 : vector<4x8xf32> to vector<4x8x1xf32>
    %74 = vector.broadcast %73 : vector<4x8x1xf32> to vector<4x8x8xf32>
    %75 = arith.subf %71, %74 : vector<4x8x8xf32>
    %76 = math.exp %75 : vector<4x8x8xf32>
    %cst_27 = arith.constant dense<0.000000e+00> : vector<4x8xf32>
    %77 = vector.multi_reduction <add>, %76, %cst_27 [2] : vector<4x8x8xf32> to vector<4x8xf32>
    %78 = vector.shape_cast %77 : vector<4x8xf32> to vector<4x8x1xf32>
    %79 = tpu.reciprocal %78 {approx = true} : vector<4x8x1xf32> -> vector<4x8x1xf32>
    %80 = vector.broadcast %79 : vector<4x8x1xf32> to vector<4x8x8xf32>
    %81 = arith.mulf %76, %80 : vector<4x8x8xf32>
    %82 = arith.truncf %81 : vector<4x8x8xf32> to vector<4x8x8xbf16>
    "tpu.trace_start"() <{level = 10 : i32, message = "bqk,bkd->bqd"}> : () -> ()
    %cst_28 = arith.constant dense<0.000000e+00> : vector<4x8x16xf32>
    %83 = tpu.matmul %82, %68, %cst_28 {dimension_numbers = #tpu.dot_dimension_numbers<[2], [1], [1], [2], [0, 0, 0, 1, 1, 2], [0], [0]>} : vector<4x8x8xbf16>, vector<4x8x16xbf16>, vector<4x8x16xf32> -> vector<4x8x16xf32>
    "tpu.trace_stop"() : () -> ()
    %84 = arith.truncf %83 : vector<4x8x16xf32> to vector<4x8x16xbf16>
    %c0_29 = arith.constant 0 : index
    %c0_30 = arith.constant 0 : index
    %c32 = arith.constant 32 : index
    %85 = vector.load %arg19[%c0_29, %c0_30, %c32] : memref<4x8x64xbf16, #tpu.memory_space<vmem>>, vector<4x8x16xbf16>
    tpu.vector_store %arg19[%c0_29, %c0_30, %c32], %84 {strides = array<i32>} : memref<4x8x64xbf16, #tpu.memory_space<vmem>>, vector<4x8x16xbf16>,
    %86 = vector.extract_strided_slice %14 {offsets = [0, 0, 48], sizes = [4, 8, 16], strides = [1, 1, 1]} : vector<4x8x64xf32> to vector<4x8x16xf32>
    %87 = arith.truncf %86 : vector<4x8x16xf32> to vector<4x8x16xbf16>
    %88 = vector.extract_strided_slice %15 {offsets = [0, 0, 48], sizes = [4, 8, 16], strides = [1, 1, 1]} : vector<4x8x64xf32> to vector<4x8x16xf32>
    %89 = arith.truncf %88 : vector<4x8x16xf32> to vector<4x8x16xbf16>
    %90 = vector.extract_strided_slice %16 {offsets = [0, 0, 48], sizes = [4, 8, 16], strides = [1, 1, 1]} : vector<4x8x64xf32> to vector<4x8x16xf32>
    %91 = arith.truncf %90 : vector<4x8x16xf32> to vector<4x8x16xbf16>
    "tpu.trace_start"() <{level = 10 : i32, message = "bqd,bkd->bqk"}> : () -> ()
    %cst_31 = arith.constant dense<0.000000e+00> : vector<4x8x8xf32>
    %92 = tpu.matmul %87, %89, %cst_31 {dimension_numbers = #tpu.dot_dimension_numbers<[2], [2], [1], [1], [0, 0, 0, 1, 1, 1], [0], [0]>} : vector<4x8x16xbf16>, vector<4x8x16xbf16>, vector<4x8x8xf32> -> vector<4x8x8xf32>
    "tpu.trace_stop"() : () -> ()
    %cst_32 = arith.constant 2.500000e-01 : f32
    %93 = vector.broadcast %cst_32 : f32 to vector<4x8x8xf32>
    %94 = arith.mulf %92, %93 : vector<4x8x8xf32>
    %cst_33 = arith.constant dense<0xFF800000> : vector<4x8xf32>
    %95 = vector.multi_reduction <maximumf>, %94, %cst_33 [2] : vector<4x8x8xf32> to vector<4x8xf32>
    %96 = vector.shape_cast %95 : vector<4x8xf32> to vector<4x8x1xf32>
    %97 = vector.broadcast %96 : vector<4x8x1xf32> to vector<4x8x8xf32>
    %98 = arith.subf %94, %97 : vector<4x8x8xf32>
    %99 = math.exp %98 : vector<4x8x8xf32>
    %cst_34 = arith.constant dense<0.000000e+00> : vector<4x8xf32>
    %100 = vector.multi_reduction <add>, %99, %cst_34 [2] : vector<4x8x8xf32> to vector<4x8xf32>
    %101 = vector.shape_cast %100 : vector<4x8xf32> to vector<4x8x1xf32>
    %102 = tpu.reciprocal %101 {approx = true} : vector<4x8x1xf32> -> vector<4x8x1xf32>
    %103 = vector.broadcast %102 : vector<4x8x1xf32> to vector<4x8x8xf32>
    %104 = arith.mulf %99, %103 : vector<4x8x8xf32>
    %105 = arith.truncf %104 : vector<4x8x8xf32> to vector<4x8x8xbf16>
    "tpu.trace_start"() <{level = 10 : i32, message = "bqk,bkd->bqd"}> : () -> ()
    %cst_35 = arith.constant dense<0.000000e+00> : vector<4x8x16xf32>
    %106 = tpu.matmul %105, %91, %cst_35 {dimension_numbers = #tpu.dot_dimension_numbers<[2], [1], [1], [2], [0, 0, 0, 1, 1, 2], [0], [0]>} : vector<4x8x8xbf16>, vector<4x8x16xbf16>, vector<4x8x16xf32> -> vector<4x8x16xf32>
    "tpu.trace_stop"() : () -> ()
    %107 = arith.truncf %106 : vector<4x8x16xf32> to vector<4x8x16xbf16>
    %c0_36 = arith.constant 0 : index
    %c0_37 = arith.constant 0 : index
    %c48 = arith.constant 48 : index
    %108 = vector.load %arg19[%c0_36, %c0_37, %c48] : memref<4x8x64xbf16, #tpu.memory_space<vmem>>, vector<4x8x16xbf16>
    tpu.vector_store %arg19[%c0_36, %c0_37, %c48], %107 {strides = array<i32>} : memref<4x8x64xbf16, #tpu.memory_space<vmem>>, vector<4x8x16xbf16>,
    %c0_38 = arith.constant 0 : index
    %c0_39 = arith.constant 0 : index
    %c0_40 = arith.constant 0 : index
    %109 = vector.load %arg19[%c0_38, %c0_39, %c0_40] : memref<4x8x64xbf16, #tpu.memory_space<vmem>>, vector<4x8x64xbf16>
    %110 = vector.shape_cast %109 : vector<4x8x64xbf16> to vector<32x64xbf16>
    %c0_41 = arith.constant 0 : index
    %c0_42 = arith.constant 0 : index
    %c0_43 = arith.constant 0 : index
    %111 = vector.load %arg8[%c0_41, %c0_42, %c0_43] : memref<1x64x64xbf16, #tpu.memory_space<vmem>>, vector<1x64x64xbf16>
    %112 = vector.shape_cast %111 : vector<1x64x64xbf16> to vector<64x64xbf16>
    %cst_44 = arith.constant dense<0.000000e+00> : vector<32x64xf32>
    %113 = tpu.matmul %110, %112, %cst_44 {dimension_numbers = #tpu.dot_dimension_numbers<[1], [0], [0], [1], [0, 0, 1, 1], [], []>} : vector<32x64xbf16>, vector<64x64xbf16>, vector<32x64xf32> -> vector<32x64xf32>
    %c0_45 = arith.constant 0 : index
    %c0_46 = arith.constant 0 : index
    %c0_47 = arith.constant 0 : index
    %114 = vector.load %arg9[%c0_45, %c0_46, %c0_47] : memref<1x1x64xf32, #tpu.memory_space<vmem>>, vector<1x1x64xf32>
    %115 = vector.shape_cast %114 : vector<1x1x64xf32> to vector<1x64xf32>
    %116 = vector.broadcast %115 : vector<1x64xf32> to vector<32x64xf32>
    %117 = arith.addf %113, %116 : vector<32x64xf32>
    %118 = arith.addf %117, %4 : vector<32x64xf32>
    %c0_48 = arith.constant 0 : index
    %c0_49 = arith.constant 0 : index
    %c0_50 = arith.constant 0 : index
    %119 = vector.load %arg10[%c0_48, %c0_49, %c0_50] : memref<1x1x64xf32, #tpu.memory_space<vmem>>, vector<1x1x64xf32>
    %120 = vector.shape_cast %119 : vector<1x1x64xf32> to vector<1x64xf32>
    %c0_51 = arith.constant 0 : index
    %c0_52 = arith.constant 0 : index
    %c0_53 = arith.constant 0 : index
    %121 = vector.load %arg11[%c0_51, %c0_52, %c0_53] : memref<1x1x64xf32, #tpu.memory_space<vmem>>, vector<1x1x64xf32>
    %122 = vector.shape_cast %121 : vector<1x1x64xf32> to vector<1x64xf32>
    %cst_54 = arith.constant dense<0.000000e+00> : vector<32xf32>
    %123 = vector.multi_reduction <add>, %118, %cst_54 [1] : vector<32x64xf32> to vector<32xf32>
    %124 = vector.shape_cast %123 : vector<32xf32> to vector<32x1xf32>
    %cst_55 = arith.constant 6.400000e+01 : f32
    %125 = vector.broadcast %cst_55 : f32 to vector<32x1xf32>
    %126 = arith.divf %124, %125 : vector<32x1xf32>
    %127 = vector.broadcast %126 : vector<32x1xf32> to vector<32x64xf32>
    %128 = arith.subf %118, %127 : vector<32x64xf32>
    %129 = arith.mulf %128, %128 : vector<32x64xf32>
    %cst_56 = arith.constant dense<0.000000e+00> : vector<32xf32>
    %130 = vector.multi_reduction <add>, %129, %cst_56 [1] : vector<32x64xf32> to vector<32xf32>
    %131 = vector.shape_cast %130 : vector<32xf32> to vector<32x1xf32>
    %cst_57 = arith.constant 6.400000e+01 : f32
    %132 = vector.broadcast %cst_57 : f32 to vector<32x1xf32>
    %133 = arith.divf %131, %132 : vector<32x1xf32>
    %134 = vector.broadcast %126 : vector<32x1xf32> to vector<32x64xf32>
    %135 = arith.subf %118, %134 : vector<32x64xf32>
    %cst_58 = arith.constant 9.99999996E-13 : f32
    %136 = vector.broadcast %cst_58 : f32 to vector<32x1xf32>
    %137 = arith.addf %133, %136 : vector<32x1xf32>
    %138 = math.rsqrt %137 : vector<32x1xf32>
    %139 = vector.broadcast %138 : vector<32x1xf32> to vector<32x64xf32>
    %140 = arith.mulf %135, %139 : vector<32x64xf32>
    %141 = vector.broadcast %120 : vector<1x64xf32> to vector<32x64xf32>
    %142 = arith.mulf %140, %141 : vector<32x64xf32>
    %143 = vector.broadcast %122 : vector<1x64xf32> to vector<32x64xf32>
    %144 = arith.addf %142, %143 : vector<32x64xf32>
    %145 = arith.truncf %144 : vector<32x64xf32> to vector<32x64xbf16>
    %c0_59 = arith.constant 0 : index
    %c0_60 = arith.constant 0 : index
    %c0_61 = arith.constant 0 : index
    %146 = vector.load %arg12[%c0_59, %c0_60, %c0_61] : memref<1x64x128xbf16, #tpu.memory_space<vmem>>, vector<1x64x128xbf16>
    %147 = vector.shape_cast %146 : vector<1x64x128xbf16> to vector<64x128xbf16>
    %cst_62 = arith.constant dense<0.000000e+00> : vector<32x128xf32>
    %148 = tpu.matmul %145, %147, %cst_62 {dimension_numbers = #tpu.dot_dimension_numbers<[1], [0], [0], [1], [0, 0, 1, 1], [], []>} : vector<32x64xbf16>, vector<64x128xbf16>, vector<32x128xf32> -> vector<32x128xf32>
    %c0_63 = arith.constant 0 : index
    %c0_64 = arith.constant 0 : index
    %c0_65 = arith.constant 0 : index
    %149 = vector.load %arg13[%c0_63, %c0_64, %c0_65] : memref<1x1x128xf32, #tpu.memory_space<vmem>>, vector<1x1x128xf32>
    %150 = vector.shape_cast %149 : vector<1x1x128xf32> to vector<1x128xf32>
    %151 = vector.broadcast %150 : vector<1x128xf32> to vector<32x128xf32>
    %152 = arith.addf %148, %151 : vector<32x128xf32>
    %cst_66 = arith.constant 5.000000e-01 : f32
    %153 = vector.broadcast %cst_66 : f32 to vector<32x128xf32>
    %154 = arith.mulf %153, %152 : vector<32x128xf32>
    %cst_67 = arith.constant 0.707106769 : f32
    %155 = vector.broadcast %cst_67 : f32 to vector<32x128xf32>
    %156 = arith.mulf %152, %155 : vector<32x128xf32>
    %157 = math.erf %156 : vector<32x128xf32>
    %cst_68 = arith.constant 1.000000e+00 : f32
    %158 = vector.broadcast %cst_68 : f32 to vector<32x128xf32>
    %159 = arith.addf %158, %157 : vector<32x128xf32>
    %160 = arith.mulf %154, %159 : vector<32x128xf32>
    %161 = arith.truncf %160 : vector<32x128xf32> to vector<32x128xbf16>
    %c0_69 = arith.constant 0 : index
    %c0_70 = arith.constant 0 : index
    %c0_71 = arith.constant 0 : index
    %162 = vector.load %arg14[%c0_69, %c0_70, %c0_71] : memref<1x128x64xbf16, #tpu.memory_space<vmem>>, vector<1x128x64xbf16>
    %163 = vector.shape_cast %162 : vector<1x128x64xbf16> to vector<128x64xbf16>
    %cst_72 = arith.constant dense<0.000000e+00> : vector<32x64xf32>
    %164 = tpu.matmul %161, %163, %cst_72 {dimension_numbers = #tpu.dot_dimension_numbers<[1], [0], [0], [1], [0, 0, 1, 1], [], []>} : vector<32x128xbf16>, vector<128x64xbf16>, vector<32x64xf32> -> vector<32x64xf32>
    %c0_73 = arith.constant 0 : index
    %c0_74 = arith.constant 0 : index
    %c0_75 = arith.constant 0 : index
    %165 = vector.load %arg15[%c0_73, %c0_74, %c0_75] : memref<1x1x64xf32, #tpu.memory_space<vmem>>, vector<1x1x64xf32>
    %166 = vector.shape_cast %165 : vector<1x1x64xf32> to vector<1x64xf32>
    %167 = vector.broadcast %166 : vector<1x64xf32> to vector<32x64xf32>
    %168 = arith.addf %164, %167 : vector<32x64xf32>
    %169 = arith.addf %168, %144 : vector<32x64xf32>
    %c0_76 = arith.constant 0 : index
    %c0_77 = arith.constant 0 : index
    %c0_78 = arith.constant 0 : index
    %170 = vector.load %arg16[%c0_76, %c0_77, %c0_78] : memref<1x1x64xf32, #tpu.memory_space<vmem>>, vector<1x1x64xf32>
    %171 = vector.shape_cast %170 : vector<1x1x64xf32> to vector<1x64xf32>
    %c0_79 = arith.constant 0 : index
    %c0_80 = arith.constant 0 : index
    %c0_81 = arith.constant 0 : index
    %172 = vector.load %arg17[%c0_79, %c0_80, %c0_81] : memref<1x1x64xf32, #tpu.memory_space<vmem>>, vector<1x1x64xf32>
    %173 = vector.shape_cast %172 : vector<1x1x64xf32> to vector<1x64xf32>
    %cst_82 = arith.constant dense<0.000000e+00> : vector<32xf32>
    %174 = vector.multi_reduction <add>, %169, %cst_82 [1] : vector<32x64xf32> to vector<32xf32>
    %175 = vector.shape_cast %174 : vector<32xf32> to vector<32x1xf32>
    %cst_83 = arith.constant 6.400000e+01 : f32
    %176 = vector.broadcast %cst_83 : f32 to vector<32x1xf32>
    %177 = arith.divf %175, %176 : vector<32x1xf32>
    %178 = vector.broadcast %177 : vector<32x1xf32> to vector<32x64xf32>
    %179 = arith.subf %169, %178 : vector<32x64xf32>
    %180 = arith.mulf %179, %179 : vector<32x64xf32>
    %cst_84 = arith.constant dense<0.000000e+00> : vector<32xf32>
    %181 = vector.multi_reduction <add>, %180, %cst_84 [1] : vector<32x64xf32> to vector<32xf32>
    %182 = vector.shape_cast %181 : vector<32xf32> to vector<32x1xf32>
    %cst_85 = arith.constant 6.400000e+01 : f32
    %183 = vector.broadcast %cst_85 : f32 to vector<32x1xf32>
    %184 = arith.divf %182, %183 : vector<32x1xf32>
    %185 = vector.broadcast %177 : vector<32x1xf32> to vector<32x64xf32>
    %186 = arith.subf %169, %185 : vector<32x64xf32>
    %cst_86 = arith.constant 9.99999996E-13 : f32
    %187 = vector.broadcast %cst_86 : f32 to vector<32x1xf32>
    %188 = arith.addf %184, %187 : vector<32x1xf32>
    %189 = math.rsqrt %188 : vector<32x1xf32>
    %190 = vector.broadcast %189 : vector<32x1xf32> to vector<32x64xf32>
    %191 = arith.mulf %186, %190 : vector<32x64xf32>
    %192 = vector.broadcast %171 : vector<1x64xf32> to vector<32x64xf32>
    %193 = arith.mulf %191, %192 : vector<32x64xf32>
    %194 = vector.broadcast %173 : vector<1x64xf32> to vector<32x64xf32>
    %195 = arith.addf %193, %194 : vector<32x64xf32>
    %196 = vector.shape_cast %195 : vector<32x64xf32> to vector<4x8x64xf32>
    %c0_87 = arith.constant 0 : index
    %c0_88 = arith.constant 0 : index
    %c0_89 = arith.constant 0 : index
    %197 = vector.load %arg18[%c0_87, %c0_88, %c0_89] : memref<4x8x64xf32, #tpu.memory_space<vmem>>, vector<4x8x64xf32>
    tpu.vector_store %arg18[%c0_87, %c0_88, %c0_89], %196 {strides = array<i32>} : memref<4x8x64xf32, #tpu.memory_space<vmem>>, vector<4x8x64xf32>,
    return
  }
  func.func @transform_0(%arg0: i32, %arg1: i32) -> (i32, i32, i32) {
    %c0_i32 = arith.constant 0 : i32
    %c0_i32_0 = arith.constant 0 : i32
    %c0_i32_1 = arith.constant 0 : i32
    return %arg0, %c0_i32, %c0_i32_0 : i32, i32, i32
  }
  func.func @transform_1(%arg0: i32, %arg1: i32) -> (i32, i32, i32) {
    %c0_i32 = arith.constant 0 : i32
    %c0_i32_0 = arith.constant 0 : i32
    %c0_i32_1 = arith.constant 0 : i32
    %c0_i32_2 = arith.constant 0 : i32
    return %c0_i32, %c0_i32_0, %c0_i32_1 : i32, i32, i32
  }
  func.func @transform_2(%arg0: i32, %arg1: i32) -> (i32, i32) {
    %c0_i32 = arith.constant 0 : i32
    %c0_i32_0 = arith.constant 0 : i32
    %c0_i32_1 = arith.constant 0 : i32
    return %c0_i32, %c0_i32_0 : i32, i32
  }
  func.func @transform_3(%arg0: i32, %arg1: i32) -> (i32, i32) {
    %c0_i32 = arith.constant 0 : i32
    %c0_i32_0 = arith.constant 0 : i32
    %c0_i32_1 = arith.constant 0 : i32
    return %c0_i32, %c0_i32_0 : i32, i32
  }
  func.func @transform_4(%arg0: i32, %arg1: i32) -> (i32, i32, i32) {
    %c0_i32 = arith.constant 0 : i32
    %c0_i32_0 = arith.constant 0 : i32
    %c0_i32_1 = arith.constant 0 : i32
    return %arg1, %c0_i32, %c0_i32_0 : i32, i32, i32
  }
  func.func @transform_5(%arg0: i32, %arg1: i32) -> (i32, i32, i32) {
    %c0_i32 = arith.constant 0 : i32
    %c0_i32_0 = arith.constant 0 : i32
    %c0_i32_1 = arith.constant 0 : i32
    return %arg1, %c0_i32, %c0_i32_0 : i32, i32, i32
  }
  func.func @transform_6(%arg0: i32, %arg1: i32) -> (i32, i32, i32) {
    %c0_i32 = arith.constant 0 : i32
    %c0_i32_0 = arith.constant 0 : i32
    %c0_i32_1 = arith.constant 0 : i32
    return %arg1, %c0_i32, %c0_i32_0 : i32, i32, i32
  }
  func.func @transform_7(%arg0: i32, %arg1: i32) -> (i32, i32, i32) {
    %c0_i32 = arith.constant 0 : i32
    %c0_i32_0 = arith.constant 0 : i32
    %c0_i32_1 = arith.constant 0 : i32
    return %arg1, %c0_i32, %c0_i32_0 : i32, i32, i32
  }
  func.func @transform_8(%arg0: i32, %arg1: i32) -> (i32, i32, i32) {
    %c0_i32 = arith.constant 0 : i32
    %c0_i32_0 = arith.constant 0 : i32
    %c0_i32_1 = arith.constant 0 : i32
    return %arg1, %c0_i32, %c0_i32_0 : i32, i32, i32
  }
  func.func @transform_9(%arg0: i32, %arg1: i32) -> (i32, i32, i32) {
    %c0_i32 = arith.constant 0 : i32
    %c0_i32_0 = arith.constant 0 : i32
    %c0_i32_1 = arith.constant 0 : i32
    return %arg1, %c0_i32, %c0_i32_0 : i32, i32, i32
  }
  func.func @transform_10(%arg0: i32, %arg1: i32) -> (i32, i32, i32) {
    %c0_i32 = arith.constant 0 : i32
    %c0_i32_0 = arith.constant 0 : i32
    %c0_i32_1 = arith.constant 0 : i32
    return %arg1, %c0_i32, %c0_i32_0 : i32, i32, i32
  }
  func.func @transform_11(%arg0: i32, %arg1: i32) -> (i32, i32, i32) {
    %c0_i32 = arith.constant 0 : i32
    %c0_i32_0 = arith.constant 0 : i32
    %c0_i32_1 = arith.constant 0 : i32
    return %arg1, %c0_i32, %c0_i32_0 : i32, i32, i32
  }
  func.func @transform_12(%arg0: i32, %arg1: i32) -> (i32, i32, i32) {
    %c0_i32 = arith.constant 0 : i32
    %c0_i32_0 = arith.constant 0 : i32
    %c0_i32_1 = arith.constant 0 : i32
    return %arg1, %c0_i32, %c0_i32_0 : i32, i32, i32
  }
  func.func @transform_13(%arg0: i32, %arg1: i32) -> (i32, i32, i32) {
    %c0_i32 = arith.constant 0 : i32
    %c0_i32_0 = arith.constant 0 : i32
    %c0_i32_1 = arith.constant 0 : i32
    return %arg1, %c0_i32, %c0_i32_0 : i32, i32, i32
  }
  func.func @transform_14(%arg0: i32, %arg1: i32) -> (i32, i32, i32) {
    %c0_i32 = arith.constant 0 : i32
    %c0_i32_0 = arith.constant 0 : i32
    %c0_i32_1 = arith.constant 0 : i32
    return %arg1, %c0_i32, %c0_i32_0 : i32, i32, i32
  }
  func.func @transform_15(%arg0: i32, %arg1: i32) -> (i32, i32, i32) {
    %c0_i32 = arith.constant 0 : i32
    %c0_i32_0 = arith.constant 0 : i32
    %c0_i32_1 = arith.constant 0 : i32
    return %arg1, %c0_i32, %c0_i32_0 : i32, i32, i32
  }
  func.func @transform_16(%arg0: i32, %arg1: i32) -> (i32, i32, i32) {
    %c0_i32 = arith.constant 0 : i32
    %c0_i32_0 = arith.constant 0 : i32
    %c0_i32_1 = arith.constant 0 : i32
    return %arg0, %c0_i32, %c0_i32_0 : i32, i32, i32
  }
}

</mosaic_0001>

<llo_original>
// kernel: tpu_custom_call.1
$region0: #{tpu_custom_call.1}
  #allocation0 [shape = 'u32[]', space=smem, size = 0x4, offset = 0x4, fixed_abs, tag = 'smem constant byte address 0x4 - core index']
  #allocation1 [shape = 'u32[72,128]{1,0:T(1,128)}', space=vmem, size = 0x9000, scoped, tag = 'internal scratch']
  #allocation2 [shape = 'bf16[4,8,64]{2,1,0:T(8,128)(2,1)}', space=vmem, size = 0x2000, scoped, tag = 'scratch operand']
  %s0 = inlined_call_operand.hbm [shape: f32[4,8,64], index: 0, kind: input, shape index: {}]
  %s1 = inlined_call_operand.hbm [shape: f32[1,8,64], index: 1, kind: input, shape index: {}]
  %s2 = inlined_call_operand.hbm [shape: f32[1,64], index: 2, kind: input, shape index: {}]
  %s3 = inlined_call_operand.hbm [shape: f32[1,64], index: 3, kind: input, shape index: {}]
  %s4 = inlined_call_operand.vmem [shape: bf16[2,64,192], index: 4, kind: input, shape index: {}]
  %s5 = inlined_call_operand.hbm [shape: f32[2,1,192], index: 5, kind: input, shape index: {}]
  %s6 = inlined_call_operand.vmem [shape: bf16[2,64,64], index: 6, kind: input, shape index: {}]
  %s7 = inlined_call_operand.vmem [shape: f32[2,1,64], index: 7, kind: input, shape index: {}]
  %s8 = inlined_call_operand.vmem [shape: f32[2,1,64], index: 8, kind: input, shape index: {}]
  %s9 = inlined_call_operand.vmem [shape: f32[2,1,64], index: 9, kind: input, shape index: {}]
  %s10 = inlined_call_operand.hbm [shape: bf16[2,64,128], index: 10, kind: input, shape index: {}]
  %s11 = inlined_call_operand.vmem [shape: f32[2,1,128], index: 11, kind: input, shape index: {}]
  %s12 = inlined_call_operand.vmem [shape: bf16[2,128,64], index: 12, kind: input, shape index: {}]
  %s13 = inlined_call_operand.vmem [shape: f32[2,1,64], index: 13, kind: input, shape index: {}]
  %s14 = inlined_call_operand.hbm [shape: f32[2,1,64], index: 14, kind: input, shape index: {}]
  %s15 = inlined_call_operand.vmem [shape: f32[2,1,64], index: 15, kind: input, shape index: {}]
  %s16 = inlined_call_operand.hbm [shape: f32[4,8,64], index: 16, kind: output, shape index: {}]
  %s17 = sld [smem:[#allocation0]]
  $region129: #{tpu_custom_call.1} parent=0
    _
  %s19 = ssub.s32 1, %s17
  %s20 = scalar_select 0, %s19, %s17
  $region1: #{tpu_custom_call.1} parent=0
    #allocation3 [shape = 'u8[16384]{0}', space=vmem, size = 0x4000, scoped, tag = 'input window, operand 0, single buffered']
    #allocation4 [shape = 's32[2]{0}', space=sflag, size = 0x8, scoped, tag = 'scoped memory for tpu_custom_call.1']
    #allocation5 [shape = 's32[2]{0}', space=sflag, size = 0x8, scoped, tag = 'scoped memory for tpu_custom_call.1']
    #allocation6 [shape = 'u8[4096]{0}', space=vmem, size = 0x1000, scoped, tag = 'input window, operand 1, single buffered']
    #allocation7 [shape = 's32[1]{0}', space=sflag, size = 0x4, scoped, tag = 'scoped memory for tpu_custom_call.1']
    #allocation8 [shape = 'u8[512]{0}', space=vmem, size = 0x400, scoped, tag = 'input window, operand 2, single buffered']
    #allocation9 [shape = 'u8[512]{0}', space=vmem, size = 0x400, scoped, tag = 'input window, operand 3, single buffered']
    #allocation10 [shape = 's32[1]{0}', space=sflag, size = 0x4, scoped, tag = 'scoped memory for tpu_custom_call.1']
    #allocation11 [shape = 'u8[2048]{0}', space=vmem, size = 0x800, scoped, tag = 'input window, operand 5']
    #allocation12 [shape = 'u8[32768]{0}', space=vmem, size = 0x8000, scoped, tag = 'input window, operand 10']
    #allocation13 [shape = 'u8[1024]{0}', space=vmem, size = 0x400, scoped, tag = 'input window, operand 14']
    #allocation14 [shape = 'u8[16384]{0}', space=vmem, size = 0x4000, scoped, tag = 'output window, operand 0, single buffered']
    %21 = vsyncpa [#allocation4], 0
    %22 = vsyncpa [#allocation7], 0
    %23 = vsyncpa [#allocation10], 0
    %24 = vsyncpa [#allocation5], 0
    loop: start=0, step=1, limit=4
    $region2: #{tpu_custom_call.1} parent=1 // loop_pre_header
      _
    $region3: #{tpu_custom_call.1} parent=1 // loop_header
      %s26 = sphi 0, %s30
      %p27 = scmp.ge.s32.totalorder %s26, 4
      %s33 = sphi 0, %s45
      %s34 = sphi 0, %s41
      %s35 = sphi 0, %s33
      %s36 = sphi 0, %s34
      %s37 = sphi 0, %s35
      %s38 = sphi 0, %s36
      %s48 = sphi 0, %s50
      %s51 = sphi 0, %s48
      %s52 = sphi 0, %s51
      %s68 = sphi 0, %s52
      %s72 = sphi 0, %s72
      %s74 = sphi 0, %s72
      %s75 = sphi 0, %s74
      %s89 = sphi 0, %s75
      %s93 = sphi 0, %s93
      %s95 = sphi 0, %s93
      %s96 = sphi 0, %s95
      %s110 = sphi 0, %s96
      %s114 = sphi 0, %s114
      %s116 = sphi 0, %s114
      %s117 = sphi 0, %s116
      %s131 = sphi 0, %s117
      %s137 = sphi 0, %s139
      %s140 = sphi 0, %s137
      %s141 = sphi 0, %s140
      %s157 = sphi 0, %s141
      %s163 = sphi 0, %s165
      %s166 = sphi 0, %s163
      %s167 = sphi 0, %s166
      %s183 = sphi 0, %s167
      %s189 = sphi 0, %s191
      %s192 = sphi 0, %s189
      %s193 = sphi 0, %s192
      %s209 = sphi 0, %s193
      %s215 = sphi 0, %s217
      %s218 = sphi 0, %s215
      %s219 = sphi 0, %s218
      %s235 = sphi 0, %s219
      %s241 = sphi 0, %s243
      %s244 = sphi 0, %s241
      %s245 = sphi 0, %s244
      %s261 = sphi 0, %s245
      %s267 = sphi 0, %s269
      %s270 = sphi 0, %s267
      %s271 = sphi 0, %s270
      %s287 = sphi 0, %s271
      %s293 = sphi 0, %s295
      %s296 = sphi 0, %s293
      %s297 = sphi 0, %s296
      %s313 = sphi 0, %s297
      %s319 = sphi 0, %s321
      %s322 = sphi 0, %s319
      %s323 = sphi 0, %s322
      %s339 = sphi 0, %s323
      %s345 = sphi 0, %s347
      %s348 = sphi 0, %s345
      %s349 = sphi 0, %s348
      %s365 = sphi 0, %s349
      %s371 = sphi 0, %s373
      %s374 = sphi 0, %s371
      %s375 = sphi 0, %s374
      %s391 = sphi 0, %s375
      %s397 = sphi 0, %s399
      %s400 = sphi 0, %s397
      %s401 = sphi 0, %s400
      %s417 = sphi 0, %s401
      %s423 = sphi 0, %s425
      %s426 = sphi 0, %s423
      %s427 = sphi 0, %s426
      %s443 = sphi 0, %s427
      %s449 = sphi 0, %s451
      %s452 = sphi 0, %s449
      %s453 = sphi 0, %s452
      %s469 = sphi 0, %s453
    $region4: #{tpu_custom_call.1} parent=1 // loop_header_branch
      %29 = sbr.rel (%p27) target = $region8
    $region5: #{tpu_custom_call.1} parent=1 // loop_body
      %s31 = ssub.s32 %s26, 1
      %s32 = ssub.s32 %s26, 2
      %s39 = sadd.s32 1, %s34
      %p40 = scmp.ge.s32.totalorder %s39, 2
      %s41 = scalar_select %p40, 0, %s39
      %s42 = sadd.s32 1, %s33
      %s43 = scalar_select %p40, %s42, %s33
      %p44 = scmp.ge.s32.totalorder %s43, 1
      %s45 = scalar_select %p44, 0, %s43
      %s46 = ssub.s32 %s33, %s45
      %p47 = scmp.eq.s32.totalorder %s46, 0
      %s49 = sadd.s32 %s48, 1
      %s50 = scalar_select %p47, %s48, %s49
      %p53 = pneg %p47
      %p54 = scmp.eq.s32.totalorder %s26, 1
      %p55 = por %p53, %p54
      %p56 = scmp.ne.s32.totalorder %s48, %s51
      %p57 = scmp.eq.s32.totalorder %s26, 0
      %p58 = por %p56, %p57
      %p59 = scmp.ne.s32.totalorder %s48, %s51
      %p60 = scmp.eq.s32.totalorder %s31, 1
      %p61 = por %p59, %p60
      %p62 = scmp.ne.s32.totalorder %s51, %s52
      %p63 = scmp.eq.s32.totalorder %s31, 0
      %p64 = por %p62, %p63
      %p65 = scmp.ne.s32.totalorder %s51, %s52
      %p66 = scmp.eq.s32.totalorder %s32, 1
      %p67 = por %p65, %p66
      %p69 = scmp.ne.s32.totalorder %s52, %s68
      %p70 = scmp.eq.s32.totalorder %s32, 0
      %p71 = por %p69, %p70
      %s73 = sadd.s32 %s72, 1
      %p76 = scmp.eq.s32.totalorder %s26, 1
      %p77 = scmp.ne.s32.totalorder %s72, %s74
      %p78 = scmp.eq.s32.totalorder %s26, 0
      %p79 = por %p77, %p78
      %p80 = scmp.ne.s32.totalorder %s72, %s74
      %p81 = scmp.eq.s32.totalorder %s31, 1
      %p82 = por %p80, %p81
      %p83 = scmp.ne.s32.totalorder %s74, %s75
      %p84 = scmp.eq.s32.totalorder %s31, 0
      %p85 = por %p83, %p84
      %p86 = scmp.ne.s32.totalorder %s74, %s75
      %p87 = scmp.eq.s32.totalorder %s32, 1
      %p88 = por %p86, %p87
      %p90 = scmp.ne.s32.totalorder %s75, %s89
      %p91 = scmp.eq.s32.totalorder %s32, 0
      %p92 = por %p90, %p91
      %s94 = sadd.s32 %s93, 1
      %p97 = scmp.eq.s32.totalorder %s26, 1
      %p98 = scmp.ne.s32.totalorder %s93, %s95
      %p99 = scmp.eq.s32.totalorder %s26, 0
      %p100 = por %p98, %p99
      %p101 = scmp.ne.s32.totalorder %s93, %s95
      %p102 = scmp.eq.s32.totalorder %s31, 1
      %p103 = por %p101, %p102
      %p104 = scmp.ne.s32.totalorder %s95, %s96
      %p105 = scmp.eq.s32.totalorder %s31, 0
      %p106 = por %p104, %p105
      %p107 = scmp.ne.s32.totalorder %s95, %s96
      %p108 = scmp.eq.s32.totalorder %s32, 1
      %p109 = por %p107, %p108
      %p111 = scmp.ne.s32.totalorder %s96, %s110
      %p112 = scmp.eq.s32.totalorder %s32, 0
      %p113 = por %p111, %p112
      %s115 = sadd.s32 %s114, 1
      %p118 = scmp.eq.s32.totalorder %s26, 1
      %p119 = scmp.ne.s32.totalorder %s114, %s116
      %p120 = scmp.eq.s32.totalorder %s26, 0
      %p121 = por %p119, %p120
      %p122 = scmp.ne.s32.totalorder %s114, %s116
      %p123 = scmp.eq.s32.totalorder %s31, 1
      %p124 = por %p122, %p123
      %p125 = scmp.ne.s32.totalorder %s116, %s117
      %p126 = scmp.eq.s32.totalorder %s31, 0
      %p127 = por %p125, %p126
      %p128 = scmp.ne.s32.totalorder %s116, %s117
      %p129 = scmp.eq.s32.totalorder %s32, 1
      %p130 = por %p128, %p129
      %p132 = scmp.ne.s32.totalorder %s117, %s131
      %p133 = scmp.eq.s32.totalorder %s32, 0
      %p134 = por %p132, %p133
      %s135 = ssub.s32 %s34, %s41
      %p136 = scmp.eq.s32.totalorder %s135, 0
      %s138 = sadd.s32 %s137, 1
      %s139 = scalar_select %p136, %s137, %s138
      %p142 = pneg %p136
      %p143 = scmp.eq.s32.totalorder %s26, 1
      %p144 = por %p142, %p143
      %p145 = scmp.ne.s32.totalorder %s137, %s140
      %p146 = scmp.eq.s32.totalorder %s26, 0
      %p147 = por %p145, %p146
      %p148 = scmp.ne.s32.totalorder %s137, %s140
      %p149 = scmp.eq.s32.totalorder %s31, 1
      %p150 = por %p148, %p149
      %p151 = scmp.ne.s32.totalorder %s140, %s141
      %p152 = scmp.eq.s32.totalorder %s31, 0
      %p153 = por %p151, %p152
      %p154 = scmp.ne.s32.totalorder %s140, %s141
      %p155 = scmp.eq.s32.totalorder %s32, 1
      %p156 = por %p154, %p155
      %p158 = scmp.ne.s32.totalorder %s141, %s157
      %p159 = scmp.eq.s32.totalorder %s32, 0
      %p160 = por %p158, %p159
      %s161 = ssub.s32 %s34, %s41
      %p162 = scmp.eq.s32.totalorder %s161, 0
      %s164 = sadd.s32 %s163, 1
      %s165 = scalar_select %p162, %s163, %s164
      %p168 = pneg %p162
      %p169 = scmp.eq.s32.totalorder %s26, 1
      %p170 = por %p168, %p169
      %p171 = scmp.ne.s32.totalorder %s163, %s166
      %p172 = scmp.eq.s32.totalorder %s26, 0
      %p173 = por %p171, %p172
      %p174 = scmp.ne.s32.totalorder %s163, %s166
      %p175 = scmp.eq.s32.totalorder %s31, 1
      %p176 = por %p174, %p175
      %p177 = scmp.ne.s32.totalorder %s166, %s167
      %p178 = scmp.eq.s32.totalorder %s31, 0
      %p179 = por %p177, %p178
      %p180 = scmp.ne.s32.totalorder %s166, %s167
      %p181 = scmp.eq.s32.totalorder %s32, 1
      %p182 = por %p180, %p181
      %p184 = scmp.ne.s32.totalorder %s167, %s183
      %p185 = scmp.eq.s32.totalorder %s32, 0
      %p186 = por %p184, %p185
      %s187 = ssub.s32 %s34, %s41
      %p188 = scmp.eq.s32.totalorder %s187, 0
      %s190 = sadd.s32 %s189, 1
      %s191 = scalar_select %p188, %s189, %s190
      %p194 = pneg %p188
      %p195 = scmp.eq.s32.totalorder %s26, 1
      %p196 = por %p194, %p195
      %p197 = scmp.ne.s32.totalorder %s189, %s192
      %p198 = scmp.eq.s32.totalorder %s26, 0
      %p199 = por %p197, %p198
      %p200 = scmp.ne.s32.totalorder %s189, %s192
      %p201 = scmp.eq.s32.totalorder %s31, 1
      %p202 = por %p200, %p201
      %p203 = scmp.ne.s32.totalorder %s192, %s193
      %p204 = scmp.eq.s32.totalorder %s31, 0
      %p205 = por %p203, %p204
      %p206 = scmp.ne.s32.totalorder %s192, %s193
      %p207 = scmp.eq.s32.totalorder %s32, 1
      %p208 = por %p206, %p207
      %p210 = scmp.ne.s32.totalorder %s193, %s209
      %p211 = scmp.eq.s32.totalorder %s32, 0
      %p212 = por %p210, %p211
      %s213 = ssub.s32 %s34, %s41
      %p214 = scmp.eq.s32.totalorder %s213, 0
      %s216 = sadd.s32 %s215, 1
      %s217 = scalar_select %p214, %s215, %s216
      %p220 = pneg %p214
      %p221 = scmp.eq.s32.totalorder %s26, 1
      %p222 = por %p220, %p221
      %p223 = scmp.ne.s32.totalorder %s215, %s218
      %p224 = scmp.eq.s32.totalorder %s26, 0
      %p225 = por %p223, %p224
      %p226 = scmp.ne.s32.totalorder %s215, %s218
      %p227 = scmp.eq.s32.totalorder %s31, 1
      %p228 = por %p226, %p227
      %p229 = scmp.ne.s32.totalorder %s218, %s219
      %p230 = scmp.eq.s32.totalorder %s31, 0
      %p231 = por %p229, %p230
      %p232 = scmp.ne.s32.totalorder %s218, %s219
      %p233 = scmp.eq.s32.totalorder %s32, 1
      %p234 = por %p232, %p233
      %p236 = scmp.ne.s32.totalorder %s219, %s235
      %p237 = scmp.eq.s32.totalorder %s32, 0
      %p238 = por %p236, %p237
      %s239 = ssub.s32 %s34, %s41
      %p240 = scmp.eq.s32.totalorder %s239, 0
      %s242 = sadd.s32 %s241, 1
      %s243 = scalar_select %p240, %s241, %s242
      %p246 = pneg %p240
      %p247 = scmp.eq.s32.totalorder %s26, 1
      %p248 = por %p246, %p247
      %p249 = scmp.ne.s32.totalorder %s241, %s244
      %p250 = scmp.eq.s32.totalorder %s26, 0
      %p251 = por %p249, %p250
      %p252 = scmp.ne.s32.totalorder %s241, %s244
      %p253 = scmp.eq.s32.totalorder %s31, 1
      %p254 = por %p252, %p253
      %p255 = scmp.ne.s32.totalorder %s244, %s245
      %p256 = scmp.eq.s32.totalorder %s31, 0
      %p257 = por %p255, %p256
      %p258 = scmp.ne.s32.totalorder %s244, %s245
      %p259 = scmp.eq.s32.totalorder %s32, 1
      %p260 = por %p258, %p259
      %p262 = scmp.ne.s32.totalorder %s245, %s261
      %p263 = scmp.eq.s32.totalorder %s32, 0
      %p264 = por %p262, %p263
      %s265 = ssub.s32 %s34, %s41
      %p266 = scmp.eq.s32.totalorder %s265, 0
      %s268 = sadd.s32 %s267, 1
      %s269 = scalar_select %p266, %s267, %s268
      %p272 = pneg %p266
      %p273 = scmp.eq.s32.totalorder %s26, 1
      %p274 = por %p272, %p273
      %p275 = scmp.ne.s32.totalorder %s267, %s270
      %p276 = scmp.eq.s32.totalorder %s26, 0
      %p277 = por %p275, %p276
      %p278 = scmp.ne.s32.totalorder %s267, %s270
      %p279 = scmp.eq.s32.totalorder %s31, 1
      %p280 = por %p278, %p279
      %p281 = scmp.ne.s32.totalorder %s270, %s271
      %p282 = scmp.eq.s32.totalorder %s31, 0
      %p283 = por %p281, %p282
      %p284 = scmp.ne.s32.totalorder %s270, %s271
      %p285 = scmp.eq.s32.totalorder %s32, 1
      %p286 = por %p284, %p285
      %p288 = scmp.ne.s32.totalorder %s271, %s287
      %p289 = scmp.eq.s32.totalorder %s32, 0
      %p290 = por %p288, %p289
      %s291 = ssub.s32 %s34, %s41
      %p292 = scmp.eq.s32.totalorder %s291, 0
      %s294 = sadd.s32 %s293, 1
      %s295 = scalar_select %p292, %s293, %s294
      %p298 = pneg %p292
      %p299 = scmp.eq.s32.totalorder %s26, 1
      %p300 = por %p298, %p299
      %p301 = scmp.ne.s32.totalorder %s293, %s296
      %p302 = scmp.eq.s32.totalorder %s26, 0
      %p303 = por %p301, %p302
      %p304 = scmp.ne.s32.totalorder %s293, %s296
      %p305 = scmp.eq.s32.totalorder %s31, 1
      %p306 = por %p304, %p305
      %p307 = scmp.ne.s32.totalorder %s296, %s297
      %p308 = scmp.eq.s32.totalorder %s31, 0
      %p309 = por %p307, %p308
      %p310 = scmp.ne.s32.totalorder %s296, %s297
      %p311 = scmp.eq.s32.totalorder %s32, 1
      %p312 = por %p310, %p311
      %p314 = scmp.ne.s32.totalorder %s297, %s313
      %p315 = scmp.eq.s32.totalorder %s32, 0
      %p316 = por %p314, %p315
      %s317 = ssub.s32 %s34, %s41
      %p318 = scmp.eq.s32.totalorder %s317, 0
      %s320 = sadd.s32 %s319, 1
      %s321 = scalar_select %p318, %s319, %s320
      %p324 = pneg %p318
      %p325 = scmp.eq.s32.totalorder %s26, 1
      %p326 = por %p324, %p325
      %p327 = scmp.ne.s32.totalorder %s319, %s322
      %p328 = scmp.eq.s32.totalorder %s26, 0
      %p329 = por %p327, %p328
      %p330 = scmp.ne.s32.totalorder %s319, %s322
      %p331 = scmp.eq.s32.totalorder %s31, 1
      %p332 = por %p330, %p331
      %p333 = scmp.ne.s32.totalorder %s322, %s323
      %p334 = scmp.eq.s32.totalorder %s31, 0
      %p335 = por %p333, %p334
      %p336 = scmp.ne.s32.totalorder %s322, %s323
      %p337 = scmp.eq.s32.totalorder %s32, 1
      %p338 = por %p336, %p337
      %p340 = scmp.ne.s32.totalorder %s323, %s339
      %p341 = scmp.eq.s32.totalorder %s32, 0
      %p342 = por %p340, %p341
      %s343 = ssub.s32 %s34, %s41
      %p344 = scmp.eq.s32.totalorder %s343, 0
      %s346 = sadd.s32 %s345, 1
      %s347 = scalar_select %p344, %s345, %s346
      %p350 = pneg %p344
      %p351 = scmp.eq.s32.totalorder %s26, 1
      %p352 = por %p350, %p351
      %p353 = scmp.ne.s32.totalorder %s345, %s348
      %p354 = scmp.eq.s32.totalorder %s26, 0
      %p355 = por %p353, %p354
      %p356 = scmp.ne.s32.totalorder %s345, %s348
      %p357 = scmp.eq.s32.totalorder %s31, 1
      %p358 = por %p356, %p357
      %p359 = scmp.ne.s32.totalorder %s348, %s349
      %p360 = scmp.eq.s32.totalorder %s31, 0
      %p361 = por %p359, %p360
      %p362 = scmp.ne.s32.totalorder %s348, %s349
      %p363 = scmp.eq.s32.totalorder %s32, 1
      %p364 = por %p362, %p363
      %p366 = scmp.ne.s32.totalorder %s349, %s365
      %p367 = scmp.eq.s32.totalorder %s32, 0
      %p368 = por %p366, %p367
      %s369 = ssub.s32 %s34, %s41
      %p370 = scmp.eq.s32.totalorder %s369, 0
      %s372 = sadd.s32 %s371, 1
      %s373 = scalar_select %p370, %s371, %s372
      %p376 = pneg %p370
      %p377 = scmp.eq.s32.totalorder %s26, 1
      %p378 = por %p376, %p377
      %p379 = scmp.ne.s32.totalorder %s371, %s374
      %p380 = scmp.eq.s32.totalorder %s26, 0
      %p381 = por %p379, %p380
      %p382 = scmp.ne.s32.totalorder %s371, %s374
      %p383 = scmp.eq.s32.totalorder %s31, 1
      %p384 = por %p382, %p383
      %p385 = scmp.ne.s32.totalorder %s374, %s375
      %p386 = scmp.eq.s32.totalorder %s31, 0
      %p387 = por %p385, %p386
      %p388 = scmp.ne.s32.totalorder %s374, %s375
      %p389 = scmp.eq.s32.totalorder %s32, 1
      %p390 = por %p388, %p389
      %p392 = scmp.ne.s32.totalorder %s375, %s391
      %p393 = scmp.eq.s32.totalorder %s32, 0
      %p394 = por %p392, %p393
      %s395 = ssub.s32 %s34, %s41
      %p396 = scmp.eq.s32.totalorder %s395, 0
      %s398 = sadd.s32 %s397, 1
      %s399 = scalar_select %p396, %s397, %s398
      %p402 = pneg %p396
      %p403 = scmp.eq.s32.totalorder %s26, 1
      %p404 = por %p402, %p403
      %p405 = scmp.ne.s32.totalorder %s397, %s400
      %p406 = scmp.eq.s32.totalorder %s26, 0
      %p407 = por %p405, %p406
      %p408 = scmp.ne.s32.totalorder %s397, %s400
      %p409 = scmp.eq.s32.totalorder %s31, 1
      %p410 = por %p408, %p409
      %p411 = scmp.ne.s32.totalorder %s400, %s401
      %p412 = scmp.eq.s32.totalorder %s31, 0
      %p413 = por %p411, %p412
      %p414 = scmp.ne.s32.totalorder %s400, %s401
      %p415 = scmp.eq.s32.totalorder %s32, 1
      %p416 = por %p414, %p415
      %p418 = scmp.ne.s32.totalorder %s401, %s417
      %p419 = scmp.eq.s32.totalorder %s32, 0
      %p420 = por %p418, %p419
      %s421 = ssub.s32 %s34, %s41
      %p422 = scmp.eq.s32.totalorder %s421, 0
      %s424 = sadd.s32 %s423, 1
      %s425 = scalar_select %p422, %s423, %s424
      %p428 = pneg %p422
      %p429 = scmp.eq.s32.totalorder %s26, 1
      %p430 = por %p428, %p429
      %p431 = scmp.ne.s32.totalorder %s423, %s426
      %p432 = scmp.eq.s32.totalorder %s26, 0
      %p433 = por %p431, %p432
      %p434 = scmp.ne.s32.totalorder %s423, %s426
      %p435 = scmp.eq.s32.totalorder %s31, 1
      %p436 = por %p434, %p435
      %p437 = scmp.ne.s32.totalorder %s426, %s427
      %p438 = scmp.eq.s32.totalorder %s31, 0
      %p439 = por %p437, %p438
      %p440 = scmp.ne.s32.totalorder %s426, %s427
      %p441 = scmp.eq.s32.totalorder %s32, 1
      %p442 = por %p440, %p441
      %p444 = scmp.ne.s32.totalorder %s427, %s443
      %p445 = scmp.eq.s32.totalorder %s32, 0
      %p446 = por %p444, %p445
      %s447 = ssub.s32 %s33, %s45
      %p448 = scmp.eq.s32.totalorder %s447, 0
      %s450 = sadd.s32 %s449, 1
      %s451 = scalar_select %p448, %s449, %s450
      %p454 = pneg %p448
      %p455 = scmp.eq.s32.totalorder %s26, 1
      %p456 = por %p454, %p455
      %p457 = scmp.ne.s32.totalorder %s449, %s452
      %p458 = scmp.eq.s32.totalorder %s26, 0
      %p459 = por %p457, %p458
      %p460 = scmp.ne.s32.totalorder %s449, %s452
      %p461 = scmp.eq.s32.totalorder %s31, 1
      %p462 = por %p460, %p461
      %p463 = scmp.ne.s32.totalorder %s452, %s453
      %p464 = scmp.eq.s32.totalorder %s31, 0
      %p465 = por %p463, %p464
      %p466 = scmp.ne.s32.totalorder %s452, %s453
      %p467 = scmp.eq.s32.totalorder %s32, 1
      %p468 = por %p466, %p467
      %p470 = scmp.ne.s32.totalorder %s453, %s469
      %p471 = scmp.eq.s32.totalorder %s32, 0
      %p472 = por %p470, %p471
      %p473 = scmp.le.s32.totalorder 1, %s26
      %p474 = scmp.lt.s32.totalorder %s26, 3
      %p475 = pnand %p473, %p474
      %p476 = pneg %p475
      // Predicated region
      $region9: #{tpu_custom_call.1} parent=5 // pred_check
        _
      $region10: #{tpu_custom_call.1} parent=5 // pred_check_branch
        %478 = sbr.rel (%p475) target = $region12
      $region11: #{tpu_custom_call.1} parent=5 // pred_region
        %s479 = ssub.s32 %s26, 1
        // Predicated region
        $region13: #{tpu_custom_call.1} parent=11 // pred_check
          %p480 = pneg %p64
        $region14: #{tpu_custom_call.1} parent=11 // pred_check_branch
          %482 = sbr.rel (%p480) target = $region16
        $region15: #{tpu_custom_call.1} parent=11 // pred_region
          %s483 = smul.u32 4, %s35
          %485 = vsyncadd [#allocation4], 0
          %s486 = smul.addr %s483, 8
          %s487 = scalar_lea.hbm %s0, %s486
          %s488 = sshll.u32 %s487, 4
          %s489 = int_to_ptr.hbm [resolvable:$true] %s488
          %s490 = sshll.u32 [#allocation3], 4
          %s491 = int_to_ptr.vmem [resolvable:$true] %s490
          %496 = dma.hbm_to_vmem [thread:$0]  %s489, 512, %s491, [#allocation4], 128, 128, 8
        $region16: #{tpu_custom_call.1} parent=11 // pred_fallthru
          _
        // Predicated region
        $region17: #{tpu_custom_call.1} parent=11 // pred_check
          %p497 = pneg %p85
        $region18: #{tpu_custom_call.1} parent=11 // pred_check_branch
          %499 = sbr.rel (%p497) target = $region20
        $region19: #{tpu_custom_call.1} parent=11 // pred_region
          %501 = vsyncadd [#allocation7], 0
          %s503 = sshll.u32 %s1, 4
          %s504 = int_to_ptr.hbm [resolvable:$true] %s503
          %s505 = sshll.u32 [#allocation6], 4
          %s506 = int_to_ptr.vmem [resolvable:$true] %s505
          %508 = dma.hbm_to_vmem [thread:$0]  %s504, 128, %s506, [#allocation7]
        $region20: #{tpu_custom_call.1} parent=11 // pred_fallthru
          _
        // Predicated region
        $region21: #{tpu_custom_call.1} parent=11 // pred_check
          %p509 = pneg %p106
        $region22: #{tpu_custom_call.1} parent=11 // pred_check_branch
          %511 = sbr.rel (%p509) target = $region24
        $region23: #{tpu_custom_call.1} parent=11 // pred_region
          %513 = vsyncadd [#allocation7], 0
          %s515 = sshll.u32 %s2, 4
          %s516 = int_to_ptr.hbm [resolvable:$true] %s515
          %s517 = sshll.u32 [#allocation8], 4
          %s518 = int_to_ptr.vmem [resolvable:$true] %s517
          %520 = dma.hbm_to_vmem [thread:$0]  %s516, 16, %s518, [#allocation7]
        $region24: #{tpu_custom_call.1} parent=11 // pred_fallthru
          _
        // Predicated region
        $region25: #{tpu_custom_call.1} parent=11 // pred_check
          %p521 = pneg %p127
        $region26: #{tpu_custom_call.1} parent=11 // pred_check_branch
          %523 = sbr.rel (%p521) target = $region28
        $region27: #{tpu_custom_call.1} parent=11 // pred_region
          %525 = vsyncadd [#allocation10], 0
          %s527 = sshll.u32 %s3, 4
          %s528 = int_to_ptr.hbm [resolvable:$true] %s527
          %s529 = sshll.u32 [#allocation9], 4
          %s530 = int_to_ptr.vmem [resolvable:$true] %s529
          %532 = dma.hbm_to_vmem [thread:$0]  %s528, 16, %s530, [#allocation10]
        $region28: #{tpu_custom_call.1} parent=11 // pred_fallthru
          _
      $region12: #{tpu_custom_call.1} parent=5 // pred_fallthru
        _
      %p533 = scmp.lt.s32.totalorder %s26, 2
      // Predicated region
      $region29: #{tpu_custom_call.1} parent=5 // pred_check
        %p534 = pneg %p533
      $region30: #{tpu_custom_call.1} parent=5 // pred_check_branch
        %536 = sbr.rel (%p534) target = $region32
      $region31: #{tpu_custom_call.1} parent=5 // pred_region
        // Predicated region
        $region33: #{tpu_custom_call.1} parent=31 // pred_check
          %p537 = pneg %p147
        $region34: #{tpu_custom_call.1} parent=31 // pred_check_branch
          %539 = sbr.rel (%p537) target = $region36
        $region35: #{tpu_custom_call.1} parent=31 // pred_region
          %p540 = scmp.lt.s32.totalorder %s34, 1
          %s541 = scalar_select %p540, %s34, 1
          %s542 = smul.addr %s541, 16
          %s543 = smul.addr %s542, 4
          %s544 = scalar_lea.vmem %s4, %s543
        $region36: #{tpu_custom_call.1} parent=31 // pred_fallthru
          _
        // Predicated region
        $region37: #{tpu_custom_call.1} parent=31 // pred_check
          %p545 = pneg %p173
        $region38: #{tpu_custom_call.1} parent=31 // pred_check_branch
          %547 = sbr.rel (%p545) target = $region40
        $region39: #{tpu_custom_call.1} parent=31 // pred_region
          %s548 = sand.u32 %s26, 1
          %s549 = scalar_lea.sflag [#allocation4], %s548
          %s550 = sand.u32 %s163, 1
          %s551 = smul.addr %s550, 2
          %s552 = scalar_lea.vmem [#allocation11], %s551
          %554 = vsyncadd %s549, 0
          %s555 = smul.addr %s34, 2
          %s556 = scalar_lea.hbm %s5, %s555
          %s558 = sshll.u32 %s556, 4
          %s559 = int_to_ptr.hbm [resolvable:$true] %s558
          %s560 = sshll.u32 %s552, 4
          %s561 = int_to_ptr.vmem [resolvable:$true] %s560
          %563 = dma.hbm_to_vmem [thread:$0]  %s559, 32, %s561, %s549
        $region40: #{tpu_custom_call.1} parent=31 // pred_fallthru
          _
        // Predicated region
        $region41: #{tpu_custom_call.1} parent=31 // pred_check
          %p564 = pneg %p199
        $region42: #{tpu_custom_call.1} parent=31 // pred_check_branch
          %566 = sbr.rel (%p564) target = $region44
        $region43: #{tpu_custom_call.1} parent=31 // pred_region
          %p567 = scmp.lt.s32.totalorder %s34, 1
          %s568 = scalar_select %p567, %s34, 1
          %s569 = smul.addr %s568, 8
          %s570 = smul.addr %s569, 4
          %s571 = scalar_lea.vmem %s6, %s570
        $region44: #{tpu_custom_call.1} parent=31 // pred_fallthru
          _
        // Predicated region
        $region45: #{tpu_custom_call.1} parent=31 // pred_check
          %p572 = pneg %p225
        $region46: #{tpu_custom_call.1} parent=31 // pred_check_branch
          %574 = sbr.rel (%p572) target = $region48
        $region47: #{tpu_custom_call.1} parent=31 // pred_region
          %p575 = scmp.lt.s32.totalorder %s34, 1
          %s576 = scalar_select %p575, %s34, 1
          %s577 = scalar_lea.vmem %s7, %s576
        $region48: #{tpu_custom_call.1} parent=31 // pred_fallthru
          _
        // Predicated region
        $region49: #{tpu_custom_call.1} parent=31 // pred_check
          %p578 = pneg %p251
        $region50: #{tpu_custom_call.1} parent=31 // pred_check_branch
          %580 = sbr.rel (%p578) target = $region52
        $region51: #{tpu_custom_call.1} parent=31 // pred_region
          %p581 = scmp.lt.s32.totalorder %s34, 1
          %s582 = scalar_select %p581, %s34, 1
          %s583 = scalar_lea.vmem %s8, %s582
        $region52: #{tpu_custom_call.1} parent=31 // pred_fallthru
          _
        // Predicated region
        $region53: #{tpu_custom_call.1} parent=31 // pred_check
          %p584 = pneg %p277
        $region54: #{tpu_custom_call.1} parent=31 // pred_check_branch
          %586 = sbr.rel (%p584) target = $region56
        $region55: #{tpu_custom_call.1} parent=31 // pred_region
          %p587 = scmp.lt.s32.totalorder %s34, 1
          %s588 = scalar_select %p587, %s34, 1
          %s589 = scalar_lea.vmem %s9, %s588
        $region56: #{tpu_custom_call.1} parent=31 // pred_fallthru
          _
        // Predicated region
        $region57: #{tpu_custom_call.1} parent=31 // pred_check
          %p590 = pneg %p303
        $region58: #{tpu_custom_call.1} parent=31 // pred_check_branch
          %592 = sbr.rel (%p590) target = $region60
        $region59: #{tpu_custom_call.1} parent=31 // pred_region
          %s593 = sand.u32 %s26, 1
          %s594 = scalar_lea.sflag [#allocation4], %s593
          %s595 = sand.u32 %s293, 1
          %s596 = smul.addr %s595, 32
          %s597 = scalar_lea.vmem [#allocation12], %s596
          %599 = vsyncadd %s594, 0
          %s600 = smul.addr %s34, 8
          %s601 = smul.addr %s600, 4
          %s602 = scalar_lea.hbm %s10, %s601
          %s603 = sshll.u32 %s602, 4
          %s604 = int_to_ptr.hbm [resolvable:$true] %s603
          %s605 = sshll.u32 %s597, 4
          %s606 = int_to_ptr.vmem [resolvable:$true] %s605
          %611 = dma.hbm_to_vmem [thread:$0]  %s604, 512, %s606, %s594, 64, 64, 4
        $region60: #{tpu_custom_call.1} parent=31 // pred_fallthru
          _
        // Predicated region
        $region61: #{tpu_custom_call.1} parent=31 // pred_check
          %p612 = pneg %p329
        $region62: #{tpu_custom_call.1} parent=31 // pred_check_branch
          %614 = sbr.rel (%p612) target = $region64
        $region63: #{tpu_custom_call.1} parent=31 // pred_region
          %p615 = scmp.lt.s32.totalorder %s34, 1
          %s616 = scalar_select %p615, %s34, 1
          %s617 = scalar_lea.vmem %s11, %s616
        $region64: #{tpu_custom_call.1} parent=31 // pred_fallthru
          _
        // Predicated region
        $region65: #{tpu_custom_call.1} parent=31 // pred_check
          %p618 = pneg %p355
        $region66: #{tpu_custom_call.1} parent=31 // pred_check_branch
          %620 = sbr.rel (%p618) target = $region68
        $region67: #{tpu_custom_call.1} parent=31 // pred_region
          %p621 = scmp.lt.s32.totalorder %s34, 1
          %s622 = scalar_select %p621, %s34, 1
          %s623 = smul.addr %s622, 16
          %s624 = smul.addr %s623, 4
          %s625 = scalar_lea.vmem %s12, %s624
        $region68: #{tpu_custom_call.1} parent=31 // pred_fallthru
          _
        // Predicated region
        $region69: #{tpu_custom_call.1} parent=31 // pred_check
          %p626 = pneg %p381
        $region70: #{tpu_custom_call.1} parent=31 // pred_check_branch
          %628 = sbr.rel (%p626) target = $region72
        $region71: #{tpu_custom_call.1} parent=31 // pred_region
          %p629 = scmp.lt.s32.totalorder %s34, 1
          %s630 = scalar_select %p629, %s34, 1
          %s631 = scalar_lea.vmem %s13, %s630
        $region72: #{tpu_custom_call.1} parent=31 // pred_fallthru
          _
        // Predicated region
        $region73: #{tpu_custom_call.1} parent=31 // pred_check
          %p632 = pneg %p407
        $region74: #{tpu_custom_call.1} parent=31 // pred_check_branch
          %634 = sbr.rel (%p632) target = $region76
        $region75: #{tpu_custom_call.1} parent=31 // pred_region
          %s635 = sand.u32 %s26, 1
          %s636 = scalar_lea.sflag [#allocation4], %s635
          %s637 = sand.u32 %s397, 1
          %s638 = scalar_lea.vmem [#allocation13], %s637
          %640 = vsyncadd %s636, 0
          %s641 = scalar_lea.hbm %s14, %s34
          %s643 = sshll.u32 %s641, 4
          %s644 = int_to_ptr.hbm [resolvable:$true] %s643
          %s645 = sshll.u32 %s638, 4
          %s646 = int_to_ptr.vmem [resolvable:$true] %s645
          %648 = dma.hbm_to_vmem [thread:$0]  %s644, 16, %s646, %s636
        $region76: #{tpu_custom_call.1} parent=31 // pred_fallthru
          _
        // Predicated region
        $region77: #{tpu_custom_call.1} parent=31 // pred_check
          %p649 = pneg %p433
        $region78: #{tpu_custom_call.1} parent=31 // pred_check_branch
          %651 = sbr.rel (%p649) target = $region80
        $region79: #{tpu_custom_call.1} parent=31 // pred_region
          %p652 = scmp.lt.s32.totalorder %s34, 1
          %s653 = scalar_select %p652, %s34, 1
          %s654 = scalar_lea.vmem %s15, %s653
        $region80: #{tpu_custom_call.1} parent=31 // pred_fallthru
          _
      $region32: #{tpu_custom_call.1} parent=5 // pred_fallthru
        _
      %p655 = scmp.le.s32.totalorder 1, %s26
      %p656 = scmp.lt.s32.totalorder %s26, 3
      %p657 = pnand %p655, %p656
      %p658 = pneg %p657
      // Predicated region
      $region81: #{tpu_custom_call.1} parent=5 // pred_check
        _
      $region82: #{tpu_custom_call.1} parent=5 // pred_check_branch
        %660 = sbr.rel (%p657) target = $region84
      $region83: #{tpu_custom_call.1} parent=5 // pred_region
        %s661 = ssub.s32 %s26, 1
        // Predicated region
        $region85: #{tpu_custom_call.1} parent=83 // pred_check
          %p662 = pneg %p64
        $region86: #{tpu_custom_call.1} parent=83 // pred_check_branch
          %664 = sbr.rel (%p662) target = $region88
        $region87: #{tpu_custom_call.1} parent=83 // pred_region
          %666 = dma.done [#allocation4], 512
        $region88: #{tpu_custom_call.1} parent=83 // pred_fallthru
          _
        // Predicated region
        $region89: #{tpu_custom_call.1} parent=83 // pred_check
          %p667 = pneg %p85
        $region90: #{tpu_custom_call.1} parent=83 // pred_check_branch
          %669 = sbr.rel (%p667) target = $region92
        $region91: #{tpu_custom_call.1} parent=83 // pred_region
          %671 = dma.done [#allocation7], 128
        $region92: #{tpu_custom_call.1} parent=83 // pred_fallthru
          _
        // Predicated region
        $region93: #{tpu_custom_call.1} parent=83 // pred_check
          %p672 = pneg %p106
        $region94: #{tpu_custom_call.1} parent=83 // pred_check_branch
          %674 = sbr.rel (%p672) target = $region96
        $region95: #{tpu_custom_call.1} parent=83 // pred_region
          %676 = dma.done [#allocation7], 16
        $region96: #{tpu_custom_call.1} parent=83 // pred_fallthru
          _
        // Predicated region
        $region97: #{tpu_custom_call.1} parent=83 // pred_check
          %p677 = pneg %p127
        $region98: #{tpu_custom_call.1} parent=83 // pred_check_branch
          %679 = sbr.rel (%p677) target = $region100
        $region99: #{tpu_custom_call.1} parent=83 // pred_region
          %681 = dma.done [#allocation10], 16
        $region100: #{tpu_custom_call.1} parent=83 // pred_fallthru
          _
        %s682 = sand.u32 %s31, 1
        %s683 = scalar_lea.sflag [#allocation4], %s682
        %s684 = sand.u32 %s166, 1
        %s685 = smul.addr %s684, 2
        %s686 = scalar_lea.vmem [#allocation11], %s685
        // Predicated region
        $region101: #{tpu_custom_call.1} parent=83 // pred_check
          %p687 = pneg %p179
        $region102: #{tpu_custom_call.1} parent=83 // pred_check_branch
          %689 = sbr.rel (%p687) target = $region104
        $region103: #{tpu_custom_call.1} parent=83 // pred_region
          %691 = dma.done %s683, 32
        $region104: #{tpu_custom_call.1} parent=83 // pred_fallthru
          _
        %s692 = sand.u32 %s31, 1
        %s693 = scalar_lea.sflag [#allocation4], %s692
        %s694 = sand.u32 %s296, 1
        %s695 = smul.addr %s694, 32
        %s696 = scalar_lea.vmem [#allocation12], %s695
        // Predicated region
        $region105: #{tpu_custom_call.1} parent=83 // pred_check
          %p697 = pneg %p309
        $region106: #{tpu_custom_call.1} parent=83 // pred_check_branch
          %699 = sbr.rel (%p697) target = $region108
        $region107: #{tpu_custom_call.1} parent=83 // pred_region
          %701 = dma.done %s693, 512
        $region108: #{tpu_custom_call.1} parent=83 // pred_fallthru
          _
        %s702 = sand.u32 %s31, 1
        %s703 = scalar_lea.sflag [#allocation4], %s702
        %s704 = sand.u32 %s400, 1
        %s705 = scalar_lea.vmem [#allocation13], %s704
        // Predicated region
        $region109: #{tpu_custom_call.1} parent=83 // pred_check
          %p706 = pneg %p413
        $region110: #{tpu_custom_call.1} parent=83 // pred_check_branch
          %708 = sbr.rel (%p706) target = $region112
        $region111: #{tpu_custom_call.1} parent=83 // pred_region
          %710 = dma.done %s703, 16
        $region112: #{tpu_custom_call.1} parent=83 // pred_fallthru
          _
        %p711 = pneg %p64
        %p712 = pneg %p61
        %p713 = pneg %p85
        %p714 = pneg %p82
        %p715 = pneg %p106
        %p716 = pneg %p103
        %p717 = pneg %p127
        %p718 = pneg %p124
        %p719 = scmp.lt.s32.totalorder %s36, 1
        %s720 = scalar_select %p719, %s36, 1
        %s721 = smul.addr %s720, 16
        %s722 = smul.addr %s721, 4
        %s723 = scalar_lea.vmem %s4, %s722
        %p724 = pneg %p153
        %p725 = pneg %p150
        %s726 = sand.u32 %s31, 1
        %s727 = scalar_lea.sflag [#allocation4], %s726
        %s728 = sand.u32 %s166, 1
        %s729 = smul.addr %s728, 2
        %s730 = scalar_lea.vmem [#allocation11], %s729
        %p731 = pneg %p179
        %p732 = pneg %p176
        %p733 = scmp.lt.s32.totalorder %s36, 1
        %s734 = scalar_select %p733, %s36, 1
        %s735 = smul.addr %s734, 8
        %s736 = smul.addr %s735, 4
        %s737 = scalar_lea.vmem %s6, %s736
        %p738 = pneg %p205
        %p739 = pneg %p202
        %p740 = scmp.lt.s32.totalorder %s36, 1
        %s741 = scalar_select %p740, %s36, 1
        %s742 = scalar_lea.vmem %s7, %s741
        %p743 = pneg %p231
        %p744 = pneg %p228
        %p745 = scmp.lt.s32.totalorder %s36, 1
        %s746 = scalar_select %p745, %s36, 1
        %s747 = scalar_lea.vmem %s8, %s746
        %p748 = pneg %p257
        %p749 = pneg %p254
        %p750 = scmp.lt.s32.totalorder %s36, 1
        %s751 = scalar_select %p750, %s36, 1
        %s752 = scalar_lea.vmem %s9, %s751
        %p753 = pneg %p283
        %p754 = pneg %p280
        %s755 = sand.u32 %s31, 1
        %s756 = scalar_lea.sflag [#allocation4], %s755
        %s757 = sand.u32 %s296, 1
        %s758 = smul.addr %s757, 32
        %s759 = scalar_lea.vmem [#allocation12], %s758
        %p760 = pneg %p309
        %p761 = pneg %p306
        %p762 = scmp.lt.s32.totalorder %s36, 1
        %s763 = scalar_select %p762, %s36, 1
        %s764 = scalar_lea.vmem %s11, %s763
        %p765 = pneg %p335
        %p766 = pneg %p332
        %p767 = scmp.lt.s32.totalorder %s36, 1
        %s768 = scalar_select %p767, %s36, 1
        %s769 = smul.addr %s768, 16
        %s770 = smul.addr %s769, 4
        %s771 = scalar_lea.vmem %s12, %s770
        %p772 = pneg %p361
        %p773 = pneg %p358
        %p774 = scmp.lt.s32.totalorder %s36, 1
        %s775 = scalar_select %p774, %s36, 1
        %s776 = scalar_lea.vmem %s13, %s775
        %p777 = pneg %p387
        %p778 = pneg %p384
        %s779 = sand.u32 %s31, 1
        %s780 = scalar_lea.sflag [#allocation4], %s779
        %s781 = sand.u32 %s400, 1
        %s782 = scalar_lea.vmem [#allocation13], %s781
        %p783 = pneg %p413
        %p784 = pneg %p410
        %p785 = scmp.lt.s32.totalorder %s36, 1
        %s786 = scalar_select %p785, %s36, 1
        %s787 = scalar_lea.vmem %s15, %s786
        %p788 = pneg %p439
        %p789 = pneg %p436
        %p790 = pneg %p465
        %p791 = pneg %p462
        %s792 = smul.u32 4, %s35
        %p793 = scmp.lt.s32.totalorder %s36, 1
        %s794 = scalar_select %p793, %s36, 1
        %s795 = smul.addr %s794, 16
        %s796 = smul.addr %s795, 4
        %s797 = scalar_lea.vmem %s4, %s796
        %p798 = scmp.lt.s32.totalorder %s36, 1
        %s799 = scalar_select %p798, %s36, 1
        %s800 = smul.addr %s799, 8
        %s801 = smul.addr %s800, 4
        %s802 = scalar_lea.vmem %s6, %s801
        %p803 = scmp.lt.s32.totalorder %s36, 1
        %s804 = scalar_select %p803, %s36, 1
        %s805 = scalar_lea.vmem %s7, %s804
        %p806 = scmp.lt.s32.totalorder %s36, 1
        %s807 = scalar_select %p806, %s36, 1
        %s808 = scalar_lea.vmem %s8, %s807
        %p809 = scmp.lt.s32.totalorder %s36, 1
        %s810 = scalar_select %p809, %s36, 1
        %s811 = scalar_lea.vmem %s9, %s810
        %p812 = scmp.lt.s32.totalorder %s36, 1
        %s813 = scalar_select %p812, %s36, 1
        %s814 = scalar_lea.vmem %s11, %s813
        %p815 = scmp.lt.s32.totalorder %s36, 1
        %s816 = scalar_select %p815, %s36, 1
        %s817 = smul.addr %s816, 16
        %s818 = smul.addr %s817, 4
        %s819 = scalar_lea.vmem %s12, %s818
        %p820 = scmp.lt.s32.totalorder %s36, 1
        %s821 = scalar_select %p820, %s36, 1
        %s822 = scalar_lea.vmem %s13, %s821
        %p823 = scmp.lt.s32.totalorder %s36, 1
        %s824 = scalar_select %p823, %s36, 1
        %s825 = scalar_lea.vmem %s15, %s824
        %s826 = smul.u32 4, %s35
        %p828 = scmp.eq.s32.totalorder %s36, 0
        // Predicated region
        $region113: #{tpu_custom_call.1} parent=83 // pred_check
          %p829 = pneg %p828
        $region114: #{tpu_custom_call.1} parent=83 // pred_check_branch
          %831 = sbr.rel (%p829) target = $region116
        $region115: #{tpu_custom_call.1} parent=83 // pred_region
          %v832 = vld [vmem:[#allocation3] sm:$0xff]
          %v833 = vld [vmem:[#allocation3 + $0x8] sm:$0xff]
          %v834 = vld [vmem:[#allocation3 + $0x10] sm:$0xff]
          %v835 = vld [vmem:[#allocation3 + $0x18] sm:$0xff]
          %v836 = vld [vmem:[#allocation6] sm:$0xff]
          %v837 = vadd.f32 %v832, %v836
          %v838 = vadd.f32 %v833, %v836
          %v839 = vadd.f32 %v834, %v836
          %v840 = vadd.f32 %v835, %v836
          %v841 = vld [vmem:[#allocation8] sm:$0x1]
          %v842 = vld [vmem:[#allocation9] sm:$0x1]
          %vm843 = vcmask 523264
          %v844 = vsel %vm843, %v837, 0.0
          %845 = vadd.xlane.f32.xlu0 %v844
          %v846 = vpop.xlane.xlu0 %845
          %v847 = vsel %vm843, %v838, 0.0
          %848 = vadd.xlane.f32.xlu0 %v847
          %v849 = vpop.xlane.xlu0 %848
          %v850 = vsel %vm843, %v839, 0.0
          %851 = vadd.xlane.f32.xlu0 %v850
          %v852 = vpop.xlane.xlu0 %851
          %v853 = vsel %vm843, %v840, 0.0
          %854 = vadd.xlane.f32.xlu0 %v853
          %v855 = vpop.xlane.xlu0 %854
          %v856 = vrcp.pop 64.0
          %v857 = vmul.f32 64.0, %v856
          %v858 = vsub.f32 1.0, %v857
          %v859 = vmul.f32 %v856, %v858
          %v860 = vadd.f32 %v856, %v859
          %vm861 = vweird.f32 %v856
          %v862 = vsel %vm861, %v856, %v860
          %v863 = vmul.f32 %v846, %v862
          %v864 = vmul.f32 %v849, %v862
          %v865 = vmul.f32 %v852, %v862
          %v866 = vmul.f32 %v855, %v862
          %v867 = vsub.f32 %v837, %v863
          %v868 = vsub.f32 %v838, %v864
          %v869 = vsub.f32 %v839, %v865
          %v870 = vsub.f32 %v840, %v866
          %v871 = vmul.f32 %v867, %v867
          %v872 = vmul.f32 %v868, %v868
          %v873 = vmul.f32 %v869, %v869
          %v874 = vmul.f32 %v870, %v870
          %v875 = vsel %vm843, %v871, 0.0
          %876 = vadd.xlane.f32.xlu0 %v875
          %v877 = vpop.xlane.xlu0 %876
          %v878 = vsel %vm843, %v872, 0.0
          %879 = vadd.xlane.f32.xlu0 %v878
          %v880 = vpop.xlane.xlu0 %879
          %v881 = vsel %vm843, %v873, 0.0
          %882 = vadd.xlane.f32.xlu0 %v881
          %v883 = vpop.xlane.xlu0 %882
          %v884 = vsel %vm843, %v874, 0.0
          %885 = vadd.xlane.f32.xlu0 %v884
          %v886 = vpop.xlane.xlu0 %885
          %v887 = vmul.f32 %v877, %v862
          %v888 = vmul.f32 %v880, %v862
          %v889 = vmul.f32 %v883, %v862
          %v890 = vmul.f32 %v886, %v862
          %v891 = vadd.f32 %v887, 1e-12
          %v892 = vadd.f32 %v888, 1e-12
          %v893 = vadd.f32 %v889, 1e-12
          %v894 = vadd.f32 %v890, 1e-12
          %v895 = vrsqrt.pop %v891
          %v896 = vmul.f32 %v895, %v891
          %v897 = vmul.f32 %v896, %v895
          %v898 = vmul.f32 0.5, %v897
          %v899 = vsub.f32 1.5, %v898
          %v900 = vmul.f32 %v895, %v899
          %vm901 = vweird.f32 %v891
          %vm902 = vweird.f32 %v895
          %vm903 = vmor %vm901, %vm902
          %v904 = vsel %vm903, %v895, %v900
          %v905 = vrsqrt.pop %v892
          %v906 = vmul.f32 %v905, %v892
          %v907 = vmul.f32 %v906, %v905
          %v908 = vmul.f32 0.5, %v907
          %v909 = vsub.f32 1.5, %v908
          %v910 = vmul.f32 %v905, %v909
          %vm911 = vweird.f32 %v892
          %vm912 = vweird.f32 %v905
          %vm913 = vmor %vm911, %vm912
          %v914 = vsel %vm913, %v905, %v910
          %v915 = vrsqrt.pop %v893
          %v916 = vmul.f32 %v915, %v893
          %v917 = vmul.f32 %v916, %v915
          %v918 = vmul.f32 0.5, %v917
          %v919 = vsub.f32 1.5, %v918
          %v920 = vmul.f32 %v915, %v919
          %vm921 = vweird.f32 %v893
          %vm922 = vweird.f32 %v915
          %vm923 = vmor %vm921, %vm922
          %v924 = vsel %vm923, %v915, %v920
          %v925 = vrsqrt.pop %v894
          %v926 = vmul.f32 %v925, %v894
          %v927 = vmul.f32 %v926, %v925
          %v928 = vmul.f32 0.5, %v927
          %v929 = vsub.f32 1.5, %v928
          %v930 = vmul.f32 %v925, %v929
          %vm931 = vweird.f32 %v894
          %vm932 = vweird.f32 %v925
          %vm933 = vmor %vm931, %vm932
          %v934 = vsel %vm933, %v925, %v930
          %v935 = vmul.f32 %v867, %v904
          %v936 = vmul.f32 %v868, %v914
          %v937 = vmul.f32 %v869, %v924
          %v938 = vmul.f32 %v870, %v934
          %v940 = vperm.slane %v841, 0
          %v942 = vmul.f32 %v935, %v940
          %v943 = vmul.f32 %v936, %v940
          %v944 = vmul.f32 %v937, %v940
          %v945 = vmul.f32 %v938, %v940
          %v947 = vperm.slane %v842, 0
          %v949 = vadd.f32 %v942, %v947
          %v950 = vadd.f32 %v943, %v947
          %v951 = vadd.f32 %v944, %v947
          %v952 = vadd.f32 %v945, %v947
          %953 = vst.msk [vmem:[#allocation14] sm:$0xff] %vm843, %v949
          %954 = vst.msk [vmem:[#allocation14 + $0x8] sm:$0xff] %vm843, %v950
          %955 = vst.msk [vmem:[#allocation14 + $0x10] sm:$0xff] %vm843, %v951
          %956 = vst.msk [vmem:[#allocation14 + $0x18] sm:$0xff] %vm843, %v952
        $region116: #{tpu_custom_call.1} parent=83 // pred_fallthru
          _
        %v957 = vld [vmem:[#allocation14] sm:$0xff]
        %v958 = vld [vmem:[#allocation14 + $0x8] sm:$0xff]
        %v959 = vld [vmem:[#allocation14 + $0x10] sm:$0xff]
        %v960 = vld [vmem:[#allocation14 + $0x18] sm:$0xff]
        %v961 = vpack.c.bf16 %v958, %v957
        %v962 = vpack.c.bf16 %v960, %v959
        %v963 = vld [vmem:[%s797] sm:$0xff]
        %v964 = vld [vmem:[%s797 + $0x8] sm:$0xff]
        %v965 = vld [vmem:[%s797 + $0x10] sm:$0xff]
        %v966 = vld [vmem:[%s797 + $0x18] sm:$0xff]
        %v967 = vld [vmem:[%s797 + $0x20] sm:$0xff]
        %v968 = vld [vmem:[%s797 + $0x28] sm:$0xff]
        %v969 = vld [vmem:[%s797 + $0x30] sm:$0xff]
        %v970 = vld [vmem:[%s797 + $0x38] sm:$0xff]
        %v971 = vld [vmem:[%s686] sm:$0x3]
        %v973 = vperm.slane %v971, 0
        %v974 = vperm.slane %v971, 1
        %v985 = vunpack.c.l.b16 %v963
        %v986 = vunpack.c.h.b16 %v963
        %v987 = vunpack.c.l.b16 %v964
        %v988 = vunpack.c.h.b16 %v964
        %v989 = vunpack.c.l.b16 %v965
        %v990 = vunpack.c.h.b16 %v965
        %v991 = vunpack.c.l.b16 %v966
        %v992 = vunpack.c.h.b16 %v966
        %v993 = vunpack.c.l.b16 %v967
        %v994 = vunpack.c.h.b16 %v967
        %v995 = vunpack.c.l.b16 %v968
        %v996 = vunpack.c.h.b16 %v968
        %v997 = vunpack.c.l.b16 %v969
        %v998 = vunpack.c.h.b16 %v969
        %v999 = vunpack.c.l.b16 %v970
        %v1000 = vunpack.c.h.b16 %v970
        %v1001 = vpack.c.b16 %v987, %v985
        %v1002 = vpack.c.b16 %v988, %v986
        %v1003 = vpack.c.b16 %v991, %v989
        %v1004 = vpack.c.b16 %v992, %v990
        %v1005 = vpack.c.b16 %v995, %v993
        %v1006 = vpack.c.b16 %v996, %v994
        %v1007 = vpack.c.b16 %v999, %v997
        %v1008 = vpack.c.b16 %v1000, %v998
        %vm1017 = vcmask 523264
        %v1019 = vsel %vm1017, %v961, 0
        %v1022 = vsel %vm1017, %v962, 0
        %1024 = vmatpush.bf16.msra.mxu0 0
        %1025 = vmatpush.bf16.msra.mxu0 0
        %1026 = vmatpush.bf16.msra.mxu0 0
        %1027 = vmatpush.bf16.msra.mxu0 0
        %1028 = vmatpush.bf16.msra.mxu0 %v1007
        %1029 = vmatpush.bf16.msra.mxu0 %v1005
        %1030 = vmatpush.bf16.msra.mxu0 %v1003
        %1031 = vmatpush.bf16.msra.mxu0 %v1001
        %1032 = vmatmul.bf16.gmra.mxu0 %v1019
        %v1033 = vpop.f32.mrf.mxu0
        %v1034 = vadd.f32 %v973, %v1033
        %v1035 = vpop.f32.mrf.mxu0
        %v1036 = vadd.f32 %v973, %v1035
        %1037 = vmatmul.bf16.gmra.mxu0 %v1022
        %v1038 = vpop.f32.mrf.mxu0
        %v1039 = vadd.f32 %v973, %v1038
        %v1040 = vpop.f32.mrf.mxu0
        %v1041 = vadd.f32 %v973, %v1040
        %1042 = vdwg.mxu0
        %1043 = vmatpush.bf16.msra.mxu0 0
        %1044 = vmatpush.bf16.msra.mxu0 0
        %1045 = vmatpush.bf16.msra.mxu0 0
        %1046 = vmatpush.bf16.msra.mxu0 0
        %1047 = vmatpush.bf16.msra.mxu0 %v1008
        %1048 = vmatpush.bf16.msra.mxu0 %v1006
        %1049 = vmatpush.bf16.msra.mxu0 %v1004
        %1050 = vmatpush.bf16.msra.mxu0 %v1002
        %1051 = vmatmul.bf16.gmra.mxu0 %v1019
        %v1052 = vpop.f32.mrf.mxu0
        %v1053 = vadd.f32 %v974, %v1052
        %v1054 = vpop.f32.mrf.mxu0
        %v1055 = vadd.f32 %v974, %v1054
        %1056 = vmatmul.bf16.gmra.mxu0 %v1022
        %v1057 = vpop.f32.mrf.mxu0
        %v1058 = vadd.f32 %v974, %v1057
        %v1059 = vpop.f32.mrf.mxu0
        %v1060 = vadd.f32 %v974, %v1059
        %1061 = vdwg.mxu0
        %v1062 = vpack.c.bf16 %v1034, %v1034
        %v1063 = vpack.c.bf16 %v1036, %v1036
        %v1064 = vpack.c.bf16 %v1039, %v1039
        %v1065 = vpack.c.bf16 %v1041, %v1041
        %v1066 = vpack.c.bf16 %v1053, %v1053
        %v1067 = vpack.c.bf16 %v1055, %v1055
        %v1068 = vpack.c.bf16 %v1058, %v1058
        %v1069 = vpack.c.bf16 %v1060, %v1060
        %v1071 = vunpack.c.l.b16 %v1062
        %v1072 = vpack.c.b16 %v1071, %v1071
        %1073 = vrot.lane.b32.xlu0 %v1072, 64
        %v1074 = vpop.permute.xlu0 %1073
        %vm1075 = vcmask 130048
        %v1077 = vsel %vm1075, %v1062, 0
        %v1080 = vsel %vm1075, %v1074, 0
        %1082 = vmatpush.bf16.xpose.msra.mxu0 0
        %1083 = vmatpush.bf16.xpose.msra.mxu0 0
        %1084 = vmatpush.bf16.xpose.msra.mxu0 0
        %1085 = vmatpush.bf16.xpose.msra.mxu0 0
        %1086 = vmatpush.bf16.xpose.msra.mxu0 0
        %1087 = vmatpush.bf16.xpose.msra.mxu0 0
        %1088 = vmatpush.bf16.xpose.msra.mxu0 0
        %1089 = vmatpush.bf16.xpose.msra.mxu0 %v1080
        %1090 = vmatmul.bf16.gmra.mxu0 %v1077
        %v1091 = vpop.f32.mrf.mxu0
        %v1092 = vadd.f32 0.0, %v1091
        %v1093 = vpop.f32.mrf.mxu0
        %1094 = vdwg.mxu0
        %v1096 = vunpack.c.l.b16 %v1063
        %v1097 = vpack.c.b16 %v1096, %v1096
        %1098 = vrot.lane.b32.xlu0 %v1097, 64
        %v1099 = vpop.permute.xlu0 %1098
        %v1101 = vsel %vm1075, %v1063, 0
        %v1104 = vsel %vm1075, %v1099, 0
        %1106 = vmatpush.bf16.xpose.msra.mxu0 0
        %1107 = vmatpush.bf16.xpose.msra.mxu0 0
        %1108 = vmatpush.bf16.xpose.msra.mxu0 0
        %1109 = vmatpush.bf16.xpose.msra.mxu0 0
        %1110 = vmatpush.bf16.xpose.msra.mxu0 0
        %1111 = vmatpush.bf16.xpose.msra.mxu0 0
        %1112 = vmatpush.bf16.xpose.msra.mxu0 0
        %1113 = vmatpush.bf16.xpose.msra.mxu0 %v1104
        %1114 = vmatmul.bf16.gmra.mxu0 %v1101
        %v1115 = vpop.f32.mrf.mxu0
        %v1116 = vadd.f32 0.0, %v1115
        %v1117 = vpop.f32.mrf.mxu0
        %1118 = vdwg.mxu0
        %v1120 = vunpack.c.l.b16 %v1064
        %v1121 = vpack.c.b16 %v1120, %v1120
        %1122 = vrot.lane.b32.xlu0 %v1121, 64
        %v1123 = vpop.permute.xlu0 %1122
        %v1125 = vsel %vm1075, %v1064, 0
        %v1128 = vsel %vm1075, %v1123, 0
        %1130 = vmatpush.bf16.xpose.msra.mxu0 0
        %1131 = vmatpush.bf16.xpose.msra.mxu0 0
        %1132 = vmatpush.bf16.xpose.msra.mxu0 0
        %1133 = vmatpush.bf16.xpose.msra.mxu0 0
        %1134 = vmatpush.bf16.xpose.msra.mxu0 0
        %1135 = vmatpush.bf16.xpose.msra.mxu0 0
        %1136 = vmatpush.bf16.xpose.msra.mxu0 0
        %1137 = vmatpush.bf16.xpose.msra.mxu0 %v1128
        %1138 = vmatmul.bf16.gmra.mxu0 %v1125
        %v1139 = vpop.f32.mrf.mxu0
        %v1140 = vadd.f32 0.0, %v1139
        %v1141 = vpop.f32.mrf.mxu0
        %1142 = vdwg.mxu0
        %v1144 = vunpack.c.l.b16 %v1065
        %v1145 = vpack.c.b16 %v1144, %v1144
        %1146 = vrot.lane.b32.xlu0 %v1145, 64
        %v1147 = vpop.permute.xlu0 %1146
        %v1149 = vsel %vm1075, %v1065, 0
        %v1152 = vsel %vm1075, %v1147, 0
        %1154 = vmatpush.bf16.xpose.msra.mxu0 0
        %1155 = vmatpush.bf16.xpose.msra.mxu0 0
        %1156 = vmatpush.bf16.xpose.msra.mxu0 0
        %1157 = vmatpush.bf16.xpose.msra.mxu0 0
        %1158 = vmatpush.bf16.xpose.msra.mxu0 0
        %1159 = vmatpush.bf16.xpose.msra.mxu0 0
        %1160 = vmatpush.bf16.xpose.msra.mxu0 0
        %1161 = vmatpush.bf16.xpose.msra.mxu0 %v1152
        %1162 = vmatmul.bf16.gmra.mxu0 %v1149
        %v1163 = vpop.f32.mrf.mxu0
        %v1164 = vadd.f32 0.0, %v1163
        %v1165 = vpop.f32.mrf.mxu0
        %1166 = vdwg.mxu0
        %v1167 = vmul.f32 %v1092, 0.25
        %v1168 = vmul.f32 %v1116, 0.25
        %v1169 = vmul.f32 %v1140, 0.25
        %v1170 = vmul.f32 %v1164, 0.25
        %vm1171 = vcmask 64512
        %v1172 = vsel %vm1171, %v1167, -inf
        %1173 = vmax.xlane.f32.xlu0 %v1172
        %v1174 = vpop.xlane.xlu0 %1173
        %v1175 = vsel %vm1171, %v1168, -inf
        %1176 = vmax.xlane.f32.xlu0 %v1175
        %v1177 = vpop.xlane.xlu0 %1176
        %v1178 = vsel %vm1171, %v1169, -inf
        %1179 = vmax.xlane.f32.xlu0 %v1178
        %v1180 = vpop.xlane.xlu0 %1179
        %v1181 = vsel %vm1171, %v1170, -inf
        %1182 = vmax.xlane.f32.xlu0 %v1181
        %v1183 = vpop.xlane.xlu0 %1182
        %v1184 = vsub.f32 %v1167, %v1174
        %v1185 = vsub.f32 %v1168, %v1177
        %v1186 = vsub.f32 %v1169, %v1180
        %v1187 = vsub.f32 %v1170, %v1183
        %v1188 = vmul.f32 %v1184, 1.442695
        %v1189 = vpow.pop %v1188
        %v1190 = vmul.f32 %v1185, 1.442695
        %v1191 = vpow.pop %v1190
        %v1192 = vmul.f32 %v1186, 1.442695
        %v1193 = vpow.pop %v1192
        %v1194 = vmul.f32 %v1187, 1.442695
        %v1195 = vpow.pop %v1194
        %v1196 = vsel %vm1171, %v1189, 0.0
        %1197 = vadd.xlane.f32.xlu0 %v1196
        %v1198 = vpop.xlane.xlu0 %1197
        %v1199 = vsel %vm1171, %v1191, 0.0
        %1200 = vadd.xlane.f32.xlu0 %v1199
        %v1201 = vpop.xlane.xlu0 %1200
        %v1202 = vsel %vm1171, %v1193, 0.0
        %1203 = vadd.xlane.f32.xlu0 %v1202
        %v1204 = vpop.xlane.xlu0 %1203
        %v1205 = vsel %vm1171, %v1195, 0.0
        %1206 = vadd.xlane.f32.xlu0 %v1205
        %v1207 = vpop.xlane.xlu0 %1206
        %v1208 = vrcp.pop %v1198
        %v1209 = vrcp.pop %v1201
        %v1210 = vrcp.pop %v1204
        %v1211 = vrcp.pop %v1207
        %v1212 = vmul.f32 %v1189, %v1208
        %v1213 = vmul.f32 %v1191, %v1209
        %v1214 = vmul.f32 %v1193, %v1210
        %v1215 = vmul.f32 %v1195, %v1211
        %v1216 = vpack.c.bf16 %v1212, %v1212
        %v1217 = vpack.c.bf16 %v1213, %v1213
        %v1218 = vpack.c.bf16 %v1214, %v1214
        %v1219 = vpack.c.bf16 %v1215, %v1215
        %v1221 = vsel %vm1171, %v1216, 0
        %vm1223 = vcmask 1043456
        %v1225 = vsel %vm1223, %v1066, 0
        %1227 = vmatpush.bf16.msra.mxu0 0
        %1228 = vmatpush.bf16.msra.mxu0 0
        %1229 = vmatpush.bf16.msra.mxu0 0
        %1230 = vmatpush.bf16.msra.mxu0 0
        %1231 = vmatpush.bf16.msra.mxu0 0
        %1232 = vmatpush.bf16.msra.mxu0 0
        %1233 = vmatpush.bf16.msra.mxu0 0
        %1234 = vmatpush.bf16.msra.mxu0 %v1225
        %1235 = vmatmul.bf16.gmra.mxu0 %v1221
        %v1236 = vpop.f32.mrf.mxu0
        %v1237 = vadd.f32 0.0, %v1236
        %v1238 = vpop.f32.mrf.mxu0
        %1239 = vdwg.mxu0
        %v1241 = vsel %vm1171, %v1217, 0
        %v1244 = vsel %vm1223, %v1067, 0
        %1246 = vmatpush.bf16.msra.mxu0 0
        %1247 = vmatpush.bf16.msra.mxu0 0
        %1248 = vmatpush.bf16.msra.mxu0 0
        %1249 = vmatpush.bf16.msra.mxu0 0
        %1250 = vmatpush.bf16.msra.mxu0 0
        %1251 = vmatpush.bf16.msra.mxu0 0
        %1252 = vmatpush.bf16.msra.mxu0 0
        %1253 = vmatpush.bf16.msra.mxu0 %v1244
        %1254 = vmatmul.bf16.gmra.mxu0 %v1241
        %v1255 = vpop.f32.mrf.mxu0
        %v1256 = vadd.f32 0.0, %v1255
        %v1257 = vpop.f32.mrf.mxu0
        %1258 = vdwg.mxu0
        %v1260 = vsel %vm1171, %v1218, 0
        %v1263 = vsel %vm1223, %v1068, 0
        %1265 = vmatpush.bf16.msra.mxu0 0
        %1266 = vmatpush.bf16.msra.mxu0 0
        %1267 = vmatpush.bf16.msra.mxu0 0
        %1268 = vmatpush.bf16.msra.mxu0 0
        %1269 = vmatpush.bf16.msra.mxu0 0
        %1270 = vmatpush.bf16.msra.mxu0 0
        %1271 = vmatpush.bf16.msra.mxu0 0
        %1272 = vmatpush.bf16.msra.mxu0 %v1263
        %1273 = vmatmul.bf16.gmra.mxu0 %v1260
        %v1274 = vpop.f32.mrf.mxu0
        %v1275 = vadd.f32 0.0, %v1274
        %v1276 = vpop.f32.mrf.mxu0
        %1277 = vdwg.mxu0
        %v1279 = vsel %vm1171, %v1219, 0
        %v1282 = vsel %vm1223, %v1069, 0
        %1284 = vmatpush.bf16.msra.mxu0 0
        %1285 = vmatpush.bf16.msra.mxu0 0
        %1286 = vmatpush.bf16.msra.mxu0 0
        %1287 = vmatpush.bf16.msra.mxu0 0
        %1288 = vmatpush.bf16.msra.mxu0 0
        %1289 = vmatpush.bf16.msra.mxu0 0
        %1290 = vmatpush.bf16.msra.mxu0 0
        %1291 = vmatpush.bf16.msra.mxu0 %v1282
        %1292 = vmatmul.bf16.gmra.mxu0 %v1279
        %v1293 = vpop.f32.mrf.mxu0
        %v1294 = vadd.f32 0.0, %v1293
        %v1295 = vpop.f32.mrf.mxu0
        %1296 = vdwg.mxu0
        %v1297 = vpack.c.bf16 %v1237, %v1237
        %v1298 = vpack.c.bf16 %v1256, %v1256
        %v1299 = vpack.c.bf16 %v1275, %v1275
        %v1300 = vpack.c.bf16 %v1294, %v1294
        %vm1301 = vcmask 125952
        %1302 = vst.msk [vmem:[#allocation2] sm:$0xf] %vm1301, %v1297
        %1303 = vst.msk [vmem:[#allocation2 + $0x4] sm:$0xf] %vm1301, %v1298
        %1304 = vst.msk [vmem:[#allocation2 + $0x8] sm:$0xf] %vm1301, %v1299
        %1305 = vst.msk [vmem:[#allocation2 + $0xc] sm:$0xf] %vm1301, %v1300
        %1306 = vrot.lane.b32.xlu0 %v1072, 112
        %v1307 = vpop.permute.xlu0 %1306
        %1308 = vrot.lane.b32.xlu0 %v1072, 48
        %v1309 = vpop.permute.xlu0 %1308
        %v1311 = vsel %vm1075, %v1307, 0
        %v1314 = vsel %vm1075, %v1309, 0
        %1316 = vmatpush.bf16.xpose.msra.mxu0 0
        %1317 = vmatpush.bf16.xpose.msra.mxu0 0
        %1318 = vmatpush.bf16.xpose.msra.mxu0 0
        %1319 = vmatpush.bf16.xpose.msra.mxu0 0
        %1320 = vmatpush.bf16.xpose.msra.mxu0 0
        %1321 = vmatpush.bf16.xpose.msra.mxu0 0
        %1322 = vmatpush.bf16.xpose.msra.mxu0 0
        %1323 = vmatpush.bf16.xpose.msra.mxu0 %v1314
        %1324 = vmatmul.bf16.gmra.mxu0 %v1311
        %v1325 = vpop.f32.mrf.mxu0
        %v1326 = vadd.f32 0.0, %v1325
        %v1327 = vpop.f32.mrf.mxu0
        %1328 = vdwg.mxu0
        %1329 = vrot.lane.b32.xlu0 %v1097, 112
        %v1330 = vpop.permute.xlu0 %1329
        %1331 = vrot.lane.b32.xlu0 %v1097, 48
        %v1332 = vpop.permute.xlu0 %1331
        %v1334 = vsel %vm1075, %v1330, 0
        %v1337 = vsel %vm1075, %v1332, 0
        %1339 = vmatpush.bf16.xpose.msra.mxu0 0
        %1340 = vmatpush.bf16.xpose.msra.mxu0 0
        %1341 = vmatpush.bf16.xpose.msra.mxu0 0
        %1342 = vmatpush.bf16.xpose.msra.mxu0 0
        %1343 = vmatpush.bf16.xpose.msra.mxu0 0
        %1344 = vmatpush.bf16.xpose.msra.mxu0 0
        %1345 = vmatpush.bf16.xpose.msra.mxu0 0
        %1346 = vmatpush.bf16.xpose.msra.mxu0 %v1337
        %1347 = vmatmul.bf16.gmra.mxu0 %v1334
        %v1348 = vpop.f32.mrf.mxu0
        %v1349 = vadd.f32 0.0, %v1348
        %v1350 = vpop.f32.mrf.mxu0
        %1351 = vdwg.mxu0
        %1352 = vrot.lane.b32.xlu0 %v1121, 112
        %v1353 = vpop.permute.xlu0 %1352
        %1354 = vrot.lane.b32.xlu0 %v1121, 48
        %v1355 = vpop.permute.xlu0 %1354
        %v1357 = vsel %vm1075, %v1353, 0
        %v1360 = vsel %vm1075, %v1355, 0
        %1362 = vmatpush.bf16.xpose.msra.mxu0 0
        %1363 = vmatpush.bf16.xpose.msra.mxu0 0
        %1364 = vmatpush.bf16.xpose.msra.mxu0 0
        %1365 = vmatpush.bf16.xpose.msra.mxu0 0
        %1366 = vmatpush.bf16.xpose.msra.mxu0 0
        %1367 = vmatpush.bf16.xpose.msra.mxu0 0
        %1368 = vmatpush.bf16.xpose.msra.mxu0 0
        %1369 = vmatpush.bf16.xpose.msra.mxu0 %v1360
        %1370 = vmatmul.bf16.gmra.mxu0 %v1357
        %v1371 = vpop.f32.mrf.mxu0
        %v1372 = vadd.f32 0.0, %v1371
        %v1373 = vpop.f32.mrf.mxu0
        %1374 = vdwg.mxu0
        %1375 = vrot.lane.b32.xlu0 %v1145, 112
        %v1376 = vpop.permute.xlu0 %1375
        %1377 = vrot.lane.b32.xlu0 %v1145, 48
        %v1378 = vpop.permute.xlu0 %1377
        %v1380 = vsel %vm1075, %v1376, 0
        %v1383 = vsel %vm1075, %v1378, 0
        %1385 = vmatpush.bf16.xpose.msra.mxu0 0
        %1386 = vmatpush.bf16.xpose.msra.mxu0 0
        %1387 = vmatpush.bf16.xpose.msra.mxu0 0
        %1388 = vmatpush.bf16.xpose.msra.mxu0 0
        %1389 = vmatpush.bf16.xpose.msra.mxu0 0
        %1390 = vmatpush.bf16.xpose.msra.mxu0 0
        %1391 = vmatpush.bf16.xpose.msra.mxu0 0
        %1392 = vmatpush.bf16.xpose.msra.mxu0 %v1383
        %1393 = vmatmul.bf16.gmra.mxu0 %v1380
        %v1394 = vpop.f32.mrf.mxu0
        %v1395 = vadd.f32 0.0, %v1394
        %v1396 = vpop.f32.mrf.mxu0
        %1397 = vdwg.mxu0
        %v1398 = vmul.f32 %v1326, 0.25
        %v1399 = vmul.f32 %v1349, 0.25
        %v1400 = vmul.f32 %v1372, 0.25
        %v1401 = vmul.f32 %v1395, 0.25
        %v1402 = vsel %vm1171, %v1398, -inf
        %1403 = vmax.xlane.f32.xlu0 %v1402
        %v1404 = vpop.xlane.xlu0 %1403
        %v1405 = vsel %vm1171, %v1399, -inf
        %1406 = vmax.xlane.f32.xlu0 %v1405
        %v1407 = vpop.xlane.xlu0 %1406
        %v1408 = vsel %vm1171, %v1400, -inf
        %1409 = vmax.xlane.f32.xlu0 %v1408
        %v1410 = vpop.xlane.xlu0 %1409
        %v1411 = vsel %vm1171, %v1401, -inf
        %1412 = vmax.xlane.f32.xlu0 %v1411
        %v1413 = vpop.xlane.xlu0 %1412
        %v1414 = vsub.f32 %v1398, %v1404
        %v1415 = vsub.f32 %v1399, %v1407
        %v1416 = vsub.f32 %v1400, %v1410
        %v1417 = vsub.f32 %v1401, %v1413
        %v1418 = vmul.f32 %v1414, 1.442695
        %v1419 = vpow.pop %v1418
        %v1420 = vmul.f32 %v1415, 1.442695
        %v1421 = vpow.pop %v1420
        %v1422 = vmul.f32 %v1416, 1.442695
        %v1423 = vpow.pop %v1422
        %v1424 = vmul.f32 %v1417, 1.442695
        %v1425 = vpow.pop %v1424
        %v1426 = vsel %vm1171, %v1419, 0.0
        %1427 = vadd.xlane.f32.xlu0 %v1426
        %v1428 = vpop.xlane.xlu0 %1427
        %v1429 = vsel %vm1171, %v1421, 0.0
        %1430 = vadd.xlane.f32.xlu0 %v1429
        %v1431 = vpop.xlane.xlu0 %1430
        %v1432 = vsel %vm1171, %v1423, 0.0
        %1433 = vadd.xlane.f32.xlu0 %v1432
        %v1434 = vpop.xlane.xlu0 %1433
        %v1435 = vsel %vm1171, %v1425, 0.0
        %1436 = vadd.xlane.f32.xlu0 %v1435
        %v1437 = vpop.xlane.xlu0 %1436
        %v1438 = vrcp.pop %v1428
        %v1439 = vrcp.pop %v1431
        %v1440 = vrcp.pop %v1434
        %v1441 = vrcp.pop %v1437
        %v1442 = vmul.f32 %v1419, %v1438
        %v1443 = vmul.f32 %v1421, %v1439
        %v1444 = vmul.f32 %v1423, %v1440
        %v1445 = vmul.f32 %v1425, %v1441
        %v1446 = vpack.c.bf16 %v1442, %v1442
        %v1447 = vpack.c.bf16 %v1443, %v1443
        %v1448 = vpack.c.bf16 %v1444, %v1444
        %v1449 = vpack.c.bf16 %v1445, %v1445
        %v1451 = vunpack.c.l.b16 %v1066
        %v1452 = vpack.c.b16 %v1451, %v1451
        %1453 = vrot.lane.b32.xlu0 %v1452, 112
        %v1454 = vpop.permute.xlu0 %1453
        %v1456 = vsel %vm1171, %v1446, 0
        %v1459 = vsel %vm1223, %v1454, 0
        %1461 = vmatpush.bf16.msra.mxu0 0
        %1462 = vmatpush.bf16.msra.mxu0 0
        %1463 = vmatpush.bf16.msra.mxu0 0
        %1464 = vmatpush.bf16.msra.mxu0 0
        %1465 = vmatpush.bf16.msra.mxu0 0
        %1466 = vmatpush.bf16.msra.mxu0 0
        %1467 = vmatpush.bf16.msra.mxu0 0
        %1468 = vmatpush.bf16.msra.mxu0 %v1459
        %1469 = vmatmul.bf16.gmra.mxu0 %v1456
        %v1470 = vpop.f32.mrf.mxu0
        %v1471 = vadd.f32 0.0, %v1470
        %v1472 = vpop.f32.mrf.mxu0
        %1473 = vdwg.mxu0
        %v1475 = vunpack.c.l.b16 %v1067
        %v1476 = vpack.c.b16 %v1475, %v1475
        %1477 = vrot.lane.b32.xlu0 %v1476, 112
        %v1478 = vpop.permute.xlu0 %1477
        %v1480 = vsel %vm1171, %v1447, 0
        %v1483 = vsel %vm1223, %v1478, 0
        %1485 = vmatpush.bf16.msra.mxu0 0
        %1486 = vmatpush.bf16.msra.mxu0 0
        %1487 = vmatpush.bf16.msra.mxu0 0
        %1488 = vmatpush.bf16.msra.mxu0 0
        %1489 = vmatpush.bf16.msra.mxu0 0
        %1490 = vmatpush.bf16.msra.mxu0 0
        %1491 = vmatpush.bf16.msra.mxu0 0
        %1492 = vmatpush.bf16.msra.mxu0 %v1483
        %1493 = vmatmul.bf16.gmra.mxu0 %v1480
        %v1494 = vpop.f32.mrf.mxu0
        %v1495 = vadd.f32 0.0, %v1494
        %v1496 = vpop.f32.mrf.mxu0
        %1497 = vdwg.mxu0
        %v1499 = vunpack.c.l.b16 %v1068
        %v1500 = vpack.c.b16 %v1499, %v1499
        %1501 = vrot.lane.b32.xlu0 %v1500, 112
        %v1502 = vpop.permute.xlu0 %1501
        %v1504 = vsel %vm1171, %v1448, 0
        %v1507 = vsel %vm1223, %v1502, 0
        %1509 = vmatpush.bf16.msra.mxu0 0
        %1510 = vmatpush.bf16.msra.mxu0 0
        %1511 = vmatpush.bf16.msra.mxu0 0
        %1512 = vmatpush.bf16.msra.mxu0 0
        %1513 = vmatpush.bf16.msra.mxu0 0
        %1514 = vmatpush.bf16.msra.mxu0 0
        %1515 = vmatpush.bf16.msra.mxu0 0
        %1516 = vmatpush.bf16.msra.mxu0 %v1507
        %1517 = vmatmul.bf16.gmra.mxu0 %v1504
        %v1518 = vpop.f32.mrf.mxu0
        %v1519 = vadd.f32 0.0, %v1518
        %v1520 = vpop.f32.mrf.mxu0
        %1521 = vdwg.mxu0
        %v1523 = vunpack.c.l.b16 %v1069
        %v1524 = vpack.c.b16 %v1523, %v1523
        %1525 = vrot.lane.b32.xlu0 %v1524, 112
        %v1526 = vpop.permute.xlu0 %1525
        %v1528 = vsel %vm1171, %v1449, 0
        %v1531 = vsel %vm1223, %v1526, 0
        %1533 = vmatpush.bf16.msra.mxu0 0
        %1534 = vmatpush.bf16.msra.mxu0 0
        %1535 = vmatpush.bf16.msra.mxu0 0
        %1536 = vmatpush.bf16.msra.mxu0 0
        %1537 = vmatpush.bf16.msra.mxu0 0
        %1538 = vmatpush.bf16.msra.mxu0 0
        %1539 = vmatpush.bf16.msra.mxu0 0
        %1540 = vmatpush.bf16.msra.mxu0 %v1531
        %1541 = vmatmul.bf16.gmra.mxu0 %v1528
        %v1542 = vpop.f32.mrf.mxu0
        %v1543 = vadd.f32 0.0, %v1542
        %v1544 = vpop.f32.mrf.mxu0
        %1545 = vdwg.mxu0
        %v1546 = vpack.c.bf16 %v1471, %v1471
        %v1547 = vpack.c.bf16 %v1495, %v1495
        %v1548 = vpack.c.bf16 %v1519, %v1519
        %v1549 = vpack.c.bf16 %v1543, %v1543
        %1554 = vrot.lane.b32.xlu0 %v1546, 16
        %v1555 = vpop.permute.xlu0 %1554
        %1556 = vrot.lane.b32.xlu0 %v1547, 16
        %v1557 = vpop.permute.xlu0 %1556
        %1558 = vrot.lane.b32.xlu0 %v1548, 16
        %v1559 = vpop.permute.xlu0 %1558
        %1560 = vrot.lane.b32.xlu0 %v1549, 16
        %v1561 = vpop.permute.xlu0 %1560
        %vm1566 = vcmask 257152
        %1567 = vst.msk [vmem:[#allocation2] sm:$0xf] %vm1566, %v1555
        %1568 = vst.msk [vmem:[#allocation2 + $0x4] sm:$0xf] %vm1566, %v1557
        %1569 = vst.msk [vmem:[#allocation2 + $0x8] sm:$0xf] %vm1566, %v1559
        %1570 = vst.msk [vmem:[#allocation2 + $0xc] sm:$0xf] %vm1566, %v1561
        %1571 = vrot.lane.b32.xlu0 %v1072, 96
        %v1572 = vpop.permute.xlu0 %1571
        %1573 = vrot.lane.b32.xlu0 %v1072, 32
        %v1574 = vpop.permute.xlu0 %1573
        %v1576 = vsel %vm1075, %v1572, 0
        %v1579 = vsel %vm1075, %v1574, 0
        %1581 = vmatpush.bf16.xpose.msra.mxu0 0
        %1582 = vmatpush.bf16.xpose.msra.mxu0 0
        %1583 = vmatpush.bf16.xpose.msra.mxu0 0
        %1584 = vmatpush.bf16.xpose.msra.mxu0 0
        %1585 = vmatpush.bf16.xpose.msra.mxu0 0
        %1586 = vmatpush.bf16.xpose.msra.mxu0 0
        %1587 = vmatpush.bf16.xpose.msra.mxu0 0
        %1588 = vmatpush.bf16.xpose.msra.mxu0 %v1579
        %1589 = vmatmul.bf16.gmra.mxu0 %v1576
        %v1590 = vpop.f32.mrf.mxu0
        %v1591 = vadd.f32 0.0, %v1590
        %v1592 = vpop.f32.mrf.mxu0
        %1593 = vdwg.mxu0
        %1594 = vrot.lane.b32.xlu0 %v1097, 96
        %v1595 = vpop.permute.xlu0 %1594
        %1596 = vrot.lane.b32.xlu0 %v1097, 32
        %v1597 = vpop.permute.xlu0 %1596
        %v1599 = vsel %vm1075, %v1595, 0
        %v1602 = vsel %vm1075, %v1597, 0
        %1604 = vmatpush.bf16.xpose.msra.mxu0 0
        %1605 = vmatpush.bf16.xpose.msra.mxu0 0
        %1606 = vmatpush.bf16.xpose.msra.mxu0 0
        %1607 = vmatpush.bf16.xpose.msra.mxu0 0
        %1608 = vmatpush.bf16.xpose.msra.mxu0 0
        %1609 = vmatpush.bf16.xpose.msra.mxu0 0
        %1610 = vmatpush.bf16.xpose.msra.mxu0 0
        %1611 = vmatpush.bf16.xpose.msra.mxu0 %v1602
        %1612 = vmatmul.bf16.gmra.mxu0 %v1599
        %v1613 = vpop.f32.mrf.mxu0
        %v1614 = vadd.f32 0.0, %v1613
        %v1615 = vpop.f32.mrf.mxu0
        %1616 = vdwg.mxu0
        %1617 = vrot.lane.b32.xlu0 %v1121, 96
        %v1618 = vpop.permute.xlu0 %1617
        %1619 = vrot.lane.b32.xlu0 %v1121, 32
        %v1620 = vpop.permute.xlu0 %1619
        %v1622 = vsel %vm1075, %v1618, 0
        %v1625 = vsel %vm1075, %v1620, 0
        %1627 = vmatpush.bf16.xpose.msra.mxu0 0
        %1628 = vmatpush.bf16.xpose.msra.mxu0 0
        %1629 = vmatpush.bf16.xpose.msra.mxu0 0
        %1630 = vmatpush.bf16.xpose.msra.mxu0 0
        %1631 = vmatpush.bf16.xpose.msra.mxu0 0
        %1632 = vmatpush.bf16.xpose.msra.mxu0 0
        %1633 = vmatpush.bf16.xpose.msra.mxu0 0
        %1634 = vmatpush.bf16.xpose.msra.mxu0 %v1625
        %1635 = vmatmul.bf16.gmra.mxu0 %v1622
        %v1636 = vpop.f32.mrf.mxu0
        %v1637 = vadd.f32 0.0, %v1636
        %v1638 = vpop.f32.mrf.mxu0
        %1639 = vdwg.mxu0
        %1640 = vrot.lane.b32.xlu0 %v1145, 96
        %v1641 = vpop.permute.xlu0 %1640
        %1642 = vrot.lane.b32.xlu0 %v1145, 32
        %v1643 = vpop.permute.xlu0 %1642
        %v1645 = vsel %vm1075, %v1641, 0
        %v1648 = vsel %vm1075, %v1643, 0
        %1650 = vmatpush.bf16.xpose.msra.mxu0 0
        %1651 = vmatpush.bf16.xpose.msra.mxu0 0
        %1652 = vmatpush.bf16.xpose.msra.mxu0 0
        %1653 = vmatpush.bf16.xpose.msra.mxu0 0
        %1654 = vmatpush.bf16.xpose.msra.mxu0 0
        %1655 = vmatpush.bf16.xpose.msra.mxu0 0
        %1656 = vmatpush.bf16.xpose.msra.mxu0 0
        %1657 = vmatpush.bf16.xpose.msra.mxu0 %v1648
        %1658 = vmatmul.bf16.gmra.mxu0 %v1645
        %v1659 = vpop.f32.mrf.mxu0
        %v1660 = vadd.f32 0.0, %v1659
        %v1661 = vpop.f32.mrf.mxu0
        %1662 = vdwg.mxu0
        %v1663 = vmul.f32 %v1591, 0.25
        %v1664 = vmul.f32 %v1614, 0.25
        %v1665 = vmul.f32 %v1637, 0.25
        %v1666 = vmul.f32 %v1660, 0.25
        %v1667 = vsel %vm1171, %v1663, -inf
        %1668 = vmax.xlane.f32.xlu0 %v1667
        %v1669 = vpop.xlane.xlu0 %1668
        %v1670 = vsel %vm1171, %v1664, -inf
        %1671 = vmax.xlane.f32.xlu0 %v1670
        %v1672 = vpop.xlane.xlu0 %1671
        %v1673 = vsel %vm1171, %v1665, -inf
        %1674 = vmax.xlane.f32.xlu0 %v1673
        %v1675 = vpop.xlane.xlu0 %1674
        %v1676 = vsel %vm1171, %v1666, -inf
        %1677 = vmax.xlane.f32.xlu0 %v1676
        %v1678 = vpop.xlane.xlu0 %1677
        %v1679 = vsub.f32 %v1663, %v1669
        %v1680 = vsub.f32 %v1664, %v1672
        %v1681 = vsub.f32 %v1665, %v1675
        %v1682 = vsub.f32 %v1666, %v1678
        %v1683 = vmul.f32 %v1679, 1.442695
        %v1684 = vpow.pop %v1683
        %v1685 = vmul.f32 %v1680, 1.442695
        %v1686 = vpow.pop %v1685
        %v1687 = vmul.f32 %v1681, 1.442695
        %v1688 = vpow.pop %v1687
        %v1689 = vmul.f32 %v1682, 1.442695
        %v1690 = vpow.pop %v1689
        %v1691 = vsel %vm1171, %v1684, 0.0
        %1692 = vadd.xlane.f32.xlu0 %v1691
        %v1693 = vpop.xlane.xlu0 %1692
        %v1694 = vsel %vm1171, %v1686, 0.0
        %1695 = vadd.xlane.f32.xlu0 %v1694
        %v1696 = vpop.xlane.xlu0 %1695
        %v1697 = vsel %vm1171, %v1688, 0.0
        %1698 = vadd.xlane.f32.xlu0 %v1697
        %v1699 = vpop.xlane.xlu0 %1698
        %v1700 = vsel %vm1171, %v1690, 0.0
        %1701 = vadd.xlane.f32.xlu0 %v1700
        %v1702 = vpop.xlane.xlu0 %1701
        %v1703 = vrcp.pop %v1693
        %v1704 = vrcp.pop %v1696
        %v1705 = vrcp.pop %v1699
        %v1706 = vrcp.pop %v1702
        %v1707 = vmul.f32 %v1684, %v1703
        %v1708 = vmul.f32 %v1686, %v1704
        %v1709 = vmul.f32 %v1688, %v1705
        %v1710 = vmul.f32 %v1690, %v1706
        %v1711 = vpack.c.bf16 %v1707, %v1707
        %v1712 = vpack.c.bf16 %v1708, %v1708
        %v1713 = vpack.c.bf16 %v1709, %v1709
        %v1714 = vpack.c.bf16 %v1710, %v1710
        %1715 = vrot.lane.b32.xlu0 %v1452, 96
        %v1716 = vpop.permute.xlu0 %1715
        %v1718 = vsel %vm1171, %v1711, 0
        %v1721 = vsel %vm1223, %v1716, 0
        %1723 = vmatpush.bf16.msra.mxu0 0
        %1724 = vmatpush.bf16.msra.mxu0 0
        %1725 = vmatpush.bf16.msra.mxu0 0
        %1726 = vmatpush.bf16.msra.mxu0 0
        %1727 = vmatpush.bf16.msra.mxu0 0
        %1728 = vmatpush.bf16.msra.mxu0 0
        %1729 = vmatpush.bf16.msra.mxu0 0
        %1730 = vmatpush.bf16.msra.mxu0 %v1721
        %1731 = vmatmul.bf16.gmra.mxu0 %v1718
        %v1732 = vpop.f32.mrf.mxu0
        %v1733 = vadd.f32 0.0, %v1732
        %v1734 = vpop.f32.mrf.mxu0
        %1735 = vdwg.mxu0
        %1736 = vrot.lane.b32.xlu0 %v1476, 96
        %v1737 = vpop.permute.xlu0 %1736
        %v1739 = vsel %vm1171, %v1712, 0
        %v1742 = vsel %vm1223, %v1737, 0
        %1744 = vmatpush.bf16.msra.mxu0 0
        %1745 = vmatpush.bf16.msra.mxu0 0
        %1746 = vmatpush.bf16.msra.mxu0 0
        %1747 = vmatpush.bf16.msra.mxu0 0
        %1748 = vmatpush.bf16.msra.mxu0 0
        %1749 = vmatpush.bf16.msra.mxu0 0
        %1750 = vmatpush.bf16.msra.mxu0 0
        %1751 = vmatpush.bf16.msra.mxu0 %v1742
        %1752 = vmatmul.bf16.gmra.mxu0 %v1739
        %v1753 = vpop.f32.mrf.mxu0
        %v1754 = vadd.f32 0.0, %v1753
        %v1755 = vpop.f32.mrf.mxu0
        %1756 = vdwg.mxu0
        %1757 = vrot.lane.b32.xlu0 %v1500, 96
        %v1758 = vpop.permute.xlu0 %1757
        %v1760 = vsel %vm1171, %v1713, 0
        %v1763 = vsel %vm1223, %v1758, 0
        %1765 = vmatpush.bf16.msra.mxu0 0
        %1766 = vmatpush.bf16.msra.mxu0 0
        %1767 = vmatpush.bf16.msra.mxu0 0
        %1768 = vmatpush.bf16.msra.mxu0 0
        %1769 = vmatpush.bf16.msra.mxu0 0
        %1770 = vmatpush.bf16.msra.mxu0 0
        %1771 = vmatpush.bf16.msra.mxu0 0
        %1772 = vmatpush.bf16.msra.mxu0 %v1763
        %1773 = vmatmul.bf16.gmra.mxu0 %v1760
        %v1774 = vpop.f32.mrf.mxu0
        %v1775 = vadd.f32 0.0, %v1774
        %v1776 = vpop.f32.mrf.mxu0
        %1777 = vdwg.mxu0
        %1778 = vrot.lane.b32.xlu0 %v1524, 96
        %v1779 = vpop.permute.xlu0 %1778
        %v1781 = vsel %vm1171, %v1714, 0
        %v1784 = vsel %vm1223, %v1779, 0
        %1786 = vmatpush.bf16.msra.mxu0 0
        %1787 = vmatpush.bf16.msra.mxu0 0
        %1788 = vmatpush.bf16.msra.mxu0 0
        %1789 = vmatpush.bf16.msra.mxu0 0
        %1790 = vmatpush.bf16.msra.mxu0 0
        %1791 = vmatpush.bf16.msra.mxu0 0
        %1792 = vmatpush.bf16.msra.mxu0 0
        %1793 = vmatpush.bf16.msra.mxu0 %v1784
        %1794 = vmatmul.bf16.gmra.mxu0 %v1781
        %v1795 = vpop.f32.mrf.mxu0
        %v1796 = vadd.f32 0.0, %v1795
        %v1797 = vpop.f32.mrf.mxu0
        %1798 = vdwg.mxu0
        %v1799 = vpack.c.bf16 %v1733, %v1733
        %v1800 = vpack.c.bf16 %v1754, %v1754
        %v1801 = vpack.c.bf16 %v1775, %v1775
        %v1802 = vpack.c.bf16 %v1796, %v1796
        %1807 = vrot.lane.b32.xlu0 %v1799, 32
        %v1808 = vpop.permute.xlu0 %1807
        %1809 = vrot.lane.b32.xlu0 %v1800, 32
        %v1810 = vpop.permute.xlu0 %1809
        %1811 = vrot.lane.b32.xlu0 %v1801, 32
        %v1812 = vpop.permute.xlu0 %1811
        %1813 = vrot.lane.b32.xlu0 %v1802, 32
        %v1814 = vpop.permute.xlu0 %1813
        %vm1819 = vcmask 388352
        %1820 = vst.msk [vmem:[#allocation2] sm:$0xf] %vm1819, %v1808
        %1821 = vst.msk [vmem:[#allocation2 + $0x4] sm:$0xf] %vm1819, %v1810
        %1822 = vst.msk [vmem:[#allocation2 + $0x8] sm:$0xf] %vm1819, %v1812
        %1823 = vst.msk [vmem:[#allocation2 + $0xc] sm:$0xf] %vm1819, %v1814
        %1824 = vrot.lane.b32.xlu0 %v1072, 80
        %v1825 = vpop.permute.xlu0 %1824
        %1826 = vrot.lane.b32.xlu0 %v1072, 16
        %v1827 = vpop.permute.xlu0 %1826
        %v1829 = vsel %vm1075, %v1825, 0
        %v1832 = vsel %vm1075, %v1827, 0
        %1834 = vmatpush.bf16.xpose.msra.mxu0 0
        %1835 = vmatpush.bf16.xpose.msra.mxu0 0
        %1836 = vmatpush.bf16.xpose.msra.mxu0 0
        %1837 = vmatpush.bf16.xpose.msra.mxu0 0
        %1838 = vmatpush.bf16.xpose.msra.mxu0 0
        %1839 = vmatpush.bf16.xpose.msra.mxu0 0
        %1840 = vmatpush.bf16.xpose.msra.mxu0 0
        %1841 = vmatpush.bf16.xpose.msra.mxu0 %v1832
        %1842 = vmatmul.bf16.gmra.mxu0 %v1829
        %v1843 = vpop.f32.mrf.mxu0
        %v1844 = vadd.f32 0.0, %v1843
        %v1845 = vpop.f32.mrf.mxu0
        %1846 = vdwg.mxu0
        %1847 = vrot.lane.b32.xlu0 %v1097, 80
        %v1848 = vpop.permute.xlu0 %1847
        %1849 = vrot.lane.b32.xlu0 %v1097, 16
        %v1850 = vpop.permute.xlu0 %1849
        %v1852 = vsel %vm1075, %v1848, 0
        %v1855 = vsel %vm1075, %v1850, 0
        %1857 = vmatpush.bf16.xpose.msra.mxu0 0
        %1858 = vmatpush.bf16.xpose.msra.mxu0 0
        %1859 = vmatpush.bf16.xpose.msra.mxu0 0
        %1860 = vmatpush.bf16.xpose.msra.mxu0 0
        %1861 = vmatpush.bf16.xpose.msra.mxu0 0
        %1862 = vmatpush.bf16.xpose.msra.mxu0 0
        %1863 = vmatpush.bf16.xpose.msra.mxu0 0
        %1864 = vmatpush.bf16.xpose.msra.mxu0 %v1855
        %1865 = vmatmul.bf16.gmra.mxu0 %v1852
        %v1866 = vpop.f32.mrf.mxu0
        %v1867 = vadd.f32 0.0, %v1866
        %v1868 = vpop.f32.mrf.mxu0
        %1869 = vdwg.mxu0
        %1870 = vrot.lane.b32.xlu0 %v1121, 80
        %v1871 = vpop.permute.xlu0 %1870
        %1872 = vrot.lane.b32.xlu0 %v1121, 16
        %v1873 = vpop.permute.xlu0 %1872
        %v1875 = vsel %vm1075, %v1871, 0
        %v1878 = vsel %vm1075, %v1873, 0
        %1880 = vmatpush.bf16.xpose.msra.mxu0 0
        %1881 = vmatpush.bf16.xpose.msra.mxu0 0
        %1882 = vmatpush.bf16.xpose.msra.mxu0 0
        %1883 = vmatpush.bf16.xpose.msra.mxu0 0
        %1884 = vmatpush.bf16.xpose.msra.mxu0 0
        %1885 = vmatpush.bf16.xpose.msra.mxu0 0
        %1886 = vmatpush.bf16.xpose.msra.mxu0 0
        %1887 = vmatpush.bf16.xpose.msra.mxu0 %v1878
        %1888 = vmatmul.bf16.gmra.mxu0 %v1875
        %v1889 = vpop.f32.mrf.mxu0
        %v1890 = vadd.f32 0.0, %v1889
        %v1891 = vpop.f32.mrf.mxu0
        %1892 = vdwg.mxu0
        %1893 = vrot.lane.b32.xlu0 %v1145, 80
        %v1894 = vpop.permute.xlu0 %1893
        %1895 = vrot.lane.b32.xlu0 %v1145, 16
        %v1896 = vpop.permute.xlu0 %1895
        %v1898 = vsel %vm1075, %v1894, 0
        %v1901 = vsel %vm1075, %v1896, 0
        %1903 = vmatpush.bf16.xpose.msra.mxu0 0
        %1904 = vmatpush.bf16.xpose.msra.mxu0 0
        %1905 = vmatpush.bf16.xpose.msra.mxu0 0
        %1906 = vmatpush.bf16.xpose.msra.mxu0 0
        %1907 = vmatpush.bf16.xpose.msra.mxu0 0
        %1908 = vmatpush.bf16.xpose.msra.mxu0 0
        %1909 = vmatpush.bf16.xpose.msra.mxu0 0
        %1910 = vmatpush.bf16.xpose.msra.mxu0 %v1901
        %1911 = vmatmul.bf16.gmra.mxu0 %v1898
        %v1912 = vpop.f32.mrf.mxu0
        %v1913 = vadd.f32 0.0, %v1912
        %v1914 = vpop.f32.mrf.mxu0
        %1915 = vdwg.mxu0
        %v1916 = vmul.f32 %v1844, 0.25
        %v1917 = vmul.f32 %v1867, 0.25
        %v1918 = vmul.f32 %v1890, 0.25
        %v1919 = vmul.f32 %v1913, 0.25
        %v1920 = vsel %vm1171, %v1916, -inf
        %1921 = vmax.xlane.f32.xlu0 %v1920
        %v1922 = vpop.xlane.xlu0 %1921
        %v1923 = vsel %vm1171, %v1917, -inf
        %1924 = vmax.xlane.f32.xlu0 %v1923
        %v1925 = vpop.xlane.xlu0 %1924
        %v1926 = vsel %vm1171, %v1918, -inf
        %1927 = vmax.xlane.f32.xlu0 %v1926
        %v1928 = vpop.xlane.xlu0 %1927
        %v1929 = vsel %vm1171, %v1919, -inf
        %1930 = vmax.xlane.f32.xlu0 %v1929
        %v1931 = vpop.xlane.xlu0 %1930
        %v1932 = vsub.f32 %v1916, %v1922
        %v1933 = vsub.f32 %v1917, %v1925
        %v1934 = vsub.f32 %v1918, %v1928
        %v1935 = vsub.f32 %v1919, %v1931
        %v1936 = vmul.f32 %v1932, 1.442695
        %v1937 = vpow.pop %v1936
        %v1938 = vmul.f32 %v1933, 1.442695
        %v1939 = vpow.pop %v1938
        %v1940 = vmul.f32 %v1934, 1.442695
        %v1941 = vpow.pop %v1940
        %v1942 = vmul.f32 %v1935, 1.442695
        %v1943 = vpow.pop %v1942
        %v1944 = vsel %vm1171, %v1937, 0.0
        %1945 = vadd.xlane.f32.xlu0 %v1944
        %v1946 = vpop.xlane.xlu0 %1945
        %v1947 = vsel %vm1171, %v1939, 0.0
        %1948 = vadd.xlane.f32.xlu0 %v1947
        %v1949 = vpop.xlane.xlu0 %1948
        %v1950 = vsel %vm1171, %v1941, 0.0
        %1951 = vadd.xlane.f32.xlu0 %v1950
        %v1952 = vpop.xlane.xlu0 %1951
        %v1953 = vsel %vm1171, %v1943, 0.0
        %1954 = vadd.xlane.f32.xlu0 %v1953
        %v1955 = vpop.xlane.xlu0 %1954
        %v1956 = vrcp.pop %v1946
        %v1957 = vrcp.pop %v1949
        %v1958 = vrcp.pop %v1952
        %v1959 = vrcp.pop %v1955
        %v1960 = vmul.f32 %v1937, %v1956
        %v1961 = vmul.f32 %v1939, %v1957
        %v1962 = vmul.f32 %v1941, %v1958
        %v1963 = vmul.f32 %v1943, %v1959
        %v1964 = vpack.c.bf16 %v1960, %v1960
        %v1965 = vpack.c.bf16 %v1961, %v1961
        %v1966 = vpack.c.bf16 %v1962, %v1962
        %v1967 = vpack.c.bf16 %v1963, %v1963
        %1968 = vrot.lane.b32.xlu0 %v1452, 80
        %v1969 = vpop.permute.xlu0 %1968
        %v1971 = vsel %vm1171, %v1964, 0
        %v1974 = vsel %vm1223, %v1969, 0
        %1976 = vmatpush.bf16.msra.mxu0 0
        %1977 = vmatpush.bf16.msra.mxu0 0
        %1978 = vmatpush.bf16.msra.mxu0 0
        %1979 = vmatpush.bf16.msra.mxu0 0
        %1980 = vmatpush.bf16.msra.mxu0 0
        %1981 = vmatpush.bf16.msra.mxu0 0
        %1982 = vmatpush.bf16.msra.mxu0 0
        %1983 = vmatpush.bf16.msra.mxu0 %v1974
        %1984 = vmatmul.bf16.gmra.mxu0 %v1971
        %v1985 = vpop.f32.mrf.mxu0
        %v1986 = vadd.f32 0.0, %v1985
        %v1987 = vpop.f32.mrf.mxu0
        %1988 = vdwg.mxu0
        %1989 = vrot.lane.b32.xlu0 %v1476, 80
        %v1990 = vpop.permute.xlu0 %1989
        %v1992 = vsel %vm1171, %v1965, 0
        %v1995 = vsel %vm1223, %v1990, 0
        %1997 = vmatpush.bf16.msra.mxu0 0
        %1998 = vmatpush.bf16.msra.mxu0 0
        %1999 = vmatpush.bf16.msra.mxu0 0
        %2000 = vmatpush.bf16.msra.mxu0 0
        %2001 = vmatpush.bf16.msra.mxu0 0
        %2002 = vmatpush.bf16.msra.mxu0 0
        %2003 = vmatpush.bf16.msra.mxu0 0
        %2004 = vmatpush.bf16.msra.mxu0 %v1995
        %2005 = vmatmul.bf16.gmra.mxu0 %v1992
        %v2006 = vpop.f32.mrf.mxu0
        %v2007 = vadd.f32 0.0, %v2006
        %v2008 = vpop.f32.mrf.mxu0
        %2009 = vdwg.mxu0
        %2010 = vrot.lane.b32.xlu0 %v1500, 80
        %v2011 = vpop.permute.xlu0 %2010
        %v2013 = vsel %vm1171, %v1966, 0
        %v2016 = vsel %vm1223, %v2011, 0
        %2018 = vmatpush.bf16.msra.mxu0 0
        %2019 = vmatpush.bf16.msra.mxu0 0
        %2020 = vmatpush.bf16.msra.mxu0 0
        %2021 = vmatpush.bf16.msra.mxu0 0
        %2022 = vmatpush.bf16.msra.mxu0 0
        %2023 = vmatpush.bf16.msra.mxu0 0
        %2024 = vmatpush.bf16.msra.mxu0 0
        %2025 = vmatpush.bf16.msra.mxu0 %v2016
        %2026 = vmatmul.bf16.gmra.mxu0 %v2013
        %v2027 = vpop.f32.mrf.mxu0
        %v2028 = vadd.f32 0.0, %v2027
        %v2029 = vpop.f32.mrf.mxu0
        %2030 = vdwg.mxu0
        %2031 = vrot.lane.b32.xlu0 %v1524, 80
        %v2032 = vpop.permute.xlu0 %2031
        %v2034 = vsel %vm1171, %v1967, 0
        %v2037 = vsel %vm1223, %v2032, 0
        %2039 = vmatpush.bf16.msra.mxu0 0
        %2040 = vmatpush.bf16.msra.mxu0 0
        %2041 = vmatpush.bf16.msra.mxu0 0
        %2042 = vmatpush.bf16.msra.mxu0 0
        %2043 = vmatpush.bf16.msra.mxu0 0
        %2044 = vmatpush.bf16.msra.mxu0 0
        %2045 = vmatpush.bf16.msra.mxu0 0
        %2046 = vmatpush.bf16.msra.mxu0 %v2037
        %2047 = vmatmul.bf16.gmra.mxu0 %v2034
        %v2048 = vpop.f32.mrf.mxu0
        %v2049 = vadd.f32 0.0, %v2048
        %v2050 = vpop.f32.mrf.mxu0
        %2051 = vdwg.mxu0
        %v2052 = vpack.c.bf16 %v1986, %v1986
        %v2053 = vpack.c.bf16 %v2007, %v2007
        %v2054 = vpack.c.bf16 %v2028, %v2028
        %v2055 = vpack.c.bf16 %v2049, %v2049
        %2060 = vrot.lane.b32.xlu0 %v2052, 48
        %v2061 = vpop.permute.xlu0 %2060
        %2062 = vrot.lane.b32.xlu0 %v2053, 48
        %v2063 = vpop.permute.xlu0 %2062
        %2064 = vrot.lane.b32.xlu0 %v2054, 48
        %v2065 = vpop.permute.xlu0 %2064
        %2066 = vrot.lane.b32.xlu0 %v2055, 48
        %v2067 = vpop.permute.xlu0 %2066
        %vm2072 = vcmask 519552
        %2073 = vst.msk [vmem:[#allocation2] sm:$0xf] %vm2072, %v2061
        %2074 = vst.msk [vmem:[#allocation2 + $0x4] sm:$0xf] %vm2072, %v2063
        %2075 = vst.msk [vmem:[#allocation2 + $0x8] sm:$0xf] %vm2072, %v2065
        %2076 = vst.msk [vmem:[#allocation2 + $0xc] sm:$0xf] %vm2072, %v2067
        %v2077 = vld [vmem:[#allocation2] sm:$0xf]
        %v2078 = vld [vmem:[#allocation2 + $0x4] sm:$0xf]
        %v2079 = vld [vmem:[#allocation2 + $0x8] sm:$0xf]
        %v2080 = vld [vmem:[#allocation2 + $0xc] sm:$0xf]
        %v2081 = vld [vmem:[%s802] sm:$0xf]
        %v2082 = vld [vmem:[%s802 + $0x4] sm:$0xf]
        %v2083 = vld [vmem:[%s802 + $0x8] sm:$0xf]
        %v2084 = vld [vmem:[%s802 + $0xc] sm:$0xf]
        %v2085 = vld [vmem:[%s802 + $0x10] sm:$0xf]
        %v2086 = vld [vmem:[%s802 + $0x14] sm:$0xf]
        %v2087 = vld [vmem:[%s802 + $0x18] sm:$0xf]
        %v2088 = vld [vmem:[%s802 + $0x1c] sm:$0xf]
        %v2089 = vld [vmem:[%s805] sm:$0x1]
        %v2091 = vperm.slane %v2089, 0
        %v2097 = vunpack.c.l.b16 %v2077
        %v2098 = vunpack.c.l.b16 %v2078
        %v2099 = vunpack.c.l.b16 %v2079
        %v2100 = vunpack.c.l.b16 %v2080
        %v2101 = vpack.c.b16 %v2098, %v2097
        %v2102 = vpack.c.b16 %v2100, %v2099
        %v2111 = vunpack.c.l.b16 %v2081
        %v2112 = vunpack.c.l.b16 %v2082
        %v2113 = vunpack.c.l.b16 %v2083
        %v2114 = vunpack.c.l.b16 %v2084
        %v2115 = vunpack.c.l.b16 %v2085
        %v2116 = vunpack.c.l.b16 %v2086
        %v2117 = vunpack.c.l.b16 %v2087
        %v2118 = vunpack.c.l.b16 %v2088
        %v2119 = vpack.c.b16 %v2112, %v2111
        %v2120 = vpack.c.b16 %v2114, %v2113
        %v2121 = vpack.c.b16 %v2116, %v2115
        %v2122 = vpack.c.b16 %v2118, %v2117
        %v2128 = vsel %vm1017, %v2101, 0
        %v2131 = vsel %vm1017, %v2102, 0
        %2133 = vmatpush.bf16.msra.mxu0 0
        %2134 = vmatpush.bf16.msra.mxu0 0
        %2135 = vmatpush.bf16.msra.mxu0 0
        %2136 = vmatpush.bf16.msra.mxu0 0
        %2137 = vmatpush.bf16.msra.mxu0 %v2122
        %2138 = vmatpush.bf16.msra.mxu0 %v2121
        %2139 = vmatpush.bf16.msra.mxu0 %v2120
        %2140 = vmatpush.bf16.msra.mxu0 %v2119
        %2141 = vmatmul.bf16.gmra.mxu0 %v2128
        %v2142 = vpop.f32.mrf.mxu0
        %v2143 = vadd.f32 %v2091, %v2142
        %v2144 = vpop.f32.mrf.mxu0
        %v2145 = vadd.f32 %v2091, %v2144
        %2146 = vmatmul.bf16.gmra.mxu0 %v2131
        %v2147 = vpop.f32.mrf.mxu0
        %v2148 = vadd.f32 %v2091, %v2147
        %v2149 = vpop.f32.mrf.mxu0
        %v2150 = vadd.f32 %v2091, %v2149
        %2151 = vdwg.mxu0
        %v2152 = vadd.f32 %v2143, %v957
        %v2153 = vadd.f32 %v2145, %v958
        %v2154 = vadd.f32 %v2148, %v959
        %v2155 = vadd.f32 %v2150, %v960
        %v2156 = vld [vmem:[%s808] sm:$0x1]
        %v2157 = vld [vmem:[%s811] sm:$0x1]
        %v2158 = vsel %vm1017, %v2152, 0.0
        %2159 = vadd.xlane.f32.xlu0 %v2158
        %v2160 = vpop.xlane.xlu0 %2159
        %v2161 = vsel %vm1017, %v2153, 0.0
        %2162 = vadd.xlane.f32.xlu0 %v2161
        %v2163 = vpop.xlane.xlu0 %2162
        %v2164 = vsel %vm1017, %v2154, 0.0
        %2165 = vadd.xlane.f32.xlu0 %v2164
        %v2166 = vpop.xlane.xlu0 %2165
        %v2167 = vsel %vm1017, %v2155, 0.0
        %2168 = vadd.xlane.f32.xlu0 %v2167
        %v2169 = vpop.xlane.xlu0 %2168
        %v2170 = vrcp.pop 64.0
        %v2171 = vmul.f32 64.0, %v2170
        %v2172 = vsub.f32 1.0, %v2171
        %v2173 = vmul.f32 %v2170, %v2172
        %v2174 = vadd.f32 %v2170, %v2173
        %vm2175 = vweird.f32 %v2170
        %v2176 = vsel %vm2175, %v2170, %v2174
        %v2177 = vmul.f32 %v2160, %v2176
        %v2178 = vmul.f32 %v2163, %v2176
        %v2179 = vmul.f32 %v2166, %v2176
        %v2180 = vmul.f32 %v2169, %v2176
        %v2181 = vsub.f32 %v2152, %v2177
        %v2182 = vsub.f32 %v2153, %v2178
        %v2183 = vsub.f32 %v2154, %v2179
        %v2184 = vsub.f32 %v2155, %v2180
        %v2185 = vmul.f32 %v2181, %v2181
        %v2186 = vmul.f32 %v2182, %v2182
        %v2187 = vmul.f32 %v2183, %v2183
        %v2188 = vmul.f32 %v2184, %v2184
        %v2189 = vsel %vm1017, %v2185, 0.0
        %2190 = vadd.xlane.f32.xlu0 %v2189
        %v2191 = vpop.xlane.xlu0 %2190
        %v2192 = vsel %vm1017, %v2186, 0.0
        %2193 = vadd.xlane.f32.xlu0 %v2192
        %v2194 = vpop.xlane.xlu0 %2193
        %v2195 = vsel %vm1017, %v2187, 0.0
        %2196 = vadd.xlane.f32.xlu0 %v2195
        %v2197 = vpop.xlane.xlu0 %2196
        %v2198 = vsel %vm1017, %v2188, 0.0
        %2199 = vadd.xlane.f32.xlu0 %v2198
        %v2200 = vpop.xlane.xlu0 %2199
        %v2201 = vmul.f32 %v2191, %v2176
        %v2202 = vmul.f32 %v2194, %v2176
        %v2203 = vmul.f32 %v2197, %v2176
        %v2204 = vmul.f32 %v2200, %v2176
        %v2205 = vadd.f32 %v2201, 1e-12
        %v2206 = vadd.f32 %v2202, 1e-12
        %v2207 = vadd.f32 %v2203, 1e-12
        %v2208 = vadd.f32 %v2204, 1e-12
        %v2209 = vrsqrt.pop %v2205
        %v2210 = vmul.f32 %v2209, %v2205
        %v2211 = vmul.f32 %v2210, %v2209
        %v2212 = vmul.f32 0.5, %v2211
        %v2213 = vsub.f32 1.5, %v2212
        %v2214 = vmul.f32 %v2209, %v2213
        %vm2215 = vweird.f32 %v2205
        %vm2216 = vweird.f32 %v2209
        %vm2217 = vmor %vm2215, %vm2216
        %v2218 = vsel %vm2217, %v2209, %v2214
        %v2219 = vrsqrt.pop %v2206
        %v2220 = vmul.f32 %v2219, %v2206
        %v2221 = vmul.f32 %v2220, %v2219
        %v2222 = vmul.f32 0.5, %v2221
        %v2223 = vsub.f32 1.5, %v2222
        %v2224 = vmul.f32 %v2219, %v2223
        %vm2225 = vweird.f32 %v2206
        %vm2226 = vweird.f32 %v2219
        %vm2227 = vmor %vm2225, %vm2226
        %v2228 = vsel %vm2227, %v2219, %v2224
        %v2229 = vrsqrt.pop %v2207
        %v2230 = vmul.f32 %v2229, %v2207
        %v2231 = vmul.f32 %v2230, %v2229
        %v2232 = vmul.f32 0.5, %v2231
        %v2233 = vsub.f32 1.5, %v2232
        %v2234 = vmul.f32 %v2229, %v2233
        %vm2235 = vweird.f32 %v2207
        %vm2236 = vweird.f32 %v2229
        %vm2237 = vmor %vm2235, %vm2236
        %v2238 = vsel %vm2237, %v2229, %v2234
        %v2239 = vrsqrt.pop %v2208
        %v2240 = vmul.f32 %v2239, %v2208
        %v2241 = vmul.f32 %v2240, %v2239
        %v2242 = vmul.f32 0.5, %v2241
        %v2243 = vsub.f32 1.5, %v2242
        %v2244 = vmul.f32 %v2239, %v2243
        %vm2245 = vweird.f32 %v2208
        %vm2246 = vweird.f32 %v2239
        %vm2247 = vmor %vm2245, %vm2246
        %v2248 = vsel %vm2247, %v2239, %v2244
        %v2249 = vmul.f32 %v2181, %v2218
        %v2250 = vmul.f32 %v2182, %v2228
        %v2251 = vmul.f32 %v2183, %v2238
        %v2252 = vmul.f32 %v2184, %v2248
        %v2254 = vperm.slane %v2156, 0
        %v2256 = vmul.f32 %v2249, %v2254
        %v2257 = vmul.f32 %v2250, %v2254
        %v2258 = vmul.f32 %v2251, %v2254
        %v2259 = vmul.f32 %v2252, %v2254
        %v2261 = vperm.slane %v2157, 0
        %v2263 = vadd.f32 %v2256, %v2261
        %v2264 = vadd.f32 %v2257, %v2261
        %v2265 = vadd.f32 %v2258, %v2261
        %v2266 = vadd.f32 %v2259, %v2261
        %v2267 = vpack.c.bf16 %v2264, %v2263
        %v2268 = vpack.c.bf16 %v2266, %v2265
        %v2269 = vld [vmem:[%s696] sm:$0xf]
        %v2270 = vld [vmem:[%s696 + $0x4] sm:$0xf]
        %v2271 = vld [vmem:[%s696 + $0x8] sm:$0xf]
        %v2272 = vld [vmem:[%s696 + $0xc] sm:$0xf]
        %v2273 = vld [vmem:[%s696 + $0x10] sm:$0xf]
        %v2274 = vld [vmem:[%s696 + $0x14] sm:$0xf]
        %v2275 = vld [vmem:[%s696 + $0x18] sm:$0xf]
        %v2276 = vld [vmem:[%s696 + $0x1c] sm:$0xf]
        %v2277 = vld [vmem:[%s814] sm:$0x1]
        %v2279 = vperm.slane %v2277, 0
        %v2289 = vunpack.c.l.b16 %v2269
        %v2290 = vunpack.c.l.b16 %v2270
        %v2291 = vunpack.c.l.b16 %v2271
        %v2292 = vunpack.c.l.b16 %v2272
        %v2293 = vunpack.c.l.b16 %v2273
        %v2294 = vunpack.c.l.b16 %v2274
        %v2295 = vunpack.c.l.b16 %v2275
        %v2296 = vunpack.c.l.b16 %v2276
        %v2297 = vpack.c.b16 %v2290, %v2289
        %v2298 = vpack.c.b16 %v2292, %v2291
        %v2299 = vpack.c.b16 %v2294, %v2293
        %v2300 = vpack.c.b16 %v2296, %v2295
        %v2306 = vsel %vm1017, %v2267, 0
        %v2309 = vsel %vm1017, %v2268, 0
        %2311 = vmatpush.bf16.msra.mxu0 0
        %2312 = vmatpush.bf16.msra.mxu0 0
        %2313 = vmatpush.bf16.msra.mxu0 0
        %2314 = vmatpush.bf16.msra.mxu0 0
        %2315 = vmatpush.bf16.msra.mxu0 %v2300
        %2316 = vmatpush.bf16.msra.mxu0 %v2299
        %2317 = vmatpush.bf16.msra.mxu0 %v2298
        %2318 = vmatpush.bf16.msra.mxu0 %v2297
        %2319 = vmatmul.bf16.gmra.mxu0 %v2306
        %v2320 = vpop.f32.mrf.mxu0
        %v2321 = vadd.f32 %v2279, %v2320
        %v2322 = vpop.f32.mrf.mxu0
        %v2323 = vadd.f32 %v2279, %v2322
        %2324 = vmatmul.bf16.gmra.mxu0 %v2309
        %v2325 = vpop.f32.mrf.mxu0
        %v2326 = vadd.f32 %v2279, %v2325
        %v2327 = vpop.f32.mrf.mxu0
        %v2328 = vadd.f32 %v2279, %v2327
        %2329 = vdwg.mxu0
        %v2330 = vmul.f32 %v2321, 0.5
        %v2331 = vmul.f32 %v2323, 0.5
        %v2332 = vmul.f32 %v2326, 0.5
        %v2333 = vmul.f32 %v2328, 0.5
        %v2334 = vmul.f32 %v2321, 0.70710677
        %v2335 = vmul.f32 %v2323, 0.70710677
        %v2336 = vmul.f32 %v2326, 0.70710677
        %v2337 = vmul.f32 %v2328, 0.70710677
        %v2338 = vmul.f32 %v2334, %v2334
        %v2339 = vmin.f32 16.0, %v2338
        %v2340 = vmul.f32 %v2339, 2.1237322e-06
        %v2341 = vadd.f32 %v2340, 0.00028619796
        %v2342 = vmul.f32 %v2339, %v2341
        %v2343 = vadd.f32 %v2342, 0.0036580483
        %v2344 = vmul.f32 %v2339, %v2343
        %v2345 = vadd.f32 %v2344, 0.05243302
        %v2346 = vmul.f32 %v2339, %v2345
        %v2347 = vadd.f32 %v2346, 0.18741608
        %v2348 = vmul.f32 %v2339, %v2347
        %v2349 = vadd.f32 %v2348, 1.1283791
        %v2350 = vmul.f32 %v2334, %v2349
        %v2351 = vmul.f32 %v2339, 3.8918573e-05
        %v2352 = vadd.f32 %v2351, 0.001143296
        %v2353 = vmul.f32 %v2339, %v2352
        %v2354 = vadd.f32 %v2353, 0.014752088
        %v2355 = vmul.f32 %v2339, %v2354
        %v2356 = vadd.f32 %v2355, 0.112945676
        %v2357 = vmul.f32 %v2339, %v2356
        %v2358 = vadd.f32 %v2357, 0.4994258
        %v2359 = vmul.f32 %v2339, %v2358
        %v2360 = vadd.f32 %v2359, 1.0
        %v2361 = vrcp.pop %v2360
        %v2362 = vmul.f32 %v2360, %v2361
        %v2363 = vsub.f32 1.0, %v2362
        %v2364 = vmul.f32 %v2361, %v2363
        %v2365 = vadd.f32 %v2361, %v2364
        %vm2366 = vweird.f32 %v2360
        %vm2367 = vweird.f32 %v2361
        %vm2368 = vmor %vm2366, %vm2367
        %v2369 = vsel %vm2368, %v2361, %v2365
        %v2370 = vand.u32 2147483647, %v2360
        %vm2371 = vcmp.eq.f32.partialorder %v2370, 8.507059e+37
        %v2372 = vand.u32 %v2360, 2147483648
        %v2373 = vor.u32 1.1754944e-38, %v2372
        %v2374 = vsel %vm2371, %v2373, %v2369
        %v2375 = vmul.f32 %v2350, %v2374
        %v2376 = vmin.f32 %v2375, 1.0
        %v2377 = vmax.f32 %v2376, -1.0
        %v2378 = vmul.f32 %v2335, %v2335
        %v2379 = vmin.f32 16.0, %v2378
        %v2380 = vmul.f32 %v2379, 2.1237322e-06
        %v2381 = vadd.f32 %v2380, 0.00028619796
        %v2382 = vmul.f32 %v2379, %v2381
        %v2383 = vadd.f32 %v2382, 0.0036580483
        %v2384 = vmul.f32 %v2379, %v2383
        %v2385 = vadd.f32 %v2384, 0.05243302
        %v2386 = vmul.f32 %v2379, %v2385
        %v2387 = vadd.f32 %v2386, 0.18741608
        %v2388 = vmul.f32 %v2379, %v2387
        %v2389 = vadd.f32 %v2388, 1.1283791
        %v2390 = vmul.f32 %v2335, %v2389
        %v2391 = vmul.f32 %v2379, 3.8918573e-05
        %v2392 = vadd.f32 %v2391, 0.001143296
        %v2393 = vmul.f32 %v2379, %v2392
        %v2394 = vadd.f32 %v2393, 0.014752088
        %v2395 = vmul.f32 %v2379, %v2394
        %v2396 = vadd.f32 %v2395, 0.112945676
        %v2397 = vmul.f32 %v2379, %v2396
        %v2398 = vadd.f32 %v2397, 0.4994258
        %v2399 = vmul.f32 %v2379, %v2398
        %v2400 = vadd.f32 %v2399, 1.0
        %v2401 = vrcp.pop %v2400
        %v2402 = vmul.f32 %v2400, %v2401
        %v2403 = vsub.f32 1.0, %v2402
        %v2404 = vmul.f32 %v2401, %v2403
        %v2405 = vadd.f32 %v2401, %v2404
        %vm2406 = vweird.f32 %v2400
        %vm2407 = vweird.f32 %v2401
        %vm2408 = vmor %vm2406, %vm2407
        %v2409 = vsel %vm2408, %v2401, %v2405
        %v2410 = vand.u32 2147483647, %v2400
        %vm2411 = vcmp.eq.f32.partialorder %v2410, 8.507059e+37
        %v2412 = vand.u32 %v2400, 2147483648
        %v2413 = vor.u32 1.1754944e-38, %v2412
        %v2414 = vsel %vm2411, %v2413, %v2409
        %v2415 = vmul.f32 %v2390, %v2414
        %v2416 = vmin.f32 %v2415, 1.0
        %v2417 = vmax.f32 %v2416, -1.0
        %v2418 = vmul.f32 %v2336, %v2336
        %v2419 = vmin.f32 16.0, %v2418
        %v2420 = vmul.f32 %v2419, 2.1237322e-06
        %v2421 = vadd.f32 %v2420, 0.00028619796
        %v2422 = vmul.f32 %v2419, %v2421
        %v2423 = vadd.f32 %v2422, 0.0036580483
        %v2424 = vmul.f32 %v2419, %v2423
        %v2425 = vadd.f32 %v2424, 0.05243302
        %v2426 = vmul.f32 %v2419, %v2425
        %v2427 = vadd.f32 %v2426, 0.18741608
        %v2428 = vmul.f32 %v2419, %v2427
        %v2429 = vadd.f32 %v2428, 1.1283791
        %v2430 = vmul.f32 %v2336, %v2429
        %v2431 = vmul.f32 %v2419, 3.8918573e-05
        %v2432 = vadd.f32 %v2431, 0.001143296
        %v2433 = vmul.f32 %v2419, %v2432
        %v2434 = vadd.f32 %v2433, 0.014752088
        %v2435 = vmul.f32 %v2419, %v2434
        %v2436 = vadd.f32 %v2435, 0.112945676
        %v2437 = vmul.f32 %v2419, %v2436
        %v2438 = vadd.f32 %v2437, 0.4994258
        %v2439 = vmul.f32 %v2419, %v2438
        %v2440 = vadd.f32 %v2439, 1.0
        %v2441 = vrcp.pop %v2440
        %v2442 = vmul.f32 %v2440, %v2441
        %v2443 = vsub.f32 1.0, %v2442
        %v2444 = vmul.f32 %v2441, %v2443
        %v2445 = vadd.f32 %v2441, %v2444
        %vm2446 = vweird.f32 %v2440
        %vm2447 = vweird.f32 %v2441
        %vm2448 = vmor %vm2446, %vm2447
        %v2449 = vsel %vm2448, %v2441, %v2445
        %v2450 = vand.u32 2147483647, %v2440
        %vm2451 = vcmp.eq.f32.partialorder %v2450, 8.507059e+37
        %v2452 = vand.u32 %v2440, 2147483648
        %v2453 = vor.u32 1.1754944e-38, %v2452
        %v2454 = vsel %vm2451, %v2453, %v2449
        %v2455 = vmul.f32 %v2430, %v2454
        %v2456 = vmin.f32 %v2455, 1.0
        %v2457 = vmax.f32 %v2456, -1.0
        %v2458 = vmul.f32 %v2337, %v2337
        %v2459 = vmin.f32 16.0, %v2458
        %v2460 = vmul.f32 %v2459, 2.1237322e-06
        %v2461 = vadd.f32 %v2460, 0.00028619796
        %v2462 = vmul.f32 %v2459, %v2461
        %v2463 = vadd.f32 %v2462, 0.0036580483
        %v2464 = vmul.f32 %v2459, %v2463
        %v2465 = vadd.f32 %v2464, 0.05243302
        %v2466 = vmul.f32 %v2459, %v2465
        %v2467 = vadd.f32 %v2466, 0.18741608
        %v2468 = vmul.f32 %v2459, %v2467
        %v2469 = vadd.f32 %v2468, 1.1283791
        %v2470 = vmul.f32 %v2337, %v2469
        %v2471 = vmul.f32 %v2459, 3.8918573e-05
        %v2472 = vadd.f32 %v2471, 0.001143296
        %v2473 = vmul.f32 %v2459, %v2472
        %v2474 = vadd.f32 %v2473, 0.014752088
        %v2475 = vmul.f32 %v2459, %v2474
        %v2476 = vadd.f32 %v2475, 0.112945676
        %v2477 = vmul.f32 %v2459, %v2476
        %v2478 = vadd.f32 %v2477, 0.4994258
        %v2479 = vmul.f32 %v2459, %v2478
        %v2480 = vadd.f32 %v2479, 1.0
        %v2481 = vrcp.pop %v2480
        %v2482 = vmul.f32 %v2480, %v2481
        %v2483 = vsub.f32 1.0, %v2482
        %v2484 = vmul.f32 %v2481, %v2483
        %v2485 = vadd.f32 %v2481, %v2484
        %vm2486 = vweird.f32 %v2480
        %vm2487 = vweird.f32 %v2481
        %vm2488 = vmor %vm2486, %vm2487
        %v2489 = vsel %vm2488, %v2481, %v2485
        %v2490 = vand.u32 2147483647, %v2480
        %vm2491 = vcmp.eq.f32.partialorder %v2490, 8.507059e+37
        %v2492 = vand.u32 %v2480, 2147483648
        %v2493 = vor.u32 1.1754944e-38, %v2492
        %v2494 = vsel %vm2491, %v2493, %v2489
        %v2495 = vmul.f32 %v2470, %v2494
        %v2496 = vmin.f32 %v2495, 1.0
        %v2497 = vmax.f32 %v2496, -1.0
        %v2498 = vadd.f32 %v2377, 1.0
        %v2499 = vadd.f32 %v2417, 1.0
        %v2500 = vadd.f32 %v2457, 1.0
        %v2501 = vadd.f32 %v2497, 1.0
        %v2502 = vmul.f32 %v2330, %v2498
        %v2503 = vmul.f32 %v2331, %v2499
        %v2504 = vmul.f32 %v2332, %v2500
        %v2505 = vmul.f32 %v2333, %v2501
        %v2506 = vpack.c.bf16 %v2503, %v2502
        %v2507 = vpack.c.bf16 %v2505, %v2504
        %v2508 = vld [vmem:[%s819] sm:$0xf]
        %v2509 = vld [vmem:[%s819 + $0x4] sm:$0xf]
        %v2510 = vld [vmem:[%s819 + $0x8] sm:$0xf]
        %v2511 = vld [vmem:[%s819 + $0xc] sm:$0xf]
        %v2512 = vld [vmem:[%s819 + $0x10] sm:$0xf]
        %v2513 = vld [vmem:[%s819 + $0x14] sm:$0xf]
        %v2514 = vld [vmem:[%s819 + $0x18] sm:$0xf]
        %v2515 = vld [vmem:[%s819 + $0x1c] sm:$0xf]
        %v2516 = vld [vmem:[%s819 + $0x20] sm:$0xf]
        %v2517 = vld [vmem:[%s819 + $0x24] sm:$0xf]
        %v2518 = vld [vmem:[%s819 + $0x28] sm:$0xf]
        %v2519 = vld [vmem:[%s819 + $0x2c] sm:$0xf]
        %v2520 = vld [vmem:[%s819 + $0x30] sm:$0xf]
        %v2521 = vld [vmem:[%s819 + $0x34] sm:$0xf]
        %v2522 = vld [vmem:[%s819 + $0x38] sm:$0xf]
        %v2523 = vld [vmem:[%s819 + $0x3c] sm:$0xf]
        %v2524 = vld [vmem:[%s822] sm:$0x1]
        %v2526 = vperm.slane %v2524, 0
        %v2544 = vunpack.c.l.b16 %v2508
        %v2545 = vunpack.c.l.b16 %v2509
        %v2546 = vunpack.c.l.b16 %v2510
        %v2547 = vunpack.c.l.b16 %v2511
        %v2548 = vunpack.c.l.b16 %v2512
        %v2549 = vunpack.c.l.b16 %v2513
        %v2550 = vunpack.c.l.b16 %v2514
        %v2551 = vunpack.c.l.b16 %v2515
        %v2552 = vunpack.c.l.b16 %v2516
        %v2553 = vunpack.c.l.b16 %v2517
        %v2554 = vunpack.c.l.b16 %v2518
        %v2555 = vunpack.c.l.b16 %v2519
        %v2556 = vunpack.c.l.b16 %v2520
        %v2557 = vunpack.c.l.b16 %v2521
        %v2558 = vunpack.c.l.b16 %v2522
        %v2559 = vunpack.c.l.b16 %v2523
        %v2560 = vpack.c.b16 %v2545, %v2544
        %v2561 = vpack.c.b16 %v2547, %v2546
        %v2562 = vpack.c.b16 %v2549, %v2548
        %v2563 = vpack.c.b16 %v2551, %v2550
        %v2564 = vpack.c.b16 %v2553, %v2552
        %v2565 = vpack.c.b16 %v2555, %v2554
        %v2566 = vpack.c.b16 %v2557, %v2556
        %v2567 = vpack.c.b16 %v2559, %v2558
        %2576 = vmatpush.bf16.msra.mxu0 %v2567
        %2577 = vmatpush.bf16.msra.mxu0 %v2566
        %2578 = vmatpush.bf16.msra.mxu0 %v2565
        %2579 = vmatpush.bf16.msra.mxu0 %v2564
        %2580 = vmatpush.bf16.msra.mxu0 %v2563
        %2581 = vmatpush.bf16.msra.mxu0 %v2562
        %2582 = vmatpush.bf16.msra.mxu0 %v2561
        %2583 = vmatpush.bf16.msra.mxu0 %v2560
        %2584 = vmatmul.bf16.gmra.mxu0 %v2506
        %v2585 = vpop.f32.mrf.mxu0
        %v2586 = vadd.f32 %v2526, %v2585
        %v2587 = vpop.f32.mrf.mxu0
        %v2588 = vadd.f32 %v2526, %v2587
        %2589 = vmatmul.bf16.gmra.mxu0 %v2507
        %v2590 = vpop.f32.mrf.mxu0
        %v2591 = vadd.f32 %v2526, %v2590
        %v2592 = vpop.f32.mrf.mxu0
        %v2593 = vadd.f32 %v2526, %v2592
        %2594 = vdwg.mxu0
        %v2595 = vadd.f32 %v2586, %v2263
        %v2596 = vadd.f32 %v2588, %v2264
        %v2597 = vadd.f32 %v2591, %v2265
        %v2598 = vadd.f32 %v2593, %v2266
        %v2599 = vld [vmem:[%s705] sm:$0x1]
        %v2600 = vld [vmem:[%s825] sm:$0x1]
        %v2601 = vsel %vm1017, %v2595, 0.0
        %2602 = vadd.xlane.f32.xlu0 %v2601
        %v2603 = vpop.xlane.xlu0 %2602
        %v2604 = vsel %vm1017, %v2596, 0.0
        %2605 = vadd.xlane.f32.xlu0 %v2604
        %v2606 = vpop.xlane.xlu0 %2605
        %v2607 = vsel %vm1017, %v2597, 0.0
        %2608 = vadd.xlane.f32.xlu0 %v2607
        %v2609 = vpop.xlane.xlu0 %2608
        %v2610 = vsel %vm1017, %v2598, 0.0
        %2611 = vadd.xlane.f32.xlu0 %v2610
        %v2612 = vpop.xlane.xlu0 %2611
        %v2613 = vmul.f32 %v2603, %v2176
        %v2614 = vmul.f32 %v2606, %v2176
        %v2615 = vmul.f32 %v2609, %v2176
        %v2616 = vmul.f32 %v2612, %v2176
        %v2617 = vsub.f32 %v2595, %v2613
        %v2618 = vsub.f32 %v2596, %v2614
        %v2619 = vsub.f32 %v2597, %v2615
        %v2620 = vsub.f32 %v2598, %v2616
        %v2621 = vmul.f32 %v2617, %v2617
        %v2622 = vmul.f32 %v2618, %v2618
        %v2623 = vmul.f32 %v2619, %v2619
        %v2624 = vmul.f32 %v2620, %v2620
        %v2625 = vsel %vm1017, %v2621, 0.0
        %2626 = vadd.xlane.f32.xlu0 %v2625
        %v2627 = vpop.xlane.xlu0 %2626
        %v2628 = vsel %vm1017, %v2622, 0.0
        %2629 = vadd.xlane.f32.xlu0 %v2628
        %v2630 = vpop.xlane.xlu0 %2629
        %v2631 = vsel %vm1017, %v2623, 0.0
        %2632 = vadd.xlane.f32.xlu0 %v2631
        %v2633 = vpop.xlane.xlu0 %2632
        %v2634 = vsel %vm1017, %v2624, 0.0
        %2635 = vadd.xlane.f32.xlu0 %v2634
        %v2636 = vpop.xlane.xlu0 %2635
        %v2637 = vmul.f32 %v2627, %v2176
        %v2638 = vmul.f32 %v2630, %v2176
        %v2639 = vmul.f32 %v2633, %v2176
        %v2640 = vmul.f32 %v2636, %v2176
        %v2641 = vadd.f32 %v2637, 1e-12
        %v2642 = vadd.f32 %v2638, 1e-12
        %v2643 = vadd.f32 %v2639, 1e-12
        %v2644 = vadd.f32 %v2640, 1e-12
        %v2645 = vrsqrt.pop %v2641
        %v2646 = vmul.f32 %v2645, %v2641
        %v2647 = vmul.f32 %v2646, %v2645
        %v2648 = vmul.f32 0.5, %v2647
        %v2649 = vsub.f32 1.5, %v2648
        %v2650 = vmul.f32 %v2645, %v2649
        %vm2651 = vweird.f32 %v2641
        %vm2652 = vweird.f32 %v2645
        %vm2653 = vmor %vm2651, %vm2652
        %v2654 = vsel %vm2653, %v2645, %v2650
        %v2655 = vrsqrt.pop %v2642
        %v2656 = vmul.f32 %v2655, %v2642
        %v2657 = vmul.f32 %v2656, %v2655
        %v2658 = vmul.f32 0.5, %v2657
        %v2659 = vsub.f32 1.5, %v2658
        %v2660 = vmul.f32 %v2655, %v2659
        %vm2661 = vweird.f32 %v2642
        %vm2662 = vweird.f32 %v2655
        %vm2663 = vmor %vm2661, %vm2662
        %v2664 = vsel %vm2663, %v2655, %v2660
        %v2665 = vrsqrt.pop %v2643
        %v2666 = vmul.f32 %v2665, %v2643
        %v2667 = vmul.f32 %v2666, %v2665
        %v2668 = vmul.f32 0.5, %v2667
        %v2669 = vsub.f32 1.5, %v2668
        %v2670 = vmul.f32 %v2665, %v2669
        %vm2671 = vweird.f32 %v2643
        %vm2672 = vweird.f32 %v2665
        %vm2673 = vmor %vm2671, %vm2672
        %v2674 = vsel %vm2673, %v2665, %v2670
        %v2675 = vrsqrt.pop %v2644
        %v2676 = vmul.f32 %v2675, %v2644
        %v2677 = vmul.f32 %v2676, %v2675
        %v2678 = vmul.f32 0.5, %v2677
        %v2679 = vsub.f32 1.5, %v2678
        %v2680 = vmul.f32 %v2675, %v2679
        %vm2681 = vweird.f32 %v2644
        %vm2682 = vweird.f32 %v2675
        %vm2683 = vmor %vm2681, %vm2682
        %v2684 = vsel %vm2683, %v2675, %v2680
        %v2685 = vmul.f32 %v2617, %v2654
        %v2686 = vmul.f32 %v2618, %v2664
        %v2687 = vmul.f32 %v2619, %v2674
        %v2688 = vmul.f32 %v2620, %v2684
        %v2690 = vperm.slane %v2599, 0
        %v2692 = vmul.f32 %v2685, %v2690
        %v2693 = vmul.f32 %v2686, %v2690
        %v2694 = vmul.f32 %v2687, %v2690
        %v2695 = vmul.f32 %v2688, %v2690
        %v2697 = vperm.slane %v2600, 0
        %v2699 = vadd.f32 %v2692, %v2697
        %v2700 = vadd.f32 %v2693, %v2697
        %v2701 = vadd.f32 %v2694, %v2697
        %v2702 = vadd.f32 %v2695, %v2697
        %2703 = vst.msk [vmem:[#allocation14] sm:$0xff] %vm1017, %v2699
        %2704 = vst.msk [vmem:[#allocation14 + $0x8] sm:$0xff] %vm1017, %v2700
        %2705 = vst.msk [vmem:[#allocation14 + $0x10] sm:$0xff] %vm1017, %v2701
        %2706 = vst.msk [vmem:[#allocation14 + $0x18] sm:$0xff] %vm1017, %v2702
        // Predicated region
        $region117: #{tpu_custom_call.1} parent=83 // pred_check
          %p2707 = pneg %p462
        $region118: #{tpu_custom_call.1} parent=83 // pred_check_branch
          %2709 = sbr.rel (%p2707) target = $region120
        $region119: #{tpu_custom_call.1} parent=83 // pred_region
          %s2710 = smul.u32 4, %s35
          %2712 = vsyncadd [#allocation5], 0
          %s2713 = smul.addr %s2710, 8
          %s2714 = scalar_lea.hbm %s16, %s2713
          %s2715 = sshll.u32 [#allocation14], 4
          %s2716 = int_to_ptr.vmem [resolvable:$true] %s2715
          %s2717 = sshll.u32 %s2714, 4
          %s2718 = int_to_ptr.hbm [resolvable:$true] %s2717
          %2723 = dma.vmem_to_hbm [thread:$0]  %s2716, 512, %s2718, [#allocation5], 128, 128, 8
        $region120: #{tpu_custom_call.1} parent=83 // pred_fallthru
          _
        // Predicated region
        $region121: #{tpu_custom_call.1} parent=83 // pred_check
          %p2724 = pneg %p462
        $region122: #{tpu_custom_call.1} parent=83 // pred_check_branch
          %2726 = sbr.rel (%p2724) target = $region124
        $region123: #{tpu_custom_call.1} parent=83 // pred_region
          %2728 = dma.done [#allocation5], 512
        $region124: #{tpu_custom_call.1} parent=83 // pred_fallthru
          _
      $region84: #{tpu_custom_call.1} parent=5 // pred_fallthru
        _
      %p2729 = scmp.le.s32.totalorder 2, %s26
      // Predicated region
      $region125: #{tpu_custom_call.1} parent=5 // pred_check
        %p2730 = pneg %p2729
      $region126: #{tpu_custom_call.1} parent=5 // pred_check_branch
        %2732 = sbr.rel (%p2730) target = $region128
      $region127: #{tpu_custom_call.1} parent=5 // pred_region
        %s2733 = ssub.s32 %s26, 2
      $region128: #{tpu_custom_call.1} parent=5 // pred_fallthru
        _
    $region6: #{tpu_custom_call.1} parent=1 // loop_footer
      %s30 = sadd.s32 1, %s26
    $region7: #{tpu_custom_call.1} parent=1 // loop_footer_branch
      %25 = sbr.rel target = $region3
    $region8: #{tpu_custom_call.1} parent=1 // loop_exit
      _
    %2734 = vsyncpa [#allocation4], 1
    %s2735 = scalar_lea.sflag [#allocation4], 1
    %2736 = vsyncpa %s2735, 1
    %2737 = vsyncpa [#allocation7], 1
    %2738 = vsyncpa [#allocation10], 1
    %2739 = vsyncpa [#allocation5], 1
    %s2740 = scalar_lea.sflag [#allocation5], 1
    %2741 = vsyncpa %s2740, 1

</llo_original>
